<compile_context>
chip_gen: v6e
topology: v6e:2x2x1
jax: 0.10.0
libtpu: 0.0.40
codegen_flags: <defaults>
</compile_context>

<pallas_src>
import functools

import jax
import jax.numpy as jnp
from jax.experimental import pallas as pl
from jax.experimental.pallas import tpu as pltpu


SDIM = 512        # decoder GRU hidden dim
ATTDIM = 512      # attention dim
EMBED_DIM = 128   # FocalNet embed_dim
EMD_DIM = ATTDIM  # decoder target-embedding dim


def _attention_dtype():
    """bf16 attention elementwise/tanh path only on chips with bf16 VPU/EUP (v6e / v7x)."""
    try:
        kind = jax.devices()[0].device_kind.lower()
    except Exception:
        return jnp.float32
    return jnp.bfloat16 if ('v6' in kind or 'v7' in kind) else jnp.float32


# ----------------------------- encoder kernel -----------------------------

def _encoder_kernel(p_ref, pw_ref, pb_ref, g_ref, beta_ref,
                    projw_ref, projb_ref, wx_ref, bx_ref,
                    feat_ref, xproj_ref):
    """Fused: patch-embed matmul + LayerNorm + linear proj + xEmbed projection (one row tile)."""
    emb = jnp.dot(p_ref[...], pw_ref[...],
                  preferred_element_type=jnp.float32) + pb_ref[...]
    mu = jnp.mean(emb, axis=-1, keepdims=True)
    var = jnp.mean(jnp.square(emb - mu), axis=-1, keepdims=True)
    y = (emb - mu) * jax.lax.rsqrt(var + 1e-5) * g_ref[...] + beta_ref[...]
    feat = jnp.dot(y.astype(jnp.bfloat16), projw_ref[...],
                   preferred_element_type=jnp.float32) + projb_ref[...]
    feat_ref[...] = feat
    xproj = jnp.dot(feat.astype(jnp.bfloat16), wx_ref[...],
                    preferred_element_type=jnp.float32) + bx_ref[...]
    xproj_ref[...] = xproj.astype(xproj_ref.dtype)


def encoder_fused(patches, patch_w, patch_b, ln_g, ln_b, proj_w, proj_b, wx, bx,
                  *, attn_dtype):
    """(B*N, Kp) bf16 patches -> (B*N, num_classes) f32 features and (B*N, ATTDIM) xEmbed(feat)."""
    rows, pk = patches.shape
    num_classes = proj_w.shape[1]
    # Fixed row tiles: single block at small row counts (no per-step grid overhead on
    # single-TC v5e/v6e), bounded 256/512-row tiles (megacore-splittable, VMEM-safe) at scale.
    if rows > 512 and rows % 512 == 0:
        tile = 512
    elif rows > 512 and rows % 256 == 0:
        tile = 256
    else:
        tile = rows
    grid = (rows // tile,)
    feat, xproj = pl.pallas_call(
        _encoder_kernel,
        out_shape=(jax.ShapeDtypeStruct((rows, num_classes), jnp.float32),
                   jax.ShapeDtypeStruct((rows, ATTDIM), attn_dtype)),
        grid=grid,
        in_specs=[
            pl.BlockSpec((tile, pk), lambda i: (i, 0)),
            pl.BlockSpec((pk, EMBED_DIM), lambda i: (0, 0)),
            pl.BlockSpec((1, EMBED_DIM), lambda i: (0, 0)),
            pl.BlockSpec((1, EMBED_DIM), lambda i: (0, 0)),
            pl.BlockSpec((1, EMBED_DIM), lambda i: (0, 0)),
            pl.BlockSpec((EMBED_DIM, num_classes), lambda i: (0, 0)),
            pl.BlockSpec((1, num_classes), lambda i: (0, 0)),
            pl.BlockSpec((num_classes, ATTDIM), lambda i: (0, 0)),
            pl.BlockSpec((1, ATTDIM), lambda i: (0, 0)),
        ],
        out_specs=(pl.BlockSpec((tile, num_classes), lambda i: (i, 0)),
                   pl.BlockSpec((tile, ATTDIM), lambda i: (i, 0))),
        compiler_params=pltpu.CompilerParams(
            dimension_semantics=("parallel",)),
    )(patches,
      patch_w.astype(jnp.bfloat16), patch_b.reshape(1, -1),
      ln_g, ln_b,
      proj_w.astype(jnp.bfloat16), proj_b.reshape(1, -1),
      wx.astype(jnp.bfloat16), bx.reshape(1, -1))
    return feat, xproj


# ----------------------------- decoder kernel -----------------------------

def _decoder_kernel(x_ref, xp_ref, giy_ref,
                    wswhh_ref, bs_ref, bhh_ref,
                    wv_ref, wihx_ref,
                    h_out_ref, *, L, sDim, attDim):
    """Teacher-forced attention-GRU recurrence; emits per-step hidden states (L, B, sDim).

    Per decode step the serialized critical path carries only two MXU issues
    (s @ [ws|whh] and context @ wih_x); the score projection also runs on the MXU.
    The output FC is hoisted outside the kernel entirely.
    """
    x = x_ref[...]                        # (B, T, xDim)   f32 encoder features
    xp = xp_ref[...]                      # (B, T, attDim) attn-dtype xEmbed(x)
    wswhh = wswhh_ref[...]                # (sDim, attDim + 3*sDim) bf16  [ws | whh]
    bs = bs_ref[...]                      # (1, attDim)   f32
    bhh = bhh_ref[...]                    # (1, 3*sDim)   f32
    wv = wv_ref[...]                      # (attDim, 1)   attn-dtype
    wihx = wihx_ref[...]                  # (xDim, 3*sDim) bf16

    B, T, _ = x.shape
    cdt = xp.dtype                        # attention elementwise dtype (bf16 on v6e/v7x)

    def step(i, h):
        s = h
        # one fused recurrent GEMM: [sproj | gh] = s @ [ws | whh]
        swh = jnp.dot(s.astype(jnp.bfloat16), wswhh,
                      preferred_element_type=jnp.float32)            # (B, attDim + 3*sDim)
        sproj = swh[:, :attDim] + bs                                  # (B, attDim)
        gh = swh[:, attDim:] + bhh                                    # (B, 3*sDim)

        # ---- AttentionUnit: alpha = softmax(wEmbed(tanh(xEmbed(x) + sEmbed(s)))) ----
        e = jnp.tanh(xp + sproj.astype(cdt)[:, None, :])              # (B, T, attDim)
        # rank-1 score projection on the MXU ((B*T, attDim) @ (attDim, 1)); tile-aligned reshapes
        scores = jnp.dot(e.reshape(B * T, attDim), wv,
                         preferred_element_type=jnp.float32).reshape(B, T, 1)
        m = jnp.max(scores, axis=1, keepdims=True)
        p = jnp.exp(scores - m)
        alpha = p * pl.reciprocal(jnp.sum(p, axis=1, keepdims=True), approx=True)
        context = jnp.sum(alpha * x, axis=1)                          # (B, xDim) on VPU/XLU

        # ---- GRU cell (PyTorch r, z, n gate order); yemb branch + bih precomputed in giy ----
        gi = giy_ref[i] + jnp.dot(context.astype(jnp.bfloat16), wihx,
                                  preferred_element_type=jnp.float32)  # (B, 3*sDim)
        r = jax.nn.sigmoid(gi[:, 0:sDim] + gh[:, 0:sDim])
        z = jax.nn.sigmoid(gi[:, sDim:2 * sDim] + gh[:, sDim:2 * sDim])
        n = jnp.tanh(gi[:, 2 * sDim:3 * sDim] + r * gh[:, 2 * sDim:3 * sDim])
        h_new = (1.0 - z) * n + z * s                                 # (B, sDim)

        h_out_ref[i] = h_new
        return h_new

    jax.lax.fori_loop(0, L, step, jnp.zeros((B, sDim), jnp.float32))


def attention_decoder(x_feat, xproj, giy, ws_whh, bs, bhh, wv, wihx, *, L, sDim):
    B, T, xDim = x_feat.shape
    attDim = xproj.shape[-1]

    def full(shape):
        n = len(shape)
        return pl.BlockSpec(shape, lambda i: (0,) * n)

    kernel = functools.partial(_decoder_kernel, L=L, sDim=sDim, attDim=attDim)
    # TODO(synk): for large batches on v7x, tile the batch dim here (grid over B blocks,
    # dimension_semantics=("parallel",)) so both TensorCores split the decode; at B=2 a
    # 1-row batch tile would violate the (8,128) / full-dim block constraint.
    return pl.pallas_call(
        kernel,
        out_shape=jax.ShapeDtypeStruct((L, B, sDim), jnp.float32),
        grid=(1,),
        in_specs=[
            full((B, T, xDim)),
            full((B, T, attDim)),
            full((L, B, 3 * sDim)),
            full((sDim, attDim + 3 * sDim)),
            full((1, attDim)),
            full((1, 3 * sDim)),
            full((attDim, 1)),
            full((xDim, 3 * sDim)),
        ],
        out_specs=full((L, B, sDim)),
        compiler_params=pltpu.CompilerParams(
            dimension_semantics=("arbitrary",),
            vmem_limit_bytes=32 * 1024 * 1024),
    )(x_feat, xproj, giy, ws_whh, bs, bhh, wv, wihx)


# ----------------------------- model wrapper -----------------------------

def init_params(key, cfg):
    C, H, W = cfg['img_size']
    Ph, Pw = cfg['patch_size']
    num_classes = cfg['num_classes']   # encoder feature dim (decoder in_planes)
    n_classes = cfg['n_classes']       # vocabulary size

    def normal(k, shape, scale=0.02):
        return scale * jax.random.normal(k, shape, dtype=jnp.float32)

    ks = jax.random.split(key, 16)
    params = {
        # encoder (simplified FocalNet stand-in)
        'patch_w': normal(ks[0], (C * Ph * Pw, EMBED_DIM)),
        'patch_b': jnp.zeros((EMBED_DIM,), jnp.float32),
        'ln_g': jnp.ones((1, EMBED_DIM), jnp.float32),
        'ln_b': jnp.zeros((1, EMBED_DIM), jnp.float32),
        'proj_w': normal(ks[1], (EMBED_DIM, num_classes)),
        'proj_b': jnp.zeros((num_classes,), jnp.float32),
        # decoder: attention unit (wEmbed bias dropped: softmax is shift-invariant)
        'wx': normal(ks[2], (num_classes, ATTDIM)),
        'bx': jnp.zeros((ATTDIM,), jnp.float32),
        'ws': normal(ks[3], (SDIM, ATTDIM)),
        'bs': jnp.zeros((1, ATTDIM), jnp.float32),
        'wv': normal(ks[4], (ATTDIM, 1)),
        # decoder: target embedding (n_classes + 1 rows, last row = SOS)
        'emb_table': normal(ks[5], (n_classes + 1, EMD_DIM)),
        # decoder: GRU cell, input weights split into the yemb / context branches
        'wih_y': normal(ks[6], (EMD_DIM, 3 * SDIM)),
        'wih_x': normal(ks[7], (num_classes, 3 * SDIM)),
        'whh': normal(ks[8], (SDIM, 3 * SDIM)),
        'bih': jnp.zeros((3 * SDIM,), jnp.float32),
        'bhh': jnp.zeros((1, 3 * SDIM), jnp.float32),
        # decoder: output linear
        'wfc': normal(ks[9], (SDIM, n_classes)),
        'bfc': jnp.zeros((1, n_classes), jnp.float32),
    }
    return params


def puztext_forward(x_img, tgt, tgt_lens, params, cfg):
    """Mirrors Puztext.forward: encoder -> attention decoder, returns (logits, None)."""
    del tgt_lens  # TODO(synk): original loops for max(tgt_lens) steps (data-dependent);
    #              the static max_len_labels = token_max_length + 1 is used here.
    B = x_img.shape[0]
    C, H, W = cfg['img_size']
    Ph, Pw = cfg['patch_size']
    Hp, Wp = H // Ph, W // Pw
    N = Hp * Wp
    num_classes = cfg['num_classes']
    n_cls = cfg['n_classes']
    L = cfg['token_max_length'] + 1                     # max_len_labels
    attn_dtype = _attention_dtype()

    # ---- patch extraction (NCHW -> (B*N, C*Ph*Pw)); pad feature dim to a lane-dense 128 ----
    pk = C * Ph * Pw
    pkp = ((pk + 127) // 128) * 128
    patches = x_img.reshape(B, C, Hp, Ph, Wp, Pw)
    patches = jnp.transpose(patches, (0, 2, 4, 1, 3, 5)).reshape(B * N, pk)
    patches = jnp.pad(patches, ((0, 0), (0, pkp - pk))).astype(jnp.bfloat16)
    patch_w = jnp.pad(params['patch_w'], ((0, pkp - pk), (0, 0)))

    # ---- simplified FocalNet encoder + xEmbed, fused in one kernel ----
    # TODO(synk): full FocalNet (focal-modulation blocks, depths [2,2,18,2], hierarchical
    # downsampling) has no compact Pallas equivalent here; stand-in = patch-embed conv
    # (as matmul) + LayerNorm + linear projection to `num_classes`-dim token features.
    feat, xproj = encoder_fused(
        patches, patch_w, params['patch_b'], params['ln_g'], params['ln_b'],
        params['proj_w'], params['proj_b'], params['wx'], params['bx'],
        attn_dtype=attn_dtype)
    x_feat = feat.reshape(B, N, num_classes)
    xproj = xproj.reshape(B, N, ATTDIM)

    # previous-token ids: step 0 = SOS (index n_cls), step i = tgt[:, i-1]  (teacher forcing)
    sos = jnp.full((1, B), n_cls, dtype=jnp.int32)
    y_prev = jnp.concatenate([sos, tgt[:, :L - 1].T.astype(jnp.int32)], axis=0)   # (L, B)
    yemb = jnp.take(params['emb_table'], y_prev.reshape(-1), axis=0)              # (L*B, emdDim)

    # teacher forcing => yemb branch of the GRU input GEMM is step-independent:
    # hoist it out of the decode loop as one plain-XLA GEMM (no extra pallas_call launch).
    giy = (jnp.dot(yemb, params['wih_y']) + params['bih']).reshape(L, B, 3 * SDIM)

    # fuse sEmbed and GRU hidden weights into one recurrent operand
    ws_whh = jnp.concatenate([params['ws'], params['whh']], axis=1).astype(jnp.bfloat16)

    h_all = attention_decoder(
        x_feat, xproj, giy, ws_whh, params['bs'], params['bhh'],
        params['wv'].astype(attn_dtype), params['wih_x'].astype(jnp.bfloat16),
        L=L, sDim=SDIM)                                              # (L, B, SDIM)

    # output FC hoisted out of the recurrence: one (L*B, sDim) @ (sDim, n_cls) GEMM in XLA.
    logits = jnp.dot(h_all.reshape(L * B, SDIM), params['wfc']) + params['bfc']
    logits_align = jnp.transpose(logits.reshape(L, B, n_cls), (1, 0, 2))          # (B, L, n_cls)
    return logits_align, None


# ----------------------------- main -----------------------------

if __name__ == "__main__":
    cfg = {
        'null_label': 0,
        'lan_model': {'iter_size': 1, 'd_model': 512},
        'token_max_length': 8,
        'img_size': [3, 32, 32],
        'patch_size': [4, 4],
        'num_classes': 128,   # encoder feature dim (decoder in_planes)
        'n_classes': 40,      # vocab size
    }

    key = jax.random.PRNGKey(0)
    kx, kt, kp = jax.random.split(key, 3)
    B = 2
    x_img = jax.random.normal(kx, (B, *cfg['img_size']), dtype=jnp.float32)
    tgt = jax.random.randint(kt, (B, cfg['token_max_length']), 1, cfg['n_classes'],
                             dtype=jnp.int32)
    tgt_lens = jnp.full((B,), cfg['token_max_length'] + 1, dtype=jnp.int32)
    params = init_params(kp, cfg)

    fwd = jax.jit(lambda xi, tg: puztext_forward(xi, tg, tgt_lens, params, cfg))
    logits, _ = fwd(x_img, tgt)
    logits = jax.block_until_ready(logits)

    expected = (B, cfg['token_max_length'] + 1, cfg['n_classes'])
    assert logits.shape == expected, (logits.shape, expected)
    assert bool(jnp.all(jnp.isfinite(logits)))
    print("KERNEL_OK")
</pallas_src>

<mosaic_0001>
module attributes {stable_mosaic.version = 11 : i64} {
  func.func @_encoder_kernel(%arg0: i32, %arg1: memref<128x128xbf16, #tpu.memory_space<vmem>>, %arg2: memref<128x128xbf16, #tpu.memory_space<vmem>>, %arg3: memref<1x128xf32, #tpu.memory_space<vmem>>, %arg4: memref<1x128xf32, #tpu.memory_space<vmem>>, %arg5: memref<1x128xf32, #tpu.memory_space<vmem>>, %arg6: memref<128x128xbf16, #tpu.memory_space<vmem>>, %arg7: memref<1x128xf32, #tpu.memory_space<vmem>>, %arg8: memref<128x512xbf16, #tpu.memory_space<vmem>>, %arg9: memref<1x512xf32, #tpu.memory_space<vmem>>, %arg10: memref<128x128xf32, #tpu.memory_space<vmem>>, %arg11: memref<128x512xf32, #tpu.memory_space<vmem>>) attributes {dimension_semantics = [#tpu.dimension_semantics<parallel>], iteration_bounds = array<i64: 1>, scalar_prefetch = 0 : i64, scratch_operands = 0 : i64, tpu.core_type = #tpu.core_type<tc>, window_params = [{transform_indices = @transform_0, window_bounds = array<i64: 128, 128>}, {pipeline_mode = #tpu.pipeline_mode<synchronous>, transform_indices = @transform_1, window_bounds = array<i64: 128, 128>}, {pipeline_mode = #tpu.pipeline_mode<synchronous>, transform_indices = @transform_2, window_bounds = array<i64: 1, 128>}, {pipeline_mode = #tpu.pipeline_mode<synchronous>, transform_indices = @transform_3, window_bounds = array<i64: 1, 128>}, {pipeline_mode = #tpu.pipeline_mode<synchronous>, transform_indices = @transform_4, window_bounds = array<i64: 1, 128>}, {pipeline_mode = #tpu.pipeline_mode<synchronous>, transform_indices = @transform_5, window_bounds = array<i64: 128, 128>}, {pipeline_mode = #tpu.pipeline_mode<synchronous>, transform_indices = @transform_6, window_bounds = array<i64: 1, 128>}, {pipeline_mode = #tpu.pipeline_mode<synchronous>, transform_indices = @transform_7, window_bounds = array<i64: 128, 512>}, {pipeline_mode = #tpu.pipeline_mode<synchronous>, transform_indices = @transform_8, window_bounds = array<i64: 1, 512>}, {transform_indices = @transform_9, window_bounds = array<i64: 128, 128>}, {transform_indices = @transform_10, window_bounds = array<i64: 128, 512>}]} {
    %c0 = arith.constant 0 : index
    %c0_0 = arith.constant 0 : index
    %0 = vector.load %arg1[%c0, %c0_0] : memref<128x128xbf16, #tpu.memory_space<vmem>>, vector<128x128xbf16>
    %c0_1 = arith.constant 0 : index
    %c0_2 = arith.constant 0 : index
    %1 = vector.load %arg2[%c0_1, %c0_2] : memref<128x128xbf16, #tpu.memory_space<vmem>>, vector<128x128xbf16>
    %cst = arith.constant dense<0.000000e+00> : vector<128x128xf32>
    %2 = tpu.matmul %0, %1, %cst {dimension_numbers = #tpu.dot_dimension_numbers<[1], [0], [0], [1], [0, 0, 1, 1], [], []>} : vector<128x128xbf16>, vector<128x128xbf16>, vector<128x128xf32> -> vector<128x128xf32>
    %c0_3 = arith.constant 0 : index
    %c0_4 = arith.constant 0 : index
    %3 = vector.load %arg3[%c0_3, %c0_4] : memref<1x128xf32, #tpu.memory_space<vmem>>, vector<1x128xf32>
    %4 = vector.broadcast %3 : vector<1x128xf32> to vector<128x128xf32>
    %5 = arith.addf %2, %4 : vector<128x128xf32>
    %cst_5 = arith.constant dense<0.000000e+00> : vector<128xf32>
    %6 = vector.multi_reduction <add>, %5, %cst_5 [1] : vector<128x128xf32> to vector<128xf32>
    %7 = vector.shape_cast %6 : vector<128xf32> to vector<128x1xf32>
    %cst_6 = arith.constant 1.280000e+02 : f32
    %8 = vector.broadcast %cst_6 : f32 to vector<128x1xf32>
    %9 = arith.divf %7, %8 : vector<128x1xf32>
    %10 = vector.broadcast %9 : vector<128x1xf32> to vector<128x128xf32>
    %11 = arith.subf %5, %10 : vector<128x128xf32>
    %12 = arith.mulf %11, %11 : vector<128x128xf32>
    %cst_7 = arith.constant dense<0.000000e+00> : vector<128xf32>
    %13 = vector.multi_reduction <add>, %12, %cst_7 [1] : vector<128x128xf32> to vector<128xf32>
    %14 = vector.shape_cast %13 : vector<128xf32> to vector<128x1xf32>
    %cst_8 = arith.constant 1.280000e+02 : f32
    %15 = vector.broadcast %cst_8 : f32 to vector<128x1xf32>
    %16 = arith.divf %14, %15 : vector<128x1xf32>
    %17 = vector.broadcast %9 : vector<128x1xf32> to vector<128x128xf32>
    %18 = arith.subf %5, %17 : vector<128x128xf32>
    %cst_9 = arith.constant 9.99999974E-6 : f32
    %19 = vector.broadcast %cst_9 : f32 to vector<128x1xf32>
    %20 = arith.addf %16, %19 : vector<128x1xf32>
    %21 = math.rsqrt %20 : vector<128x1xf32>
    %22 = vector.broadcast %21 : vector<128x1xf32> to vector<128x128xf32>
    %23 = arith.mulf %18, %22 : vector<128x128xf32>
    %c0_10 = arith.constant 0 : index
    %c0_11 = arith.constant 0 : index
    %24 = vector.load %arg4[%c0_10, %c0_11] : memref<1x128xf32, #tpu.memory_space<vmem>>, vector<1x128xf32>
    %25 = vector.broadcast %24 : vector<1x128xf32> to vector<128x128xf32>
    %26 = arith.mulf %23, %25 : vector<128x128xf32>
    %c0_12 = arith.constant 0 : index
    %c0_13 = arith.constant 0 : index
    %27 = vector.load %arg5[%c0_12, %c0_13] : memref<1x128xf32, #tpu.memory_space<vmem>>, vector<1x128xf32>
    %28 = vector.broadcast %27 : vector<1x128xf32> to vector<128x128xf32>
    %29 = arith.addf %26, %28 : vector<128x128xf32>
    %30 = arith.truncf %29 : vector<128x128xf32> to vector<128x128xbf16>
    %c0_14 = arith.constant 0 : index
    %c0_15 = arith.constant 0 : index
    %31 = vector.load %arg6[%c0_14, %c0_15] : memref<128x128xbf16, #tpu.memory_space<vmem>>, vector<128x128xbf16>
    %cst_16 = arith.constant dense<0.000000e+00> : vector<128x128xf32>
    %32 = tpu.matmul %30, %31, %cst_16 {dimension_numbers = #tpu.dot_dimension_numbers<[1], [0], [0], [1], [0, 0, 1, 1], [], []>} : vector<128x128xbf16>, vector<128x128xbf16>, vector<128x128xf32> -> vector<128x128xf32>
    %c0_17 = arith.constant 0 : index
    %c0_18 = arith.constant 0 : index
    %33 = vector.load %arg7[%c0_17, %c0_18] : memref<1x128xf32, #tpu.memory_space<vmem>>, vector<1x128xf32>
    %34 = vector.broadcast %33 : vector<1x128xf32> to vector<128x128xf32>
    %35 = arith.addf %32, %34 : vector<128x128xf32>
    %c0_19 = arith.constant 0 : index
    %c0_20 = arith.constant 0 : index
    %36 = vector.load %arg10[%c0_19, %c0_20] : memref<128x128xf32, #tpu.memory_space<vmem>>, vector<128x128xf32>
    tpu.vector_store %arg10[%c0_19, %c0_20], %35 {strides = array<i32>} : memref<128x128xf32, #tpu.memory_space<vmem>>, vector<128x128xf32>,
    %37 = arith.truncf %35 : vector<128x128xf32> to vector<128x128xbf16>
    %c0_21 = arith.constant 0 : index
    %c0_22 = arith.constant 0 : index
    %38 = vector.load %arg8[%c0_21, %c0_22] : memref<128x512xbf16, #tpu.memory_space<vmem>>, vector<128x512xbf16>
    %cst_23 = arith.constant dense<0.000000e+00> : vector<128x512xf32>
    %39 = tpu.matmul %37, %38, %cst_23 {dimension_numbers = #tpu.dot_dimension_numbers<[1], [0], [0], [1], [0, 0, 1, 1], [], []>} : vector<128x128xbf16>, vector<128x512xbf16>, vector<128x512xf32> -> vector<128x512xf32>
    %c0_24 = arith.constant 0 : index
    %c0_25 = arith.constant 0 : index
    %40 = vector.load %arg9[%c0_24, %c0_25] : memref<1x512xf32, #tpu.memory_space<vmem>>, vector<1x512xf32>
    %41 = vector.broadcast %40 : vector<1x512xf32> to vector<128x512xf32>
    %42 = arith.addf %39, %41 : vector<128x512xf32>
    %c0_26 = arith.constant 0 : index
    %c0_27 = arith.constant 0 : index
    %43 = vector.load %arg11[%c0_26, %c0_27] : memref<128x512xf32, #tpu.memory_space<vmem>>, vector<128x512xf32>
    tpu.vector_store %arg11[%c0_26, %c0_27], %42 {strides = array<i32>} : memref<128x512xf32, #tpu.memory_space<vmem>>, vector<128x512xf32>,
    return
  }
  func.func @transform_0(%arg0: i32) -> (i32, i32) {
    %c0_i32 = arith.constant 0 : i32
    %c0_i32_0 = arith.constant 0 : i32
    return %arg0, %c0_i32 : i32, i32
  }
  func.func @transform_1(%arg0: i32) -> (i32, i32) {
    %c0_i32 = arith.constant 0 : i32
    %c0_i32_0 = arith.constant 0 : i32
    %c0_i32_1 = arith.constant 0 : i32
    return %c0_i32, %c0_i32_0 : i32, i32
  }
  func.func @transform_2(%arg0: i32) -> (i32, i32) {
    %c0_i32 = arith.constant 0 : i32
    %c0_i32_0 = arith.constant 0 : i32
    %c0_i32_1 = arith.constant 0 : i32
    return %c0_i32, %c0_i32_0 : i32, i32
  }
  func.func @transform_3(%arg0: i32) -> (i32, i32) {
    %c0_i32 = arith.constant 0 : i32
    %c0_i32_0 = arith.constant 0 : i32
    %c0_i32_1 = arith.constant 0 : i32
    return %c0_i32, %c0_i32_0 : i32, i32
  }
  func.func @transform_4(%arg0: i32) -> (i32, i32) {
    %c0_i32 = arith.constant 0 : i32
    %c0_i32_0 = arith.constant 0 : i32
    %c0_i32_1 = arith.constant 0 : i32
    return %c0_i32, %c0_i32_0 : i32, i32
  }
  func.func @transform_5(%arg0: i32) -> (i32, i32) {
    %c0_i32 = arith.constant 0 : i32
    %c0_i32_0 = arith.constant 0 : i32
    %c0_i32_1 = arith.constant 0 : i32
    return %c0_i32, %c0_i32_0 : i32, i32
  }
  func.func @transform_6(%arg0: i32) -> (i32, i32) {
    %c0_i32 = arith.constant 0 : i32
    %c0_i32_0 = arith.constant 0 : i32
    %c0_i32_1 = arith.constant 0 : i32
    return %c0_i32, %c0_i32_0 : i32, i32
  }
  func.func @transform_7(%arg0: i32) -> (i32, i32) {
    %c0_i32 = arith.constant 0 : i32
    %c0_i32_0 = arith.constant 0 : i32
    %c0_i32_1 = arith.constant 0 : i32
    return %c0_i32, %c0_i32_0 : i32, i32
  }
  func.func @transform_8(%arg0: i32) -> (i32, i32) {
    %c0_i32 = arith.constant 0 : i32
    %c0_i32_0 = arith.constant 0 : i32
    %c0_i32_1 = arith.constant 0 : i32
    return %c0_i32, %c0_i32_0 : i32, i32
  }
  func.func @transform_9(%arg0: i32) -> (i32, i32) {
    %c0_i32 = arith.constant 0 : i32
    %c0_i32_0 = arith.constant 0 : i32
    return %arg0, %c0_i32 : i32, i32
  }
  func.func @transform_10(%arg0: i32) -> (i32, i32) {
    %c0_i32 = arith.constant 0 : i32
    %c0_i32_0 = arith.constant 0 : i32
    return %arg0, %c0_i32 : i32, i32
  }
}

module attributes {stable_mosaic.version = 11 : i64} {
  func.func @_decoder_kernel(%arg0: i32, %arg1: memref<2x64x128xf32, #tpu.memory_space<vmem>>, %arg2: memref<2x64x512xf32, #tpu.memory_space<vmem>>, %arg3: memref<9x2x1536xf32, #tpu.memory_space<vmem>>, %arg4: memref<512x2048xbf16, #tpu.memory_space<vmem>>, %arg5: memref<1x512xf32, #tpu.memory_space<vmem>>, %arg6: memref<1x1536xf32, #tpu.memory_space<vmem>>, %arg7: memref<512x1xf32, #tpu.memory_space<vmem>>, %arg8: memref<128x1536xbf16, #tpu.memory_space<vmem>>, %arg9: memref<9x2x512xf32, #tpu.memory_space<vmem>>) attributes {dimension_semantics = [#tpu.dimension_semantics<arbitrary>], iteration_bounds = array<i64: 1>, scalar_prefetch = 0 : i64, scratch_operands = 0 : i64, tpu.core_type = #tpu.core_type<tc>, window_params = [{pipeline_mode = #tpu.pipeline_mode<synchronous>, transform_indices = @transform_0, window_bounds = array<i64: 2, 64, 128>}, {pipeline_mode = #tpu.pipeline_mode<synchronous>, transform_indices = @transform_1, window_bounds = array<i64: 2, 64, 512>}, {pipeline_mode = #tpu.pipeline_mode<synchronous>, transform_indices = @transform_2, window_bounds = array<i64: 9, 2, 1536>}, {pipeline_mode = #tpu.pipeline_mode<synchronous>, transform_indices = @transform_3, window_bounds = array<i64: 512, 2048>}, {pipeline_mode = #tpu.pipeline_mode<synchronous>, transform_indices = @transform_4, window_bounds = array<i64: 1, 512>}, {pipeline_mode = #tpu.pipeline_mode<synchronous>, transform_indices = @transform_5, window_bounds = array<i64: 1, 1536>}, {pipeline_mode = #tpu.pipeline_mode<synchronous>, transform_indices = @transform_6, window_bounds = array<i64: 512, 1>}, {pipeline_mode = #tpu.pipeline_mode<synchronous>, transform_indices = @transform_7, window_bounds = array<i64: 128, 1536>}, {pipeline_mode = #tpu.pipeline_mode<synchronous>, transform_indices = @transform_8, window_bounds = array<i64: 9, 2, 512>}]} {
    %c0 = arith.constant 0 : index
    %c0_0 = arith.constant 0 : index
    %c0_1 = arith.constant 0 : index
    %0 = vector.load %arg1[%c0, %c0_0, %c0_1] : memref<2x64x128xf32, #tpu.memory_space<vmem>>, vector<2x64x128xf32>
    %c0_2 = arith.constant 0 : index
    %c0_3 = arith.constant 0 : index
    %c0_4 = arith.constant 0 : index
    %1 = vector.load %arg2[%c0_2, %c0_3, %c0_4] : memref<2x64x512xf32, #tpu.memory_space<vmem>>, vector<2x64x512xf32>
    %c0_5 = arith.constant 0 : index
    %c0_6 = arith.constant 0 : index
    %2 = vector.load %arg4[%c0_5, %c0_6] : memref<512x2048xbf16, #tpu.memory_space<vmem>>, vector<512x2048xbf16>
    %c0_7 = arith.constant 0 : index
    %c0_8 = arith.constant 0 : index
    %3 = vector.load %arg5[%c0_7, %c0_8] : memref<1x512xf32, #tpu.memory_space<vmem>>, vector<1x512xf32>
    %c0_9 = arith.constant 0 : index
    %c0_10 = arith.constant 0 : index
    %4 = vector.load %arg6[%c0_9, %c0_10] : memref<1x1536xf32, #tpu.memory_space<vmem>>, vector<1x1536xf32>
    %c0_11 = arith.constant 0 : index
    %c0_12 = arith.constant 0 : index
    %5 = vector.load %arg7[%c0_11, %c0_12] : memref<512x1xf32, #tpu.memory_space<vmem>>, vector<512x1xf32>
    %c0_13 = arith.constant 0 : index
    %c0_14 = arith.constant 0 : index
    %6 = vector.load %arg8[%c0_13, %c0_14] : memref<128x1536xbf16, #tpu.memory_space<vmem>>, vector<128x1536xbf16>
    %cst = arith.constant 0.000000e+00 : f32
    %7 = vector.broadcast %cst : f32 to vector<2x512xf32>
    %c0_i32 = arith.constant 0 : i32
    %c9_i32 = arith.constant 9 : i32
    %8 = arith.addi %c0_i32, %c9_i32 : i32
    %c1_i32 = arith.constant 1 : i32
    %9 = scf.for %arg10 = %c0_i32 to %8 step %c1_i32 iter_args(%arg11 = %7) -> (vector<2x512xf32>)  : i32 {
      %10 = arith.truncf %arg11 : vector<2x512xf32> to vector<2x512xbf16>
      %cst_16 = arith.constant dense<0.000000e+00> : vector<2x2048xf32>
      %11 = tpu.matmul %10, %2, %cst_16 {dimension_numbers = #tpu.dot_dimension_numbers<[1], [0], [0], [1], [0, 0, 1, 1], [], []>} : vector<2x512xbf16>, vector<512x2048xbf16>, vector<2x2048xf32> -> vector<2x2048xf32>
      %12 = vector.extract_strided_slice %11 {offsets = [0, 0], sizes = [2, 512], strides = [1, 1]} : vector<2x2048xf32> to vector<2x512xf32>
      %13 = vector.broadcast %3 : vector<1x512xf32> to vector<2x512xf32>
      %14 = arith.addf %12, %13 : vector<2x512xf32>
      %15 = vector.extract_strided_slice %11 {offsets = [0, 512], sizes = [2, 1536], strides = [1, 1]} : vector<2x2048xf32> to vector<2x1536xf32>
      %16 = vector.broadcast %4 : vector<1x1536xf32> to vector<2x1536xf32>
      %17 = arith.addf %15, %16 : vector<2x1536xf32>
      %18 = vector.shape_cast %14 : vector<2x512xf32> to vector<2x1x512xf32>
      %19 = vector.broadcast %18 : vector<2x1x512xf32> to vector<2x64x512xf32>
      %20 = arith.addf %1, %19 : vector<2x64x512xf32>
      %21 = math.tanh %20 : vector<2x64x512xf32>
      %22 = vector.shape_cast %21 : vector<2x64x512xf32> to vector<128x512xf32>
      %cst_17 = arith.constant dense<0.000000e+00> : vector<128x1xf32>
      %23 = tpu.matmul %22, %5, %cst_17 {dimension_numbers = #tpu.dot_dimension_numbers<[1], [0], [0], [1], [0, 0, 1, 1], [], []>} : vector<128x512xf32>, vector<512x1xf32>, vector<128x1xf32> -> vector<128x1xf32>
      %24 = vector.shape_cast %23 : vector<128x1xf32> to vector<2x64x1xf32>
      %cst_18 = arith.constant dense<0xFF800000> : vector<2x1xf32>
      %25 = vector.multi_reduction <maximumf>, %24, %cst_18 [1] : vector<2x64x1xf32> to vector<2x1xf32>
      %26 = vector.shape_cast %25 : vector<2x1xf32> to vector<2x1x1xf32>
      %27 = vector.broadcast %26 : vector<2x1x1xf32> to vector<2x64x1xf32>
      %28 = arith.subf %24, %27 : vector<2x64x1xf32>
      %29 = math.exp %28 : vector<2x64x1xf32>
      %cst_19 = arith.constant dense<0.000000e+00> : vector<2x1xf32>
      %30 = vector.multi_reduction <add>, %29, %cst_19 [1] : vector<2x64x1xf32> to vector<2x1xf32>
      %31 = vector.shape_cast %30 : vector<2x1xf32> to vector<2x1x1xf32>
      %32 = tpu.reciprocal %31 {approx = true} : vector<2x1x1xf32> -> vector<2x1x1xf32>
      %33 = vector.broadcast %32 : vector<2x1x1xf32> to vector<2x64x1xf32>
      %34 = arith.mulf %29, %33 : vector<2x64x1xf32>
      %35 = vector.broadcast %34 : vector<2x64x1xf32> to vector<2x64x128xf32>
      %36 = arith.mulf %35, %0 : vector<2x64x128xf32>
      %cst_20 = arith.constant dense<0.000000e+00> : vector<2x128xf32>
      %37 = vector.multi_reduction <add>, %36, %cst_20 [1] : vector<2x64x128xf32> to vector<2x128xf32>
      %38 = arith.index_cast %arg10 : i32 to index
      %c0_21 = arith.constant 0 : index
      %c0_22 = arith.constant 0 : index
      %39 = vector.load %arg3[%38, %c0_21, %c0_22] : memref<9x2x1536xf32, #tpu.memory_space<vmem>>, vector<1x2x1536xf32>
      %40 = vector.shape_cast %39 : vector<1x2x1536xf32> to vector<2x1536xf32>
      %41 = arith.truncf %37 : vector<2x128xf32> to vector<2x128xbf16>
      %cst_23 = arith.constant dense<0.000000e+00> : vector<2x1536xf32>
      %42 = tpu.matmul %41, %6, %cst_23 {dimension_numbers = #tpu.dot_dimension_numbers<[1], [0], [0], [1], [0, 0, 1, 1], [], []>} : vector<2x128xbf16>, vector<128x1536xbf16>, vector<2x1536xf32> -> vector<2x1536xf32>
      %43 = arith.addf %40, %42 : vector<2x1536xf32>
      %44 = vector.extract_strided_slice %43 {offsets = [0, 0], sizes = [2, 512], strides = [1, 1]} : vector<2x1536xf32> to vector<2x512xf32>
      %45 = vector.extract_strided_slice %17 {offsets = [0, 0], sizes = [2, 512], strides = [1, 1]} : vector<2x1536xf32> to vector<2x512xf32>
      %46 = arith.addf %44, %45 : vector<2x512xf32>
      %47 = arith.negf %46 : vector<2x512xf32>
      %48 = math.exp %47 : vector<2x512xf32>
      %cst_24 = arith.constant 1.000000e+00 : f32
      %49 = vector.broadcast %cst_24 : f32 to vector<2x512xf32>
      %50 = arith.addf %49, %48 : vector<2x512xf32>
      %51 = arith.divf %49, %50 : vector<2x512xf32>
      %52 = vector.extract_strided_slice %43 {offsets = [0, 512], sizes = [2, 512], strides = [1, 1]} : vector<2x1536xf32> to vector<2x512xf32>
      %53 = vector.extract_strided_slice %17 {offsets = [0, 512], sizes = [2, 512], strides = [1, 1]} : vector<2x1536xf32> to vector<2x512xf32>
      %54 = arith.addf %52, %53 : vector<2x512xf32>
      %55 = arith.negf %54 : vector<2x512xf32>
      %56 = math.exp %55 : vector<2x512xf32>
      %cst_25 = arith.constant 1.000000e+00 : f32
      %57 = vector.broadcast %cst_25 : f32 to vector<2x512xf32>
      %58 = arith.addf %57, %56 : vector<2x512xf32>
      %59 = arith.divf %57, %58 : vector<2x512xf32>
      %60 = vector.extract_strided_slice %43 {offsets = [0, 1024], sizes = [2, 512], strides = [1, 1]} : vector<2x1536xf32> to vector<2x512xf32>
      %61 = vector.extract_strided_slice %17 {offsets = [0, 1024], sizes = [2, 512], strides = [1, 1]} : vector<2x1536xf32> to vector<2x512xf32>
      %62 = arith.mulf %51, %61 : vector<2x512xf32>
      %63 = arith.addf %60, %62 : vector<2x512xf32>
      %64 = math.tanh %63 : vector<2x512xf32>
      %cst_26 = arith.constant 1.000000e+00 : f32
      %65 = vector.broadcast %cst_26 : f32 to vector<2x512xf32>
      %66 = arith.subf %65, %59 : vector<2x512xf32>
      %67 = arith.mulf %66, %64 : vector<2x512xf32>
      %68 = arith.mulf %59, %arg11 : vector<2x512xf32>
      %69 = arith.addf %67, %68 : vector<2x512xf32>
      %70 = arith.index_cast %arg10 : i32 to index
      %c0_27 = arith.constant 0 : index
      %c0_28 = arith.constant 0 : index
      %71 = vector.load %arg9[%70, %c0_27, %c0_28] : memref<9x2x512xf32, #tpu.memory_space<vmem>>, vector<1x2x512xf32>
      %72 = vector.shape_cast %71 : vector<1x2x512xf32> to vector<2x512xf32>
      %73 = vector.shape_cast %69 : vector<2x512xf32> to vector<1x2x512xf32>
      tpu.vector_store %arg9[%70, %c0_27, %c0_28], %73 {strides = array<i32>} : memref<9x2x512xf32, #tpu.memory_space<vmem>>, vector<1x2x512xf32>,
      scf.yield %69 : vector<2x512xf32>
    }
    %c9_i32_15 = arith.constant 9 : i32
    return
  }
  func.func @transform_0(%arg0: i32) -> (i32, i32, i32) {
    %c0_i32 = arith.constant 0 : i32
    %c0_i32_0 = arith.constant 0 : i32
    %c0_i32_1 = arith.constant 0 : i32
    %c0_i32_2 = arith.constant 0 : i32
    return %c0_i32, %c0_i32_0, %c0_i32_1 : i32, i32, i32
  }
  func.func @transform_1(%arg0: i32) -> (i32, i32, i32) {
    %c0_i32 = arith.constant 0 : i32
    %c0_i32_0 = arith.constant 0 : i32
    %c0_i32_1 = arith.constant 0 : i32
    %c0_i32_2 = arith.constant 0 : i32
    return %c0_i32, %c0_i32_0, %c0_i32_1 : i32, i32, i32
  }
  func.func @transform_2(%arg0: i32) -> (i32, i32, i32) {
    %c0_i32 = arith.constant 0 : i32
    %c0_i32_0 = arith.constant 0 : i32
    %c0_i32_1 = arith.constant 0 : i32
    %c0_i32_2 = arith.constant 0 : i32
    return %c0_i32, %c0_i32_0, %c0_i32_1 : i32, i32, i32
  }
  func.func @transform_3(%arg0: i32) -> (i32, i32) {
    %c0_i32 = arith.constant 0 : i32
    %c0_i32_0 = arith.constant 0 : i32
    %c0_i32_1 = arith.constant 0 : i32
    return %c0_i32, %c0_i32_0 : i32, i32
  }
  func.func @transform_4(%arg0: i32) -> (i32, i32) {
    %c0_i32 = arith.constant 0 : i32
    %c0_i32_0 = arith.constant 0 : i32
    %c0_i32_1 = arith.constant 0 : i32
    return %c0_i32, %c0_i32_0 : i32, i32
  }
  func.func @transform_5(%arg0: i32) -> (i32, i32) {
    %c0_i32 = arith.constant 0 : i32
    %c0_i32_0 = arith.constant 0 : i32
    %c0_i32_1 = arith.constant 0 : i32
    return %c0_i32, %c0_i32_0 : i32, i32
  }
  func.func @transform_6(%arg0: i32) -> (i32, i32) {
    %c0_i32 = arith.constant 0 : i32
    %c0_i32_0 = arith.constant 0 : i32
    %c0_i32_1 = arith.constant 0 : i32
    return %c0_i32, %c0_i32_0 : i32, i32
  }
  func.func @transform_7(%arg0: i32) -> (i32, i32) {
    %c0_i32 = arith.constant 0 : i32
    %c0_i32_0 = arith.constant 0 : i32
    %c0_i32_1 = arith.constant 0 : i32
    return %c0_i32, %c0_i32_0 : i32, i32
  }
  func.func @transform_8(%arg0: i32) -> (i32, i32, i32) {
    %c0_i32 = arith.constant 0 : i32
    %c0_i32_0 = arith.constant 0 : i32
    %c0_i32_1 = arith.constant 0 : i32
    %c0_i32_2 = arith.constant 0 : i32
    return %c0_i32, %c0_i32_0, %c0_i32_1 : i32, i32, i32
  }
}

</mosaic_0001>

<llo_original>
// kernel: _lambda_.2
$region0: #{_lambda_.2}
  #allocation0 [shape = 'u32[]', space=smem, size = 0x4, offset = 0x4, fixed_abs, tag = 'smem constant byte address 0x4 - core index']
  #allocation1 [shape = 'u32[144,128]{1,0:T(1,128)}', space=vmem, size = 0x12000, scoped, tag = 'internal scratch']
  %s0 = inlined_call_operand.vmem [shape: bf16[128,128], index: 0, kind: input, shape index: {}]
  %s1 = inlined_call_operand.hbm [shape: bf16[128,128], index: 1, kind: input, shape index: {}]
  %s2 = inlined_call_operand.vmem [shape: f32[1,128], index: 2, kind: input, shape index: {}, may-alias: {2,4,6}]
  %s3 = inlined_call_operand.vmem [shape: f32[1,128], index: 3, kind: input, shape index: {}]
  %s4 = inlined_call_operand.vmem [shape: f32[1,128], index: 4, kind: input, shape index: {}, may-alias: {2,4,6}]
  %s5 = inlined_call_operand.hbm [shape: bf16[128,128], index: 5, kind: input, shape index: {}]
  %s6 = inlined_call_operand.vmem [shape: f32[1,128], index: 6, kind: input, shape index: {}, may-alias: {2,4,6}]
  %s7 = inlined_call_operand.hbm [shape: bf16[128,512], index: 7, kind: input, shape index: {}]
  %s8 = inlined_call_operand.vmem [shape: f32[1,512], index: 8, kind: input, shape index: {}]
  %s9 = inlined_call_operand.vmem [shape: f32[128,128], index: 9, kind: output, shape index: {0}]
  %s10 = inlined_call_operand.vmem [shape: f32[128,512], index: 10, kind: output, shape index: {1}]
  %11 = xla_tuple %s9, %s10
  %s12 = sld [smem:[#allocation0]]
  $region66: #{_lambda_.2} parent=0
    _
  %s14 = ssub.s32 1, %s12
  %s15 = scalar_select 0, %s14, %s12
  $region1: #{_lambda_.2} parent=0
    #allocation2 [shape = 'u8[32768]{0}', space=vmem, size = 0x8000, scoped, tag = 'input window, operand 1, single buffered']
    #allocation3 [shape = 's32[1]{0}', space=sflag, size = 0x4, scoped, tag = 'scoped memory for _lambda_.2']
    #allocation4 [shape = 'u8[32768]{0}', space=vmem, size = 0x8000, scoped, tag = 'input window, operand 5, single buffered']
    #allocation5 [shape = 's32[1]{0}', space=sflag, size = 0x4, scoped, tag = 'scoped memory for _lambda_.2']
    #allocation6 [shape = 'u8[131072]{0}', space=vmem, size = 0x20000, scoped, tag = 'input window, operand 7, single buffered']
    %16 = vsyncpa [#allocation3], 0
    %17 = vsyncpa [#allocation5], 0
    // Predicated region
    $region2: #{_lambda_.2} parent=1 // pred_check
      _
    $region3: #{_lambda_.2} parent=1 // pred_check_branch
      %19 = sbr.rel (0) target = $region5
    $region4: #{_lambda_.2} parent=1 // pred_region
      _
    $region5: #{_lambda_.2} parent=1 // pred_fallthru
      _
    // Predicated region
    $region6: #{_lambda_.2} parent=1 // pred_check
      _
    $region7: #{_lambda_.2} parent=1 // pred_check_branch
      %21 = sbr.rel (0) target = $region9
    $region8: #{_lambda_.2} parent=1 // pred_region
      %s23 = ssub.s32 1024, 1024
      %24 = vsyncadd [#allocation3], %s23
      %s25 = sshll.u32 [#allocation2], 4
      %s26 = int_to_ptr.vmem [resolvable:$true] %s25
      %31 = dma.hbm_to_vmem [thread:$0]  %s1, 1024, %s26, [#allocation3], 64, 64, 4
    $region9: #{_lambda_.2} parent=1 // pred_fallthru
      _
    // Predicated region
    $region10: #{_lambda_.2} parent=1 // pred_check
      _
    $region11: #{_lambda_.2} parent=1 // pred_check_branch
      %33 = sbr.rel (0) target = $region13
    $region12: #{_lambda_.2} parent=1 // pred_region
      _
    $region13: #{_lambda_.2} parent=1 // pred_fallthru
      _
    // Predicated region
    $region14: #{_lambda_.2} parent=1 // pred_check
      _
    $region15: #{_lambda_.2} parent=1 // pred_check_branch
      %35 = sbr.rel (0) target = $region17
    $region16: #{_lambda_.2} parent=1 // pred_region
      _
    $region17: #{_lambda_.2} parent=1 // pred_fallthru
      _
    // Predicated region
    $region18: #{_lambda_.2} parent=1 // pred_check
      _
    $region19: #{_lambda_.2} parent=1 // pred_check_branch
      %37 = sbr.rel (0) target = $region21
    $region20: #{_lambda_.2} parent=1 // pred_region
      _
    $region21: #{_lambda_.2} parent=1 // pred_fallthru
      _
    // Predicated region
    $region22: #{_lambda_.2} parent=1 // pred_check
      _
    $region23: #{_lambda_.2} parent=1 // pred_check_branch
      %39 = sbr.rel (0) target = $region25
    $region24: #{_lambda_.2} parent=1 // pred_region
      %s41 = ssub.s32 1024, 1024
      %42 = vsyncadd [#allocation5], %s41
      %s43 = sshll.u32 [#allocation4], 4
      %s44 = int_to_ptr.vmem [resolvable:$true] %s43
      %49 = dma.hbm_to_vmem [thread:$0]  %s5, 1024, %s44, [#allocation5], 64, 64, 4
    $region25: #{_lambda_.2} parent=1 // pred_fallthru
      _
    // Predicated region
    $region26: #{_lambda_.2} parent=1 // pred_check
      _
    $region27: #{_lambda_.2} parent=1 // pred_check_branch
      %51 = sbr.rel (0) target = $region29
    $region28: #{_lambda_.2} parent=1 // pred_region
      _
    $region29: #{_lambda_.2} parent=1 // pred_fallthru
      _
    // Predicated region
    $region30: #{_lambda_.2} parent=1 // pred_check
      _
    $region31: #{_lambda_.2} parent=1 // pred_check_branch
      %53 = sbr.rel (0) target = $region33
    $region32: #{_lambda_.2} parent=1 // pred_region
      %s55 = ssub.s32 4096, 4096
      %56 = vsyncadd [#allocation5], %s55
      %s57 = sshll.u32 [#allocation6], 4
      %s58 = int_to_ptr.vmem [resolvable:$true] %s57
      %63 = dma.hbm_to_vmem [thread:$0]  %s7, 4096, %s58, [#allocation5], 256, 256, 16
    $region33: #{_lambda_.2} parent=1 // pred_fallthru
      _
    // Predicated region
    $region34: #{_lambda_.2} parent=1 // pred_check
      _
    $region35: #{_lambda_.2} parent=1 // pred_check_branch
      %65 = sbr.rel (0) target = $region37
    $region36: #{_lambda_.2} parent=1 // pred_region
      _
    $region37: #{_lambda_.2} parent=1 // pred_fallthru
      _
    // Predicated region
    $region38: #{_lambda_.2} parent=1 // pred_check
      _
    $region39: #{_lambda_.2} parent=1 // pred_check_branch
      %67 = sbr.rel (0) target = $region41
    $region40: #{_lambda_.2} parent=1 // pred_region
      %68 = dma.done [#allocation3], 1024
    $region41: #{_lambda_.2} parent=1 // pred_fallthru
      _
    // Predicated region
    $region42: #{_lambda_.2} parent=1 // pred_check
      _
    $region43: #{_lambda_.2} parent=1 // pred_check_branch
      %70 = sbr.rel (0) target = $region45
    $region44: #{_lambda_.2} parent=1 // pred_region
      %71 = dma.done [#allocation5], 1024
    $region45: #{_lambda_.2} parent=1 // pred_fallthru
      _
    // Predicated region
    $region46: #{_lambda_.2} parent=1 // pred_check
      _
    $region47: #{_lambda_.2} parent=1 // pred_check_branch
      %73 = sbr.rel (0) target = $region49
    $region48: #{_lambda_.2} parent=1 // pred_region
      %74 = dma.done [#allocation5], 4096
    $region49: #{_lambda_.2} parent=1 // pred_fallthru
      _
    %v76 = vld [vmem:[%s0] sm:$0xf]
    %v77 = vld [vmem:[%s0 + $0x4] sm:$0xf]
    %v78 = vld [vmem:[%s0 + $0x8] sm:$0xf]
    %v79 = vld [vmem:[%s0 + $0xc] sm:$0xf]
    %v80 = vld [vmem:[%s0 + $0x10] sm:$0xf]
    %v81 = vld [vmem:[%s0 + $0x14] sm:$0xf]
    %v82 = vld [vmem:[%s0 + $0x18] sm:$0xf]
    %v83 = vld [vmem:[%s0 + $0x1c] sm:$0xf]
    %v84 = vld [vmem:[%s0 + $0x20] sm:$0xf]
    %v85 = vld [vmem:[%s0 + $0x24] sm:$0xf]
    %v86 = vld [vmem:[%s0 + $0x28] sm:$0xf]
    %v87 = vld [vmem:[%s0 + $0x2c] sm:$0xf]
    %v88 = vld [vmem:[%s0 + $0x30] sm:$0xf]
    %v89 = vld [vmem:[%s0 + $0x34] sm:$0xf]
    %v90 = vld [vmem:[%s0 + $0x38] sm:$0xf]
    %v91 = vld [vmem:[%s0 + $0x3c] sm:$0xf]
    %v92 = vld [vmem:[#allocation2] sm:$0xf]
    %v93 = vld [vmem:[#allocation2 + $0x4] sm:$0xf]
    %v94 = vld [vmem:[#allocation2 + $0x8] sm:$0xf]
    %v95 = vld [vmem:[#allocation2 + $0xc] sm:$0xf]
    %v96 = vld [vmem:[#allocation2 + $0x10] sm:$0xf]
    %v97 = vld [vmem:[#allocation2 + $0x14] sm:$0xf]
    %v98 = vld [vmem:[#allocation2 + $0x18] sm:$0xf]
    %v99 = vld [vmem:[#allocation2 + $0x1c] sm:$0xf]
    %v100 = vld [vmem:[#allocation2 + $0x20] sm:$0xf]
    %v101 = vld [vmem:[#allocation2 + $0x24] sm:$0xf]
    %v102 = vld [vmem:[#allocation2 + $0x28] sm:$0xf]
    %v103 = vld [vmem:[#allocation2 + $0x2c] sm:$0xf]
    %v104 = vld [vmem:[#allocation2 + $0x30] sm:$0xf]
    %v105 = vld [vmem:[#allocation2 + $0x34] sm:$0xf]
    %v106 = vld [vmem:[#allocation2 + $0x38] sm:$0xf]
    %v107 = vld [vmem:[#allocation2 + $0x3c] sm:$0xf]
    %v108 = vld [vmem:[%s2] sm:$0x1]
    %v110 = vlaneseq
    %v111 = vshrl.u32 %v110, 7
    %v112 = vsub.s32 0, %v111
    %v113 = vrot.slane %v108, %v112
    %v131 = vunpack.c.l.b16 %v76
    %v132 = vunpack.c.l.b16 %v77
    %v133 = vunpack.c.l.b16 %v78
    %v134 = vunpack.c.l.b16 %v79
    %v135 = vunpack.c.l.b16 %v80
    %v136 = vunpack.c.l.b16 %v81
    %v137 = vunpack.c.l.b16 %v82
    %v138 = vunpack.c.l.b16 %v83
    %v139 = vunpack.c.l.b16 %v84
    %v140 = vunpack.c.l.b16 %v85
    %v141 = vunpack.c.l.b16 %v86
    %v142 = vunpack.c.l.b16 %v87
    %v143 = vunpack.c.l.b16 %v88
    %v144 = vunpack.c.l.b16 %v89
    %v145 = vunpack.c.l.b16 %v90
    %v146 = vunpack.c.l.b16 %v91
    %v147 = vpack.c.b16 %v132, %v131
    %v148 = vpack.c.b16 %v134, %v133
    %v149 = vpack.c.b16 %v136, %v135
    %v150 = vpack.c.b16 %v138, %v137
    %v151 = vpack.c.b16 %v140, %v139
    %v152 = vpack.c.b16 %v142, %v141
    %v153 = vpack.c.b16 %v144, %v143
    %v154 = vpack.c.b16 %v146, %v145
    %v179 = vunpack.c.l.b16 %v92
    %v180 = vunpack.c.l.b16 %v93
    %v181 = vunpack.c.l.b16 %v94
    %v182 = vunpack.c.l.b16 %v95
    %v183 = vunpack.c.l.b16 %v96
    %v184 = vunpack.c.l.b16 %v97
    %v185 = vunpack.c.l.b16 %v98
    %v186 = vunpack.c.l.b16 %v99
    %v187 = vunpack.c.l.b16 %v100
    %v188 = vunpack.c.l.b16 %v101
    %v189 = vunpack.c.l.b16 %v102
    %v190 = vunpack.c.l.b16 %v103
    %v191 = vunpack.c.l.b16 %v104
    %v192 = vunpack.c.l.b16 %v105
    %v193 = vunpack.c.l.b16 %v106
    %v194 = vunpack.c.l.b16 %v107
    %v195 = vpack.c.b16 %v180, %v179
    %v196 = vpack.c.b16 %v182, %v181
    %v197 = vpack.c.b16 %v184, %v183
    %v198 = vpack.c.b16 %v186, %v185
    %v199 = vpack.c.b16 %v188, %v187
    %v200 = vpack.c.b16 %v190, %v189
    %v201 = vpack.c.b16 %v192, %v191
    %v202 = vpack.c.b16 %v194, %v193
    %211 = vmatprep.subr.bf16.mxu0 0
    %212 = vmatpush1.bf16.msra.mxu0 %v202
    %213 = vmatprep.subr.bf16.mxu0 0
    %214 = vmatpush1.bf16.msra.mxu0 %v201
    %215 = vmatprep.subr.bf16.mxu0 0
    %216 = vmatpush1.bf16.msra.mxu0 %v200
    %217 = vmatprep.subr.bf16.mxu0 0
    %218 = vmatpush1.bf16.msra.mxu0 %v199
    %219 = vmatprep.subr.bf16.mxu0 0
    %220 = vmatpush1.bf16.msra.mxu0 %v198
    %221 = vmatprep.subr.bf16.mxu0 0
    %222 = vmatpush1.bf16.msra.mxu0 %v197
    %223 = vmatprep.subr.bf16.mxu0 0
    %224 = vmatpush1.bf16.msra.mxu0 %v196
    %225 = vmatprep.subr.bf16.mxu0 0
    %226 = vmatpush1.bf16.msra.mxu0 %v195
    %227 = vmatprep.subr.bf16.mxu0 0
    %228 = vmatpush2.bf16.msra.mxu0 0
    %229 = vmatprep.subr.bf16.mxu0 0
    %230 = vmatpush2.bf16.msra.mxu0 0
    %231 = vmatprep.subr.bf16.mxu0 0
    %232 = vmatpush2.bf16.msra.mxu0 0
    %233 = vmatprep.subr.bf16.mxu0 0
    %234 = vmatpush2.bf16.msra.mxu0 0
    %235 = vmatprep.subr.bf16.mxu0 0
    %236 = vmatpush2.bf16.msra.mxu0 0
    %237 = vmatprep.subr.bf16.mxu0 0
    %238 = vmatpush2.bf16.msra.mxu0 0
    %239 = vmatprep.subr.bf16.mxu0 0
    %240 = vmatpush2.bf16.msra.mxu0 0
    %241 = vmatprep.subr.bf16.mxu0 0
    %242 = vmatpush2.bf16.msra.mxu0 0
    %243 = vmatprep.mubr.bf16.mxu0 0
    %244 = vmatmul.mubr.bf16.gmra.mxu0 %v147
    %v245 = vpop.f32.mrf.mxu0
    %v246 = vadd.f32 %v113, %v245
    %v247 = vpop.f32.mrf.mxu0
    %v248 = vpop.f32.mrf.mxu0
    %v249 = vadd.f32 %v113, %v248
    %v250 = vpop.f32.mrf.mxu0
    %251 = vmatprep.mubr.bf16.mxu0 0
    %252 = vmatmul.mubr.bf16.gmra.mxu0 %v148
    %v253 = vpop.f32.mrf.mxu0
    %v254 = vadd.f32 %v113, %v253
    %v255 = vpop.f32.mrf.mxu0
    %v256 = vpop.f32.mrf.mxu0
    %v257 = vadd.f32 %v113, %v256
    %v258 = vpop.f32.mrf.mxu0
    %259 = vmatprep.mubr.bf16.mxu0 0
    %260 = vmatmul.mubr.bf16.gmra.mxu0 %v149
    %v261 = vpop.f32.mrf.mxu0
    %v262 = vadd.f32 %v113, %v261
    %v263 = vpop.f32.mrf.mxu0
    %v264 = vpop.f32.mrf.mxu0
    %v265 = vadd.f32 %v113, %v264
    %v266 = vpop.f32.mrf.mxu0
    %267 = vmatprep.mubr.bf16.mxu0 0
    %268 = vmatmul.mubr.bf16.gmra.mxu0 %v150
    %v269 = vpop.f32.mrf.mxu0
    %v270 = vadd.f32 %v113, %v269
    %v271 = vpop.f32.mrf.mxu0
    %v272 = vpop.f32.mrf.mxu0
    %v273 = vadd.f32 %v113, %v272
    %v274 = vpop.f32.mrf.mxu0
    %275 = vmatprep.mubr.bf16.mxu0 0
    %276 = vmatmul.mubr.bf16.gmra.mxu0 %v151
    %v277 = vpop.f32.mrf.mxu0
    %v278 = vadd.f32 %v113, %v277
    %v279 = vpop.f32.mrf.mxu0
    %v280 = vpop.f32.mrf.mxu0
    %v281 = vadd.f32 %v113, %v280
    %v282 = vpop.f32.mrf.mxu0
    %283 = vmatprep.mubr.bf16.mxu0 0
    %284 = vmatmul.mubr.bf16.gmra.mxu0 %v152
    %v285 = vpop.f32.mrf.mxu0
    %v286 = vadd.f32 %v113, %v285
    %v287 = vpop.f32.mrf.mxu0
    %v288 = vpop.f32.mrf.mxu0
    %v289 = vadd.f32 %v113, %v288
    %v290 = vpop.f32.mrf.mxu0
    %291 = vmatprep.mubr.bf16.mxu0 0
    %292 = vmatmul.mubr.bf16.gmra.mxu0 %v153
    %v293 = vpop.f32.mrf.mxu0
    %v294 = vadd.f32 %v113, %v293
    %v295 = vpop.f32.mrf.mxu0
    %v296 = vpop.f32.mrf.mxu0
    %v297 = vadd.f32 %v113, %v296
    %v298 = vpop.f32.mrf.mxu0
    %299 = vmatprep.mubr.bf16.mxu0 0
    %300 = vmatmul.mubr.bf16.gmra.mxu0 %v154
    %v301 = vpop.f32.mrf.mxu0
    %v302 = vadd.f32 %v113, %v301
    %v303 = vpop.f32.mrf.mxu0
    %v304 = vpop.f32.mrf.mxu0
    %v305 = vadd.f32 %v113, %v304
    %v306 = vpop.f32.mrf.mxu0
    %307 = vdwg.mxu0
    %308 = vadd.xlane.f32.xlu0 %v246
    %v309 = vpop.xlane.xlu0 %308
    %310 = vadd.xlane.f32.xlu0 %v249
    %v311 = vpop.xlane.xlu0 %310
    %312 = vadd.xlane.f32.xlu0 %v254
    %v313 = vpop.xlane.xlu0 %312
    %314 = vadd.xlane.f32.xlu0 %v257
    %v315 = vpop.xlane.xlu0 %314
    %316 = vadd.xlane.f32.xlu0 %v262
    %v317 = vpop.xlane.xlu0 %316
    %318 = vadd.xlane.f32.xlu0 %v265
    %v319 = vpop.xlane.xlu0 %318
    %320 = vadd.xlane.f32.xlu0 %v270
    %v321 = vpop.xlane.xlu0 %320
    %322 = vadd.xlane.f32.xlu0 %v273
    %v323 = vpop.xlane.xlu0 %322
    %324 = vadd.xlane.f32.xlu0 %v278
    %v325 = vpop.xlane.xlu0 %324
    %326 = vadd.xlane.f32.xlu0 %v281
    %v327 = vpop.xlane.xlu0 %326
    %328 = vadd.xlane.f32.xlu0 %v286
    %v329 = vpop.xlane.xlu0 %328
    %330 = vadd.xlane.f32.xlu0 %v289
    %v331 = vpop.xlane.xlu0 %330
    %332 = vadd.xlane.f32.xlu0 %v294
    %v333 = vpop.xlane.xlu0 %332
    %334 = vadd.xlane.f32.xlu0 %v297
    %v335 = vpop.xlane.xlu0 %334
    %336 = vadd.xlane.f32.xlu0 %v302
    %v337 = vpop.xlane.xlu0 %336
    %338 = vadd.xlane.f32.xlu0 %v305
    %v339 = vpop.xlane.xlu0 %338
    %v340 = vrcp.pop 128.0
    %v341 = vmul.f32 %v309, %v340
    %v342 = vmul.f32 %v311, %v340
    %v343 = vmul.f32 %v313, %v340
    %v344 = vmul.f32 %v315, %v340
    %v345 = vmul.f32 %v317, %v340
    %v346 = vmul.f32 %v319, %v340
    %v347 = vmul.f32 %v321, %v340
    %v348 = vmul.f32 %v323, %v340
    %v349 = vmul.f32 %v325, %v340
    %v350 = vmul.f32 %v327, %v340
    %v351 = vmul.f32 %v329, %v340
    %v352 = vmul.f32 %v331, %v340
    %v353 = vmul.f32 %v333, %v340
    %v354 = vmul.f32 %v335, %v340
    %v355 = vmul.f32 %v337, %v340
    %v356 = vmul.f32 %v339, %v340
    %v357 = vsub.f32 %v246, %v341
    %v358 = vsub.f32 %v249, %v342
    %v359 = vsub.f32 %v254, %v343
    %v360 = vsub.f32 %v257, %v344
    %v361 = vsub.f32 %v262, %v345
    %v362 = vsub.f32 %v265, %v346
    %v363 = vsub.f32 %v270, %v347
    %v364 = vsub.f32 %v273, %v348
    %v365 = vsub.f32 %v278, %v349
    %v366 = vsub.f32 %v281, %v350
    %v367 = vsub.f32 %v286, %v351
    %v368 = vsub.f32 %v289, %v352
    %v369 = vsub.f32 %v294, %v353
    %v370 = vsub.f32 %v297, %v354
    %v371 = vsub.f32 %v302, %v355
    %v372 = vsub.f32 %v305, %v356
    %v373 = vmul.f32 %v357, %v357
    %v374 = vmul.f32 %v358, %v358
    %v375 = vmul.f32 %v359, %v359
    %v376 = vmul.f32 %v360, %v360
    %v377 = vmul.f32 %v361, %v361
    %v378 = vmul.f32 %v362, %v362
    %v379 = vmul.f32 %v363, %v363
    %v380 = vmul.f32 %v364, %v364
    %v381 = vmul.f32 %v365, %v365
    %v382 = vmul.f32 %v366, %v366
    %v383 = vmul.f32 %v367, %v367
    %v384 = vmul.f32 %v368, %v368
    %v385 = vmul.f32 %v369, %v369
    %v386 = vmul.f32 %v370, %v370
    %v387 = vmul.f32 %v371, %v371
    %v388 = vmul.f32 %v372, %v372
    %389 = vadd.xlane.f32.xlu0 %v373
    %v390 = vpop.xlane.xlu0 %389
    %391 = vadd.xlane.f32.xlu0 %v374
    %v392 = vpop.xlane.xlu0 %391
    %393 = vadd.xlane.f32.xlu0 %v375
    %v394 = vpop.xlane.xlu0 %393
    %395 = vadd.xlane.f32.xlu0 %v376
    %v396 = vpop.xlane.xlu0 %395
    %397 = vadd.xlane.f32.xlu0 %v377
    %v398 = vpop.xlane.xlu0 %397
    %399 = vadd.xlane.f32.xlu0 %v378
    %v400 = vpop.xlane.xlu0 %399
    %401 = vadd.xlane.f32.xlu0 %v379
    %v402 = vpop.xlane.xlu0 %401
    %403 = vadd.xlane.f32.xlu0 %v380
    %v404 = vpop.xlane.xlu0 %403
    %405 = vadd.xlane.f32.xlu0 %v381
    %v406 = vpop.xlane.xlu0 %405
    %407 = vadd.xlane.f32.xlu0 %v382
    %v408 = vpop.xlane.xlu0 %407
    %409 = vadd.xlane.f32.xlu0 %v383
    %v410 = vpop.xlane.xlu0 %409
    %411 = vadd.xlane.f32.xlu0 %v384
    %v412 = vpop.xlane.xlu0 %411
    %413 = vadd.xlane.f32.xlu0 %v385
    %v414 = vpop.xlane.xlu0 %413
    %415 = vadd.xlane.f32.xlu0 %v386
    %v416 = vpop.xlane.xlu0 %415
    %417 = vadd.xlane.f32.xlu0 %v387
    %v418 = vpop.xlane.xlu0 %417
    %419 = vadd.xlane.f32.xlu0 %v388
    %v420 = vpop.xlane.xlu0 %419
    %v421 = vmul.f32 %v390, %v340
    %v422 = vmul.f32 %v392, %v340
    %v423 = vmul.f32 %v394, %v340
    %v424 = vmul.f32 %v396, %v340
    %v425 = vmul.f32 %v398, %v340
    %v426 = vmul.f32 %v400, %v340
    %v427 = vmul.f32 %v402, %v340
    %v428 = vmul.f32 %v404, %v340
    %v429 = vmul.f32 %v406, %v340
    %v430 = vmul.f32 %v408, %v340
    %v431 = vmul.f32 %v410, %v340
    %v432 = vmul.f32 %v412, %v340
    %v433 = vmul.f32 %v414, %v340
    %v434 = vmul.f32 %v416, %v340
    %v435 = vmul.f32 %v418, %v340
    %v436 = vmul.f32 %v420, %v340
    %v437 = vadd.f32 %v421, 1e-05
    %v438 = vadd.f32 %v422, 1e-05
    %v439 = vadd.f32 %v423, 1e-05
    %v440 = vadd.f32 %v424, 1e-05
    %v441 = vadd.f32 %v425, 1e-05
    %v442 = vadd.f32 %v426, 1e-05
    %v443 = vadd.f32 %v427, 1e-05
    %v444 = vadd.f32 %v428, 1e-05
    %v445 = vadd.f32 %v429, 1e-05
    %v446 = vadd.f32 %v430, 1e-05
    %v447 = vadd.f32 %v431, 1e-05
    %v448 = vadd.f32 %v432, 1e-05
    %v449 = vadd.f32 %v433, 1e-05
    %v450 = vadd.f32 %v434, 1e-05
    %v451 = vadd.f32 %v435, 1e-05
    %v452 = vadd.f32 %v436, 1e-05
    %v453 = vrsqrt.pop %v437
    %v454 = vrsqrt.pop %v438
    %v455 = vrsqrt.pop %v439
    %v456 = vrsqrt.pop %v440
    %v457 = vrsqrt.pop %v441
    %v458 = vrsqrt.pop %v442
    %v459 = vrsqrt.pop %v443
    %v460 = vrsqrt.pop %v444
    %v461 = vrsqrt.pop %v445
    %v462 = vrsqrt.pop %v446
    %v463 = vrsqrt.pop %v447
    %v464 = vrsqrt.pop %v448
    %v465 = vrsqrt.pop %v449
    %v466 = vrsqrt.pop %v450
    %v467 = vrsqrt.pop %v451
    %v468 = vrsqrt.pop %v452
    %v469 = vmul.f32 %v357, %v453
    %v470 = vmul.f32 %v358, %v454
    %v471 = vmul.f32 %v359, %v455
    %v472 = vmul.f32 %v360, %v456
    %v473 = vmul.f32 %v361, %v457
    %v474 = vmul.f32 %v362, %v458
    %v475 = vmul.f32 %v363, %v459
    %v476 = vmul.f32 %v364, %v460
    %v477 = vmul.f32 %v365, %v461
    %v478 = vmul.f32 %v366, %v462
    %v479 = vmul.f32 %v367, %v463
    %v480 = vmul.f32 %v368, %v464
    %v481 = vmul.f32 %v369, %v465
    %v482 = vmul.f32 %v370, %v466
    %v483 = vmul.f32 %v371, %v467
    %v484 = vmul.f32 %v372, %v468
    %v485 = vld [vmem:[%s3] sm:$0x1]
    %v487 = vlaneseq
    %v488 = vshrl.u32 %v487, 7
    %v489 = vsub.s32 0, %v488
    %v490 = vrot.slane %v485, %v489
    %v492 = vmul.f32 %v469, %v490
    %v493 = vmul.f32 %v470, %v490
    %v494 = vmul.f32 %v471, %v490
    %v495 = vmul.f32 %v472, %v490
    %v496 = vmul.f32 %v473, %v490
    %v497 = vmul.f32 %v474, %v490
    %v498 = vmul.f32 %v475, %v490
    %v499 = vmul.f32 %v476, %v490
    %v500 = vmul.f32 %v477, %v490
    %v501 = vmul.f32 %v478, %v490
    %v502 = vmul.f32 %v479, %v490
    %v503 = vmul.f32 %v480, %v490
    %v504 = vmul.f32 %v481, %v490
    %v505 = vmul.f32 %v482, %v490
    %v506 = vmul.f32 %v483, %v490
    %v507 = vmul.f32 %v484, %v490
    %v508 = vld [vmem:[%s4] sm:$0x1]
    %v510 = vlaneseq
    %v511 = vshrl.u32 %v510, 7
    %v512 = vsub.s32 0, %v511
    %v513 = vrot.slane %v508, %v512
    %v515 = vadd.f32 %v492, %v513
    %v516 = vadd.f32 %v493, %v513
    %v517 = vadd.f32 %v494, %v513
    %v518 = vadd.f32 %v495, %v513
    %v519 = vadd.f32 %v496, %v513
    %v520 = vadd.f32 %v497, %v513
    %v521 = vadd.f32 %v498, %v513
    %v522 = vadd.f32 %v499, %v513
    %v523 = vadd.f32 %v500, %v513
    %v524 = vadd.f32 %v501, %v513
    %v525 = vadd.f32 %v502, %v513
    %v526 = vadd.f32 %v503, %v513
    %v527 = vadd.f32 %v504, %v513
    %v528 = vadd.f32 %v505, %v513
    %v529 = vadd.f32 %v506, %v513
    %v530 = vadd.f32 %v507, %v513
    %v531 = vpack.c.bf16 %v516, %v515
    %v532 = vpack.c.bf16 %v518, %v517
    %v533 = vpack.c.bf16 %v520, %v519
    %v534 = vpack.c.bf16 %v522, %v521
    %v535 = vpack.c.bf16 %v524, %v523
    %v536 = vpack.c.bf16 %v526, %v525
    %v537 = vpack.c.bf16 %v528, %v527
    %v538 = vpack.c.bf16 %v530, %v529
    %v539 = vld [vmem:[#allocation4] sm:$0xf]
    %v540 = vld [vmem:[#allocation4 + $0x4] sm:$0xf]
    %v541 = vld [vmem:[#allocation4 + $0x8] sm:$0xf]
    %v542 = vld [vmem:[#allocation4 + $0xc] sm:$0xf]
    %v543 = vld [vmem:[#allocation4 + $0x10] sm:$0xf]
    %v544 = vld [vmem:[#allocation4 + $0x14] sm:$0xf]
    %v545 = vld [vmem:[#allocation4 + $0x18] sm:$0xf]
    %v546 = vld [vmem:[#allocation4 + $0x1c] sm:$0xf]
    %v547 = vld [vmem:[#allocation4 + $0x20] sm:$0xf]
    %v548 = vld [vmem:[#allocation4 + $0x24] sm:$0xf]
    %v549 = vld [vmem:[#allocation4 + $0x28] sm:$0xf]
    %v550 = vld [vmem:[#allocation4 + $0x2c] sm:$0xf]
    %v551 = vld [vmem:[#allocation4 + $0x30] sm:$0xf]
    %v552 = vld [vmem:[#allocation4 + $0x34] sm:$0xf]
    %v553 = vld [vmem:[#allocation4 + $0x38] sm:$0xf]
    %v554 = vld [vmem:[#allocation4 + $0x3c] sm:$0xf]
    %v555 = vld [vmem:[%s6] sm:$0x1]
    %v557 = vlaneseq
    %v558 = vshrl.u32 %v557, 7
    %v559 = vsub.s32 0, %v558
    %v560 = vrot.slane %v555, %v559
    %v578 = vunpack.c.l.b16 %v539
    %v579 = vunpack.c.l.b16 %v540
    %v580 = vunpack.c.l.b16 %v541
    %v581 = vunpack.c.l.b16 %v542
    %v582 = vunpack.c.l.b16 %v543
    %v583 = vunpack.c.l.b16 %v544
    %v584 = vunpack.c.l.b16 %v545
    %v585 = vunpack.c.l.b16 %v546
    %v586 = vunpack.c.l.b16 %v547
    %v587 = vunpack.c.l.b16 %v548
    %v588 = vunpack.c.l.b16 %v549
    %v589 = vunpack.c.l.b16 %v550
    %v590 = vunpack.c.l.b16 %v551
    %v591 = vunpack.c.l.b16 %v552
    %v592 = vunpack.c.l.b16 %v553
    %v593 = vunpack.c.l.b16 %v554
    %v594 = vpack.c.b16 %v579, %v578
    %v595 = vpack.c.b16 %v581, %v580
    %v596 = vpack.c.b16 %v583, %v582
    %v597 = vpack.c.b16 %v585, %v584
    %v598 = vpack.c.b16 %v587, %v586
    %v599 = vpack.c.b16 %v589, %v588
    %v600 = vpack.c.b16 %v591, %v590
    %v601 = vpack.c.b16 %v593, %v592
    %610 = vmatprep.subr.bf16.mxu0 0
    %611 = vmatpush1.bf16.msra.mxu0 %v601
    %612 = vmatprep.subr.bf16.mxu0 0
    %613 = vmatpush1.bf16.msra.mxu0 %v600
    %614 = vmatprep.subr.bf16.mxu0 0
    %615 = vmatpush1.bf16.msra.mxu0 %v599
    %616 = vmatprep.subr.bf16.mxu0 0
    %617 = vmatpush1.bf16.msra.mxu0 %v598
    %618 = vmatprep.subr.bf16.mxu0 0
    %619 = vmatpush1.bf16.msra.mxu0 %v597
    %620 = vmatprep.subr.bf16.mxu0 0
    %621 = vmatpush1.bf16.msra.mxu0 %v596
    %622 = vmatprep.subr.bf16.mxu0 0
    %623 = vmatpush1.bf16.msra.mxu0 %v595
    %624 = vmatprep.subr.bf16.mxu0 0
    %625 = vmatpush1.bf16.msra.mxu0 %v594
    %626 = vmatprep.subr.bf16.mxu0 0
    %627 = vmatpush2.bf16.msra.mxu0 0
    %628 = vmatprep.subr.bf16.mxu0 0
    %629 = vmatpush2.bf16.msra.mxu0 0
    %630 = vmatprep.subr.bf16.mxu0 0
    %631 = vmatpush2.bf16.msra.mxu0 0
    %632 = vmatprep.subr.bf16.mxu0 0
    %633 = vmatpush2.bf16.msra.mxu0 0
    %634 = vmatprep.subr.bf16.mxu0 0
    %635 = vmatpush2.bf16.msra.mxu0 0
    %636 = vmatprep.subr.bf16.mxu0 0
    %637 = vmatpush2.bf16.msra.mxu0 0
    %638 = vmatprep.subr.bf16.mxu0 0
    %639 = vmatpush2.bf16.msra.mxu0 0
    %640 = vmatprep.subr.bf16.mxu0 0
    %641 = vmatpush2.bf16.msra.mxu0 0
    %642 = vmatprep.mubr.bf16.mxu0 0
    %643 = vmatmul.mubr.bf16.gmra.mxu0 %v531
    %v644 = vpop.f32.mrf.mxu0
    %v645 = vadd.f32 %v560, %v644
    %v646 = vpop.f32.mrf.mxu0
    %v647 = vpop.f32.mrf.mxu0
    %v648 = vadd.f32 %v560, %v647
    %v649 = vpop.f32.mrf.mxu0
    %650 = vmatprep.mubr.bf16.mxu0 0
    %651 = vmatmul.mubr.bf16.gmra.mxu0 %v532
    %v652 = vpop.f32.mrf.mxu0
    %v653 = vadd.f32 %v560, %v652
    %v654 = vpop.f32.mrf.mxu0
    %v655 = vpop.f32.mrf.mxu0
    %v656 = vadd.f32 %v560, %v655
    %v657 = vpop.f32.mrf.mxu0
    %658 = vmatprep.mubr.bf16.mxu0 0
    %659 = vmatmul.mubr.bf16.gmra.mxu0 %v533
    %v660 = vpop.f32.mrf.mxu0
    %v661 = vadd.f32 %v560, %v660
    %v662 = vpop.f32.mrf.mxu0
    %v663 = vpop.f32.mrf.mxu0
    %v664 = vadd.f32 %v560, %v663
    %v665 = vpop.f32.mrf.mxu0
    %666 = vmatprep.mubr.bf16.mxu0 0
    %667 = vmatmul.mubr.bf16.gmra.mxu0 %v534
    %v668 = vpop.f32.mrf.mxu0
    %v669 = vadd.f32 %v560, %v668
    %v670 = vpop.f32.mrf.mxu0
    %v671 = vpop.f32.mrf.mxu0
    %v672 = vadd.f32 %v560, %v671
    %v673 = vpop.f32.mrf.mxu0
    %674 = vmatprep.mubr.bf16.mxu0 0
    %675 = vmatmul.mubr.bf16.gmra.mxu0 %v535
    %v676 = vpop.f32.mrf.mxu0
    %v677 = vadd.f32 %v560, %v676
    %v678 = vpop.f32.mrf.mxu0
    %v679 = vpop.f32.mrf.mxu0
    %v680 = vadd.f32 %v560, %v679
    %v681 = vpop.f32.mrf.mxu0
    %682 = vmatprep.mubr.bf16.mxu0 0
    %683 = vmatmul.mubr.bf16.gmra.mxu0 %v536
    %v684 = vpop.f32.mrf.mxu0
    %v685 = vadd.f32 %v560, %v684
    %v686 = vpop.f32.mrf.mxu0
    %v687 = vpop.f32.mrf.mxu0
    %v688 = vadd.f32 %v560, %v687
    %v689 = vpop.f32.mrf.mxu0
    %690 = vmatprep.mubr.bf16.mxu0 0
    %691 = vmatmul.mubr.bf16.gmra.mxu0 %v537
    %v692 = vpop.f32.mrf.mxu0
    %v693 = vadd.f32 %v560, %v692
    %v694 = vpop.f32.mrf.mxu0
    %v695 = vpop.f32.mrf.mxu0
    %v696 = vadd.f32 %v560, %v695
    %v697 = vpop.f32.mrf.mxu0
    %698 = vmatprep.mubr.bf16.mxu0 0
    %699 = vmatmul.mubr.bf16.gmra.mxu0 %v538
    %v700 = vpop.f32.mrf.mxu0
    %v701 = vadd.f32 %v560, %v700
    %v702 = vpop.f32.mrf.mxu0
    %v703 = vpop.f32.mrf.mxu0
    %v704 = vadd.f32 %v560, %v703
    %v705 = vpop.f32.mrf.mxu0
    %706 = vdwg.mxu0
    %707 = vst [vmem:[%s9] sm:$0xff] %v645
    %708 = vst [vmem:[%s9 + $0x8] sm:$0xff] %v648
    %709 = vst [vmem:[%s9 + $0x10] sm:$0xff] %v653
    %710 = vst [vmem:[%s9 + $0x18] sm:$0xff] %v656
    %711 = vst [vmem:[%s9 + $0x20] sm:$0xff] %v661
    %712 = vst [vmem:[%s9 + $0x28] sm:$0xff] %v664
    %713 = vst [vmem:[%s9 + $0x30] sm:$0xff] %v669
    %714 = vst [vmem:[%s9 + $0x38] sm:$0xff] %v672
    %715 = vst [vmem:[%s9 + $0x40] sm:$0xff] %v677
    %716 = vst [vmem:[%s9 + $0x48] sm:$0xff] %v680
    %717 = vst [vmem:[%s9 + $0x50] sm:$0xff] %v685
    %718 = vst [vmem:[%s9 + $0x58] sm:$0xff] %v688
    %719 = vst [vmem:[%s9 + $0x60] sm:$0xff] %v693
    %720 = vst [vmem:[%s9 + $0x68] sm:$0xff] %v696
    %721 = vst [vmem:[%s9 + $0x70] sm:$0xff] %v701
    %722 = vst [vmem:[%s9 + $0x78] sm:$0xff] %v704
    %v723 = vpack.c.bf16 %v648, %v645
    %v724 = vpack.c.bf16 %v656, %v653
    %v725 = vpack.c.bf16 %v664, %v661
    %v726 = vpack.c.bf16 %v672, %v669
    %v727 = vpack.c.bf16 %v680, %v677
    %v728 = vpack.c.bf16 %v688, %v685
    %v729 = vpack.c.bf16 %v696, %v693
    %v730 = vpack.c.bf16 %v704, %v701
    %v731 = vld [vmem:[#allocation6] sm:$0xff]
    %v732 = vld [vmem:[#allocation6 + $0x8] sm:$0xff]
    %v733 = vld [vmem:[#allocation6 + $0x10] sm:$0xff]
    %v734 = vld [vmem:[#allocation6 + $0x18] sm:$0xff]
    %v735 = vld [vmem:[#allocation6 + $0x20] sm:$0xff]
    %v736 = vld [vmem:[#allocation6 + $0x28] sm:$0xff]
    %v737 = vld [vmem:[#allocation6 + $0x30] sm:$0xff]
    %v738 = vld [vmem:[#allocation6 + $0x38] sm:$0xff]
    %v739 = vld [vmem:[#allocation6 + $0x40] sm:$0xff]
    %v740 = vld [vmem:[#allocation6 + $0x48] sm:$0xff]
    %v741 = vld [vmem:[#allocation6 + $0x50] sm:$0xff]
    %v742 = vld [vmem:[#allocation6 + $0x58] sm:$0xff]
    %v743 = vld [vmem:[#allocation6 + $0x60] sm:$0xff]
    %v744 = vld [vmem:[#allocation6 + $0x68] sm:$0xff]
    %v745 = vld [vmem:[#allocation6 + $0x70] sm:$0xff]
    %v746 = vld [vmem:[#allocation6 + $0x78] sm:$0xff]
    %v747 = vld [vmem:[#allocation6 + $0x80] sm:$0xff]
    %v748 = vld [vmem:[#allocation6 + $0x88] sm:$0xff]
    %v749 = vld [vmem:[#allocation6 + $0x90] sm:$0xff]
    %v750 = vld [vmem:[#allocation6 + $0x98] sm:$0xff]
    %v751 = vld [vmem:[#allocation6 + $0xa0] sm:$0xff]
    %v752 = vld [vmem:[#allocation6 + $0xa8] sm:$0xff]
    %v753 = vld [vmem:[#allocation6 + $0xb0] sm:$0xff]
    %v754 = vld [vmem:[#allocation6 + $0xb8] sm:$0xff]
    %v755 = vld [vmem:[#allocation6 + $0xc0] sm:$0xff]
    %v756 = vld [vmem:[#allocation6 + $0xc8] sm:$0xff]
    %v757 = vld [vmem:[#allocation6 + $0xd0] sm:$0xff]
    %v758 = vld [vmem:[#allocation6 + $0xd8] sm:$0xff]
    %v759 = vld [vmem:[#allocation6 + $0xe0] sm:$0xff]
    %v760 = vld [vmem:[#allocation6 + $0xe8] sm:$0xff]
    %v761 = vld [vmem:[#allocation6 + $0xf0] sm:$0xff]
    %v762 = vld [vmem:[#allocation6 + $0xf8] sm:$0xff]
    %v763 = vld [vmem:[%s8] sm:$0xf]
    %v765 = vlaneseq
    %v766 = vshrl.u32 %v765, 7
    %v767 = vsub.s32 0, %v766
    %v768 = vrot.slane %v763, %v767
    %v769 = vlaneseq
    %v770 = vshrl.u32 %v769, 7
    %v771 = vsub.s32 1, %v770
    %v772 = vrot.slane %v763, %v771
    %v773 = vlaneseq
    %v774 = vshrl.u32 %v773, 7
    %v775 = vsub.s32 2, %v774
    %v776 = vrot.slane %v763, %v775
    %v777 = vlaneseq
    %v778 = vshrl.u32 %v777, 7
    %v779 = vsub.s32 3, %v778
    %v780 = vrot.slane %v763, %v779
    %v817 = vunpack.c.l.b16 %v731
    %v818 = vunpack.c.h.b16 %v731
    %v819 = vunpack.c.l.b16 %v732
    %v820 = vunpack.c.h.b16 %v732
    %v821 = vunpack.c.l.b16 %v733
    %v822 = vunpack.c.h.b16 %v733
    %v823 = vunpack.c.l.b16 %v734
    %v824 = vunpack.c.h.b16 %v734
    %v825 = vunpack.c.l.b16 %v735
    %v826 = vunpack.c.h.b16 %v735
    %v827 = vunpack.c.l.b16 %v736
    %v828 = vunpack.c.h.b16 %v736
    %v829 = vunpack.c.l.b16 %v737
    %v830 = vunpack.c.h.b16 %v737
    %v831 = vunpack.c.l.b16 %v738
    %v832 = vunpack.c.h.b16 %v738
    %v833 = vunpack.c.l.b16 %v739
    %v834 = vunpack.c.h.b16 %v739
    %v835 = vunpack.c.l.b16 %v740
    %v836 = vunpack.c.h.b16 %v740
    %v837 = vunpack.c.l.b16 %v741
    %v838 = vunpack.c.h.b16 %v741
    %v839 = vunpack.c.l.b16 %v742
    %v840 = vunpack.c.h.b16 %v742
    %v841 = vunpack.c.l.b16 %v743
    %v842 = vunpack.c.h.b16 %v743
    %v843 = vunpack.c.l.b16 %v744
    %v844 = vunpack.c.h.b16 %v744
    %v845 = vunpack.c.l.b16 %v745
    %v846 = vunpack.c.h.b16 %v745
    %v847 = vunpack.c.l.b16 %v746
    %v848 = vunpack.c.h.b16 %v746
    %v849 = vunpack.c.l.b16 %v747
    %v850 = vunpack.c.h.b16 %v747
    %v851 = vunpack.c.l.b16 %v748
    %v852 = vunpack.c.h.b16 %v748
    %v853 = vunpack.c.l.b16 %v749
    %v854 = vunpack.c.h.b16 %v749
    %v855 = vunpack.c.l.b16 %v750
    %v856 = vunpack.c.h.b16 %v750
    %v857 = vunpack.c.l.b16 %v751
    %v858 = vunpack.c.h.b16 %v751
    %v859 = vunpack.c.l.b16 %v752
    %v860 = vunpack.c.h.b16 %v752
    %v861 = vunpack.c.l.b16 %v753
    %v862 = vunpack.c.h.b16 %v753
    %v863 = vunpack.c.l.b16 %v754
    %v864 = vunpack.c.h.b16 %v754
    %v865 = vunpack.c.l.b16 %v755
    %v866 = vunpack.c.h.b16 %v755
    %v867 = vunpack.c.l.b16 %v756
    %v868 = vunpack.c.h.b16 %v756
    %v869 = vunpack.c.l.b16 %v757
    %v870 = vunpack.c.h.b16 %v757
    %v871 = vunpack.c.l.b16 %v758
    %v872 = vunpack.c.h.b16 %v758
    %v873 = vunpack.c.l.b16 %v759
    %v874 = vunpack.c.h.b16 %v759
    %v875 = vunpack.c.l.b16 %v760
    %v876 = vunpack.c.h.b16 %v760
    %v877 = vunpack.c.l.b16 %v761
    %v878 = vunpack.c.h.b16 %v761
    %v879 = vunpack.c.l.b16 %v762
    %v880 = vunpack.c.h.b16 %v762
    %v881 = vpack.c.b16 %v821, %v817
    %v882 = vpack.c.b16 %v822, %v818
    %v883 = vpack.c.b16 %v823, %v819
    %v884 = vpack.c.b16 %v824, %v820
    %v885 = vpack.c.b16 %v829, %v825
    %v886 = vpack.c.b16 %v830, %v826
    %v887 = vpack.c.b16 %v831, %v827
    %v888 = vpack.c.b16 %v832, %v828
    %v889 = vpack.c.b16 %v837, %v833
    %v890 = vpack.c.b16 %v838, %v834
    %v891 = vpack.c.b16 %v839, %v835
    %v892 = vpack.c.b16 %v840, %v836
    %v893 = vpack.c.b16 %v845, %v841
    %v894 = vpack.c.b16 %v846, %v842
    %v895 = vpack.c.b16 %v847, %v843
    %v896 = vpack.c.b16 %v848, %v844
    %v897 = vpack.c.b16 %v853, %v849
    %v898 = vpack.c.b16 %v854, %v850
    %v899 = vpack.c.b16 %v855, %v851
    %v900 = vpack.c.b16 %v856, %v852
    %v901 = vpack.c.b16 %v861, %v857
    %v902 = vpack.c.b16 %v862, %v858
    %v903 = vpack.c.b16 %v863, %v859
    %v904 = vpack.c.b16 %v864, %v860
    %v905 = vpack.c.b16 %v869, %v865
    %v906 = vpack.c.b16 %v870, %v866
    %v907 = vpack.c.b16 %v871, %v867
    %v908 = vpack.c.b16 %v872, %v868
    %v909 = vpack.c.b16 %v877, %v873
    %v910 = vpack.c.b16 %v878, %v874
    %v911 = vpack.c.b16 %v879, %v875
    %v912 = vpack.c.b16 %v880, %v876
    %945 = vmatprep.subr.bf16.mxu0 %v910
    %946 = vmatpush1.bf16.msra.mxu0 %v909
    %947 = vmatprep.subr.bf16.mxu0 %v906
    %948 = vmatpush1.bf16.msra.mxu0 %v905
    %949 = vmatprep.subr.bf16.mxu0 %v902
    %950 = vmatpush1.bf16.msra.mxu0 %v901
    %951 = vmatprep.subr.bf16.mxu0 %v898
    %952 = vmatpush1.bf16.msra.mxu0 %v897
    %953 = vmatprep.subr.bf16.mxu0 %v894
    %954 = vmatpush1.bf16.msra.mxu0 %v893
    %955 = vmatprep.subr.bf16.mxu0 %v890
    %956 = vmatpush1.bf16.msra.mxu0 %v889
    %957 = vmatprep.subr.bf16.mxu0 %v886
    %958 = vmatpush1.bf16.msra.mxu0 %v885
    %959 = vmatprep.subr.bf16.mxu0 %v882
    %960 = vmatpush1.bf16.msra.mxu0 %v881
    %961 = vmatprep.subr.bf16.mxu0 0
    %962 = vmatpush2.bf16.msra.mxu0 0
    %963 = vmatprep.subr.bf16.mxu0 0
    %964 = vmatpush2.bf16.msra.mxu0 0
    %965 = vmatprep.subr.bf16.mxu0 0
    %966 = vmatpush2.bf16.msra.mxu0 0
    %967 = vmatprep.subr.bf16.mxu0 0
    %968 = vmatpush2.bf16.msra.mxu0 0
    %969 = vmatprep.subr.bf16.mxu0 0
    %970 = vmatpush2.bf16.msra.mxu0 0
    %971 = vmatprep.subr.bf16.mxu0 0
    %972 = vmatpush2.bf16.msra.mxu0 0
    %973 = vmatprep.subr.bf16.mxu0 0
    %974 = vmatpush2.bf16.msra.mxu0 0
    %975 = vmatprep.subr.bf16.mxu0 0
    %976 = vmatpush2.bf16.msra.mxu0 0
    %977 = vmatprep.mubr.bf16.mxu0 0
    %978 = vmatmul.mubr.bf16.gmra.mxu0 %v723
    %v979 = vpop.f32.mrf.mxu0
    %v980 = vadd.f32 %v768, %v979
    %v981 = vpop.f32.mrf.mxu0
    %v982 = vadd.f32 %v772, %v981
    %v983 = vpop.f32.mrf.mxu0
    %v984 = vadd.f32 %v768, %v983
    %v985 = vpop.f32.mrf.mxu0
    %v986 = vadd.f32 %v772, %v985
    %987 = vmatprep.mubr.bf16.mxu0 0
    %988 = vmatmul.mubr.bf16.gmra.mxu0 %v724
    %v989 = vpop.f32.mrf.mxu0
    %v990 = vadd.f32 %v768, %v989
    %v991 = vpop.f32.mrf.mxu0
    %v992 = vadd.f32 %v772, %v991
    %v993 = vpop.f32.mrf.mxu0
    %v994 = vadd.f32 %v768, %v993
    %v995 = vpop.f32.mrf.mxu0
    %v996 = vadd.f32 %v772, %v995
    %997 = vmatprep.mubr.bf16.mxu0 0
    %998 = vmatmul.mubr.bf16.gmra.mxu0 %v725
    %v999 = vpop.f32.mrf.mxu0
    %v1000 = vadd.f32 %v768, %v999
    %v1001 = vpop.f32.mrf.mxu0
    %v1002 = vadd.f32 %v772, %v1001
    %v1003 = vpop.f32.mrf.mxu0
    %v1004 = vadd.f32 %v768, %v1003
    %v1005 = vpop.f32.mrf.mxu0
    %v1006 = vadd.f32 %v772, %v1005
    %1007 = vmatprep.mubr.bf16.mxu0 0
    %1008 = vmatmul.mubr.bf16.gmra.mxu0 %v726
    %v1009 = vpop.f32.mrf.mxu0
    %v1010 = vadd.f32 %v768, %v1009
    %v1011 = vpop.f32.mrf.mxu0
    %v1012 = vadd.f32 %v772, %v1011
    %v1013 = vpop.f32.mrf.mxu0
    %v1014 = vadd.f32 %v768, %v1013
    %v1015 = vpop.f32.mrf.mxu0
    %v1016 = vadd.f32 %v772, %v1015
    %1017 = vmatprep.mubr.bf16.mxu0 0
    %1018 = vmatmul.mubr.bf16.gmra.mxu0 %v727
    %v1019 = vpop.f32.mrf.mxu0
    %v1020 = vadd.f32 %v768, %v1019
    %v1021 = vpop.f32.mrf.mxu0
    %v1022 = vadd.f32 %v772, %v1021
    %v1023 = vpop.f32.mrf.mxu0
    %v1024 = vadd.f32 %v768, %v1023
    %v1025 = vpop.f32.mrf.mxu0
    %v1026 = vadd.f32 %v772, %v1025
    %1027 = vmatprep.mubr.bf16.mxu0 0
    %1028 = vmatmul.mubr.bf16.gmra.mxu0 %v728
    %v1029 = vpop.f32.mrf.mxu0
    %v1030 = vadd.f32 %v768, %v1029
    %v1031 = vpop.f32.mrf.mxu0
    %v1032 = vadd.f32 %v772, %v1031
    %v1033 = vpop.f32.mrf.mxu0
    %v1034 = vadd.f32 %v768, %v1033
    %v1035 = vpop.f32.mrf.mxu0
    %v1036 = vadd.f32 %v772, %v1035
    %1037 = vmatprep.mubr.bf16.mxu0 0
    %1038 = vmatmul.mubr.bf16.gmra.mxu0 %v729
    %v1039 = vpop.f32.mrf.mxu0
    %v1040 = vadd.f32 %v768, %v1039
    %v1041 = vpop.f32.mrf.mxu0
    %v1042 = vadd.f32 %v772, %v1041
    %v1043 = vpop.f32.mrf.mxu0
    %v1044 = vadd.f32 %v768, %v1043
    %v1045 = vpop.f32.mrf.mxu0
    %v1046 = vadd.f32 %v772, %v1045
    %1047 = vmatprep.mubr.bf16.mxu0 0
    %1048 = vmatmul.mubr.bf16.gmra.mxu0 %v730
    %v1049 = vpop.f32.mrf.mxu0
    %v1050 = vadd.f32 %v768, %v1049
    %v1051 = vpop.f32.mrf.mxu0
    %v1052 = vadd.f32 %v772, %v1051
    %v1053 = vpop.f32.mrf.mxu0
    %v1054 = vadd.f32 %v768, %v1053
    %v1055 = vpop.f32.mrf.mxu0
    %v1056 = vadd.f32 %v772, %v1055
    %1057 = vdwg.mxu0
    %1058 = vmatprep.subr.bf16.mxu0 %v912
    %1059 = vmatpush1.bf16.msra.mxu0 %v911
    %1060 = vmatprep.subr.bf16.mxu0 %v908
    %1061 = vmatpush1.bf16.msra.mxu0 %v907
    %1062 = vmatprep.subr.bf16.mxu0 %v904
    %1063 = vmatpush1.bf16.msra.mxu0 %v903
    %1064 = vmatprep.subr.bf16.mxu0 %v900
    %1065 = vmatpush1.bf16.msra.mxu0 %v899
    %1066 = vmatprep.subr.bf16.mxu0 %v896
    %1067 = vmatpush1.bf16.msra.mxu0 %v895
    %1068 = vmatprep.subr.bf16.mxu0 %v892
    %1069 = vmatpush1.bf16.msra.mxu0 %v891
    %1070 = vmatprep.subr.bf16.mxu0 %v888
    %1071 = vmatpush1.bf16.msra.mxu0 %v887
    %1072 = vmatprep.subr.bf16.mxu0 %v884
    %1073 = vmatpush1.bf16.msra.mxu0 %v883
    %1074 = vmatprep.subr.bf16.mxu0 0
    %1075 = vmatpush2.bf16.msra.mxu0 0
    %1076 = vmatprep.subr.bf16.mxu0 0
    %1077 = vmatpush2.bf16.msra.mxu0 0
    %1078 = vmatprep.subr.bf16.mxu0 0
    %1079 = vmatpush2.bf16.msra.mxu0 0
    %1080 = vmatprep.subr.bf16.mxu0 0
    %1081 = vmatpush2.bf16.msra.mxu0 0
    %1082 = vmatprep.subr.bf16.mxu0 0
    %1083 = vmatpush2.bf16.msra.mxu0 0
    %1084 = vmatprep.subr.bf16.mxu0 0
    %1085 = vmatpush2.bf16.msra.mxu0 0
    %1086 = vmatprep.subr.bf16.mxu0 0
    %1087 = vmatpush2.bf16.msra.mxu0 0
    %1088 = vmatprep.subr.bf16.mxu0 0
    %1089 = vmatpush2.bf16.msra.mxu0 0
    %1090 = vmatprep.mubr.bf16.mxu0 0
    %1091 = vmatmul.mubr.bf16.gmra.mxu0 %v723
    %v1092 = vpop.f32.mrf.mxu0
    %v1093 = vadd.f32 %v776, %v1092
    %v1094 = vpop.f32.mrf.mxu0
    %v1095 = vadd.f32 %v780, %v1094
    %v1096 = vpop.f32.mrf.mxu0
    %v1097 = vadd.f32 %v776, %v1096
    %v1098 = vpop.f32.mrf.mxu0
    %v1099 = vadd.f32 %v780, %v1098
    %1100 = vmatprep.mubr.bf16.mxu0 0
    %1101 = vmatmul.mubr.bf16.gmra.mxu0 %v724
    %v1102 = vpop.f32.mrf.mxu0
    %v1103 = vadd.f32 %v776, %v1102
    %v1104 = vpop.f32.mrf.mxu0
    %v1105 = vadd.f32 %v780, %v1104
    %v1106 = vpop.f32.mrf.mxu0
    %v1107 = vadd.f32 %v776, %v1106
    %v1108 = vpop.f32.mrf.mxu0
    %v1109 = vadd.f32 %v780, %v1108
    %1110 = vmatprep.mubr.bf16.mxu0 0
    %1111 = vmatmul.mubr.bf16.gmra.mxu0 %v725
    %v1112 = vpop.f32.mrf.mxu0
    %v1113 = vadd.f32 %v776, %v1112
    %v1114 = vpop.f32.mrf.mxu0
    %v1115 = vadd.f32 %v780, %v1114
    %v1116 = vpop.f32.mrf.mxu0
    %v1117 = vadd.f32 %v776, %v1116
    %v1118 = vpop.f32.mrf.mxu0
    %v1119 = vadd.f32 %v780, %v1118
    %1120 = vmatprep.mubr.bf16.mxu0 0
    %1121 = vmatmul.mubr.bf16.gmra.mxu0 %v726
    %v1122 = vpop.f32.mrf.mxu0
    %v1123 = vadd.f32 %v776, %v1122
    %v1124 = vpop.f32.mrf.mxu0
    %v1125 = vadd.f32 %v780, %v1124
    %v1126 = vpop.f32.mrf.mxu0
    %v1127 = vadd.f32 %v776, %v1126
    %v1128 = vpop.f32.mrf.mxu0
    %v1129 = vadd.f32 %v780, %v1128
    %1130 = vmatprep.mubr.bf16.mxu0 0
    %1131 = vmatmul.mubr.bf16.gmra.mxu0 %v727
    %v1132 = vpop.f32.mrf.mxu0
    %v1133 = vadd.f32 %v776, %v1132
    %v1134 = vpop.f32.mrf.mxu0
    %v1135 = vadd.f32 %v780, %v1134
    %v1136 = vpop.f32.mrf.mxu0
    %v1137 = vadd.f32 %v776, %v1136
    %v1138 = vpop.f32.mrf.mxu0
    %v1139 = vadd.f32 %v780, %v1138
    %1140 = vmatprep.mubr.bf16.mxu0 0
    %1141 = vmatmul.mubr.bf16.gmra.mxu0 %v728
    %v1142 = vpop.f32.mrf.mxu0
    %v1143 = vadd.f32 %v776, %v1142
    %v1144 = vpop.f32.mrf.mxu0
    %v1145 = vadd.f32 %v780, %v1144
    %v1146 = vpop.f32.mrf.mxu0
    %v1147 = vadd.f32 %v776, %v1146
    %v1148 = vpop.f32.mrf.mxu0
    %v1149 = vadd.f32 %v780, %v1148
    %1150 = vmatprep.mubr.bf16.mxu0 0
    %1151 = vmatmul.mubr.bf16.gmra.mxu0 %v729
    %v1152 = vpop.f32.mrf.mxu0
    %v1153 = vadd.f32 %v776, %v1152
    %v1154 = vpop.f32.mrf.mxu0
    %v1155 = vadd.f32 %v780, %v1154
    %v1156 = vpop.f32.mrf.mxu0
    %v1157 = vadd.f32 %v776, %v1156
    %v1158 = vpop.f32.mrf.mxu0
    %v1159 = vadd.f32 %v780, %v1158
    %1160 = vmatprep.mubr.bf16.mxu0 0
    %1161 = vmatmul.mubr.bf16.gmra.mxu0 %v730
    %v1162 = vpop.f32.mrf.mxu0
    %v1163 = vadd.f32 %v776, %v1162
    %v1164 = vpop.f32.mrf.mxu0
    %v1165 = vadd.f32 %v780, %v1164
    %v1166 = vpop.f32.mrf.mxu0
    %v1167 = vadd.f32 %v776, %v1166
    %v1168 = vpop.f32.mrf.mxu0
    %v1169 = vadd.f32 %v780, %v1168
    %1170 = vdwg.mxu0
    %1171 = vst [vmem:[%s10] sm:$0xff] %v980
    %1172 = vst [vmem:[%s10 + $0x8] sm:$0xff] %v982
    %1173 = vst [vmem:[%s10 + $0x10] sm:$0xff] %v1093
    %1174 = vst [vmem:[%s10 + $0x18] sm:$0xff] %v1095
    %1175 = vst [vmem:[%s10 + $0x20] sm:$0xff] %v984
    %1176 = vst [vmem:[%s10 + $0x28] sm:$0xff] %v986
    %1177 = vst [vmem:[%s10 + $0x30] sm:$0xff] %v1097
    %1178 = vst [vmem:[%s10 + $0x38] sm:$0xff] %v1099
    %1179 = vst [vmem:[%s10 + $0x40] sm:$0xff] %v990
    %1180 = vst [vmem:[%s10 + $0x48] sm:$0xff] %v992
    %1181 = vst [vmem:[%s10 + $0x50] sm:$0xff] %v1103
    %1182 = vst [vmem:[%s10 + $0x58] sm:$0xff] %v1105
    %1183 = vst [vmem:[%s10 + $0x60] sm:$0xff] %v994
    %1184 = vst [vmem:[%s10 + $0x68] sm:$0xff] %v996
    %1185 = vst [vmem:[%s10 + $0x70] sm:$0xff] %v1107
    %1186 = vst [vmem:[%s10 + $0x78] sm:$0xff] %v1109
    %1187 = vst [vmem:[%s10 + $0x80] sm:$0xff] %v1000
    %1188 = vst [vmem:[%s10 + $0x88] sm:$0xff] %v1002
    %1189 = vst [vmem:[%s10 + $0x90] sm:$0xff] %v1113
    %1190 = vst [vmem:[%s10 + $0x98] sm:$0xff] %v1115
    %1191 = vst [vmem:[%s10 + $0xa0] sm:$0xff] %v1004
    %1192 = vst [vmem:[%s10 + $0xa8] sm:$0xff] %v1006
    %1193 = vst [vmem:[%s10 + $0xb0] sm:$0xff] %v1117
    %1194 = vst [vmem:[%s10 + $0xb8] sm:$0xff] %v1119
    %1195 = vst [vmem:[%s10 + $0xc0] sm:$0xff] %v1010
    %1196 = vst [vmem:[%s10 + $0xc8] sm:$0xff] %v1012
    %1197 = vst [vmem:[%s10 + $0xd0] sm:$0xff] %v1123
    %1198 = vst [vmem:[%s10 + $0xd8] sm:$0xff] %v1125
    %1199 = vst [vmem:[%s10 + $0xe0] sm:$0xff] %v1014
    %1200 = vst [vmem:[%s10 + $0xe8] sm:$0xff] %v1016
    %1201 = vst [vmem:[%s10 + $0xf0] sm:$0xff] %v1127
    %1202 = vst [vmem:[%s10 + $0xf8] sm:$0xff] %v1129
    %1203 = vst [vmem:[%s10 + $0x100] sm:$0xff] %v1020
    %1204 = vst [vmem:[%s10 + $0x108] sm:$0xff] %v1022
    %1205 = vst [vmem:[%s10 + $0x110] sm:$0xff] %v1133
    %1206 = vst [vmem:[%s10 + $0x118] sm:$0xff] %v1135
    %1207 = vst [vmem:[%s10 + $0x120] sm:$0xff] %v1024
    %1208 = vst [vmem:[%s10 + $0x128] sm:$0xff] %v1026
    %1209 = vst [vmem:[%s10 + $0x130] sm:$0xff] %v1137
    %1210 = vst [vmem:[%s10 + $0x138] sm:$0xff] %v1139
    %1211 = vst [vmem:[%s10 + $0x140] sm:$0xff] %v1030
    %1212 = vst [vmem:[%s10 + $0x148] sm:$0xff] %v1032
    %1213 = vst [vmem:[%s10 + $0x150] sm:$0xff] %v1143
    %1214 = vst [vmem:[%s10 + $0x158] sm:$0xff] %v1145
    %1215 = vst [vmem:[%s10 + $0x160] sm:$0xff] %v1034
    %1216 = vst [vmem:[%s10 + $0x168] sm:$0xff] %v1036
    %1217 = vst [vmem:[%s10 + $0x170] sm:$0xff] %v1147
    %1218 = vst [vmem:[%s10 + $0x178] sm:$0xff] %v1149
    %1219 = vst [vmem:[%s10 + $0x180] sm:$0xff] %v1040
    %1220 = vst [vmem:[%s10 + $0x188] sm:$0xff] %v1042
    %1221 = vst [vmem:[%s10 + $0x190] sm:$0xff] %v1153
    %1222 = vst [vmem:[%s10 + $0x198] sm:$0xff] %v1155
    %1223 = vst [vmem:[%s10 + $0x1a0] sm:$0xff] %v1044
    %1224 = vst [vmem:[%s10 + $0x1a8] sm:$0xff] %v1046
    %1225 = vst [vmem:[%s10 + $0x1b0] sm:$0xff] %v1157
    %1226 = vst [vmem:[%s10 + $0x1b8] sm:$0xff] %v1159
    %1227 = vst [vmem:[%s10 + $0x1c0] sm:$0xff] %v1050
    %1228 = vst [vmem:[%s10 + $0x1c8] sm:$0xff] %v1052
    %1229 = vst [vmem:[%s10 + $0x1d0] sm:$0xff] %v1163
    %1230 = vst [vmem:[%s10 + $0x1d8] sm:$0xff] %v1165
    %1231 = vst [vmem:[%s10 + $0x1e0] sm:$0xff] %v1054
    %1232 = vst [vmem:[%s10 + $0x1e8] sm:$0xff] %v1056
    %1233 = vst [vmem:[%s10 + $0x1f0] sm:$0xff] %v1167
    %1234 = vst [vmem:[%s10 + $0x1f8] sm:$0xff] %v1169
    // Predicated region
    $region50: #{_lambda_.2} parent=1 // pred_check
      _
    $region51: #{_lambda_.2} parent=1 // pred_check_branch
      %1236 = sbr.rel (0) target = $region53
    $region52: #{_lambda_.2} parent=1 // pred_region
      _
    $region53: #{_lambda_.2} parent=1 // pred_fallthru
      _
    // Predicated region
    $region54: #{_lambda_.2} parent=1 // pred_check
      _
    $region55: #{_lambda_.2} parent=1 // pred_check_branch
      %1238 = sbr.rel (0) target = $region57
    $region56: #{_lambda_.2} parent=1 // pred_region
      _
    $region57: #{_lambda_.2} parent=1 // pred_fallthru
      _
    // Predicated region
    $region58: #{_lambda_.2} parent=1 // pred_check
      _
    $region59: #{_lambda_.2} parent=1 // pred_check_branch
      %1240 = sbr.rel (0) target = $region61
    $region60: #{_lambda_.2} parent=1 // pred_region
      _
    $region61: #{_lambda_.2} parent=1 // pred_fallthru
      _
    // Predicated region
    $region62: #{_lambda_.2} parent=1 // pred_check
      _
    $region63: #{_lambda_.2} parent=1 // pred_check_branch
      %1242 = sbr.rel (0) target = $region65
    $region64: #{_lambda_.2} parent=1 // pred_region
      _
    $region65: #{_lambda_.2} parent=1 // pred_fallthru
      _
    %1243 = vsyncpa [#allocation3], 1
    %1244 = vsyncpa [#allocation5], 1

// kernel: _lambda_.3
$region0: #{_lambda_.3}
  #allocation0 [shape = 'u32[]', space=smem, size = 0x4, offset = 0x4, fixed_abs, tag = 'smem constant byte address 0x4 - core index']
  #allocation1 [shape = 'u32[144,128]{1,0:T(1,128)}', space=vmem, size = 0x12000, scoped, tag = 'internal scratch']
  %s0 = inlined_call_operand.vmem [shape: f32[2,64,128], index: 0, kind: input, shape index: {}]
  %s1 = inlined_call_operand.vmem [shape: f32[2,64,512], index: 1, kind: input, shape index: {}]
  %s2 = inlined_call_operand.vmem [shape: f32[9,2,1536], index: 2, kind: input, shape index: {}]
  %s3 = inlined_call_operand.vmem [shape: bf16[512,2048], index: 3, kind: input, shape index: {}]
  %s4 = inlined_call_operand.vmem [shape: f32[1,512], index: 4, kind: input, shape index: {}]
  %s5 = inlined_call_operand.vmem [shape: f32[1,1536], index: 5, kind: input, shape index: {}]
  %s6 = inlined_call_operand.hbm [shape: f32[512,1], index: 6, kind: input, shape index: {}]
  %s7 = inlined_call_operand.vmem [shape: bf16[128,1536], index: 7, kind: input, shape index: {}]
  %s8 = inlined_call_operand.vmem [shape: f32[9,2,512], index: 8, kind: output, shape index: {}]
  %s9 = sld [smem:[#allocation0]]
  $region53: #{_lambda_.3} parent=0
    _
  %s11 = ssub.s32 1, %s9
  %s12 = scalar_select 0, %s11, %s9
  $region1: #{_lambda_.3} parent=0
    #allocation2 [shape = 'u8[262144]{0}', space=vmem, size = 0x40000, scoped, tag = 'input window, operand 6, single buffered']
    #allocation3 [shape = 's32[1]{0}', space=sflag, size = 0x4, scoped, tag = 'scoped memory for _lambda_.3']
    %13 = vsyncpa [#allocation3], 0
    // Predicated region
    $region2: #{_lambda_.3} parent=1 // pred_check
      _
    $region3: #{_lambda_.3} parent=1 // pred_check_branch
      %15 = sbr.rel (0) target = $region5
    $region4: #{_lambda_.3} parent=1 // pred_region
      _
    $region5: #{_lambda_.3} parent=1 // pred_fallthru
      _
    // Predicated region
    $region6: #{_lambda_.3} parent=1 // pred_check
      _
    $region7: #{_lambda_.3} parent=1 // pred_check_branch
      %17 = sbr.rel (0) target = $region9
    $region8: #{_lambda_.3} parent=1 // pred_region
      _
    $region9: #{_lambda_.3} parent=1 // pred_fallthru
      _
    // Predicated region
    $region10: #{_lambda_.3} parent=1 // pred_check
      _
    $region11: #{_lambda_.3} parent=1 // pred_check_branch
      %19 = sbr.rel (0) target = $region13
    $region12: #{_lambda_.3} parent=1 // pred_region
      _
    $region13: #{_lambda_.3} parent=1 // pred_fallthru
      _
    // Predicated region
    $region14: #{_lambda_.3} parent=1 // pred_check
      _
    $region15: #{_lambda_.3} parent=1 // pred_check_branch
      %21 = sbr.rel (0) target = $region17
    $region16: #{_lambda_.3} parent=1 // pred_region
      _
    $region17: #{_lambda_.3} parent=1 // pred_fallthru
      _
    // Predicated region
    $region18: #{_lambda_.3} parent=1 // pred_check
      _
    $region19: #{_lambda_.3} parent=1 // pred_check_branch
      %23 = sbr.rel (0) target = $region21
    $region20: #{_lambda_.3} parent=1 // pred_region
      _
    $region21: #{_lambda_.3} parent=1 // pred_fallthru
      _
    // Predicated region
    $region22: #{_lambda_.3} parent=1 // pred_check
      _
    $region23: #{_lambda_.3} parent=1 // pred_check_branch
      %25 = sbr.rel (0) target = $region25
    $region24: #{_lambda_.3} parent=1 // pred_region
      _
    $region25: #{_lambda_.3} parent=1 // pred_fallthru
      _
    // Predicated region
    $region26: #{_lambda_.3} parent=1 // pred_check
      _
    $region27: #{_lambda_.3} parent=1 // pred_check_branch
      %27 = sbr.rel (0) target = $region29
    $region28: #{_lambda_.3} parent=1 // pred_region
      %s29 = ssub.s32 8192, 8192
      %30 = vsyncadd [#allocation3], %s29
      %s31 = sshll.u32 [#allocation2], 4
      %s32 = int_to_ptr.vmem [resolvable:$true] %s31
      %37 = dma.hbm_to_vmem [thread:$0]  %s6, 8192, %s32, [#allocation3], 128, 128, 8
    $region29: #{_lambda_.3} parent=1 // pred_fallthru
      _
    // Predicated region
    $region30: #{_lambda_.3} parent=1 // pred_check
      _
    $region31: #{_lambda_.3} parent=1 // pred_check_branch
      %39 = sbr.rel (0) target = $region33
    $region32: #{_lambda_.3} parent=1 // pred_region
      _
    $region33: #{_lambda_.3} parent=1 // pred_fallthru
      _
    // Predicated region
    $region34: #{_lambda_.3} parent=1 // pred_check
      _
    $region35: #{_lambda_.3} parent=1 // pred_check_branch
      %41 = sbr.rel (0) target = $region37
    $region36: #{_lambda_.3} parent=1 // pred_region
      %42 = dma.done [#allocation3], 8192
    $region37: #{_lambda_.3} parent=1 // pred_fallthru
      _
    %v44 = vld [vmem:[%s0] sm:$0xff]
    %v45 = vld [vmem:[%s0 + $0x8] sm:$0xff]
    %v46 = vld [vmem:[%s0 + $0x10] sm:$0xff]
    %v47 = vld [vmem:[%s0 + $0x18] sm:$0xff]
    %v48 = vld [vmem:[%s0 + $0x20] sm:$0xff]
    %v49 = vld [vmem:[%s0 + $0x28] sm:$0xff]
    %v50 = vld [vmem:[%s0 + $0x30] sm:$0xff]
    %v51 = vld [vmem:[%s0 + $0x38] sm:$0xff]
    %v52 = vld [vmem:[%s0 + $0x40] sm:$0xff]
    %v53 = vld [vmem:[%s0 + $0x48] sm:$0xff]
    %v54 = vld [vmem:[%s0 + $0x50] sm:$0xff]
    %v55 = vld [vmem:[%s0 + $0x58] sm:$0xff]
    %v56 = vld [vmem:[%s0 + $0x60] sm:$0xff]
    %v57 = vld [vmem:[%s0 + $0x68] sm:$0xff]
    %v58 = vld [vmem:[%s0 + $0x70] sm:$0xff]
    %v59 = vld [vmem:[%s0 + $0x78] sm:$0xff]
    %v60 = vld [vmem:[%s1] sm:$0xff]
    %v61 = vld [vmem:[%s1 + $0x8] sm:$0xff]
    %v62 = vld [vmem:[%s1 + $0x10] sm:$0xff]
    %v63 = vld [vmem:[%s1 + $0x18] sm:$0xff]
    %v64 = vld [vmem:[%s1 + $0x20] sm:$0xff]
    %v65 = vld [vmem:[%s1 + $0x28] sm:$0xff]
    %v66 = vld [vmem:[%s1 + $0x30] sm:$0xff]
    %v67 = vld [vmem:[%s1 + $0x38] sm:$0xff]
    %v68 = vld [vmem:[%s1 + $0x40] sm:$0xff]
    %v69 = vld [vmem:[%s1 + $0x48] sm:$0xff]
    %v70 = vld [vmem:[%s1 + $0x50] sm:$0xff]
    %v71 = vld [vmem:[%s1 + $0x58] sm:$0xff]
    %v72 = vld [vmem:[%s1 + $0x60] sm:$0xff]
    %v73 = vld [vmem:[%s1 + $0x68] sm:$0xff]
    %v74 = vld [vmem:[%s1 + $0x70] sm:$0xff]
    %v75 = vld [vmem:[%s1 + $0x78] sm:$0xff]
    %v76 = vld [vmem:[%s1 + $0x80] sm:$0xff]
    %v77 = vld [vmem:[%s1 + $0x88] sm:$0xff]
    %v78 = vld [vmem:[%s1 + $0x90] sm:$0xff]
    %v79 = vld [vmem:[%s1 + $0x98] sm:$0xff]
    %v80 = vld [vmem:[%s1 + $0xa0] sm:$0xff]
    %v81 = vld [vmem:[%s1 + $0xa8] sm:$0xff]
    %v82 = vld [vmem:[%s1 + $0xb0] sm:$0xff]
    %v83 = vld [vmem:[%s1 + $0xb8] sm:$0xff]
    %v84 = vld [vmem:[%s1 + $0xc0] sm:$0xff]
    %v85 = vld [vmem:[%s1 + $0xc8] sm:$0xff]
    %v86 = vld [vmem:[%s1 + $0xd0] sm:$0xff]
    %v87 = vld [vmem:[%s1 + $0xd8] sm:$0xff]
    %v88 = vld [vmem:[%s1 + $0xe0] sm:$0xff]
    %v89 = vld [vmem:[%s1 + $0xe8] sm:$0xff]
    %v90 = vld [vmem:[%s1 + $0xf0] sm:$0xff]
    %v91 = vld [vmem:[%s1 + $0xf8] sm:$0xff]
    %v92 = vld [vmem:[%s1 + $0x100] sm:$0xff]
    %v93 = vld [vmem:[%s1 + $0x108] sm:$0xff]
    %v94 = vld [vmem:[%s1 + $0x110] sm:$0xff]
    %v95 = vld [vmem:[%s1 + $0x118] sm:$0xff]
    %v96 = vld [vmem:[%s1 + $0x120] sm:$0xff]
    %v97 = vld [vmem:[%s1 + $0x128] sm:$0xff]
    %v98 = vld [vmem:[%s1 + $0x130] sm:$0xff]
    %v99 = vld [vmem:[%s1 + $0x138] sm:$0xff]
    %v100 = vld [vmem:[%s1 + $0x140] sm:$0xff]
    %v101 = vld [vmem:[%s1 + $0x148] sm:$0xff]
    %v102 = vld [vmem:[%s1 + $0x150] sm:$0xff]
    %v103 = vld [vmem:[%s1 + $0x158] sm:$0xff]
    %v104 = vld [vmem:[%s1 + $0x160] sm:$0xff]
    %v105 = vld [vmem:[%s1 + $0x168] sm:$0xff]
    %v106 = vld [vmem:[%s1 + $0x170] sm:$0xff]
    %v107 = vld [vmem:[%s1 + $0x178] sm:$0xff]
    %v108 = vld [vmem:[%s1 + $0x180] sm:$0xff]
    %v109 = vld [vmem:[%s1 + $0x188] sm:$0xff]
    %v110 = vld [vmem:[%s1 + $0x190] sm:$0xff]
    %v111 = vld [vmem:[%s1 + $0x198] sm:$0xff]
    %v112 = vld [vmem:[%s1 + $0x1a0] sm:$0xff]
    %v113 = vld [vmem:[%s1 + $0x1a8] sm:$0xff]
    %v114 = vld [vmem:[%s1 + $0x1b0] sm:$0xff]
    %v115 = vld [vmem:[%s1 + $0x1b8] sm:$0xff]
    %v116 = vld [vmem:[%s1 + $0x1c0] sm:$0xff]
    %v117 = vld [vmem:[%s1 + $0x1c8] sm:$0xff]
    %v118 = vld [vmem:[%s1 + $0x1d0] sm:$0xff]
    %v119 = vld [vmem:[%s1 + $0x1d8] sm:$0xff]
    %v120 = vld [vmem:[%s1 + $0x1e0] sm:$0xff]
    %v121 = vld [vmem:[%s1 + $0x1e8] sm:$0xff]
    %v122 = vld [vmem:[%s1 + $0x1f0] sm:$0xff]
    %v123 = vld [vmem:[%s1 + $0x1f8] sm:$0xff]
    %v124 = vld [vmem:[%s3] sm:$0xff]
    %v125 = vld [vmem:[%s3 + $0x8] sm:$0xff]
    %v126 = vld [vmem:[%s3 + $0x10] sm:$0xff]
    %v127 = vld [vmem:[%s3 + $0x18] sm:$0xff]
    %v128 = vld [vmem:[%s3 + $0x20] sm:$0xff]
    %v129 = vld [vmem:[%s3 + $0x28] sm:$0xff]
    %v130 = vld [vmem:[%s3 + $0x30] sm:$0xff]
    %v131 = vld [vmem:[%s3 + $0x38] sm:$0xff]
    %v132 = vld [vmem:[%s3 + $0x40] sm:$0xff]
    %v133 = vld [vmem:[%s3 + $0x48] sm:$0xff]
    %v134 = vld [vmem:[%s3 + $0x50] sm:$0xff]
    %v135 = vld [vmem:[%s3 + $0x58] sm:$0xff]
    %v136 = vld [vmem:[%s3 + $0x60] sm:$0xff]
    %v137 = vld [vmem:[%s3 + $0x68] sm:$0xff]
    %v138 = vld [vmem:[%s3 + $0x70] sm:$0xff]
    %v139 = vld [vmem:[%s3 + $0x78] sm:$0xff]
    %v140 = vld [vmem:[%s3 + $0x80] sm:$0xff]
    %v141 = vld [vmem:[%s3 + $0x88] sm:$0xff]
    %v142 = vld [vmem:[%s3 + $0x90] sm:$0xff]
    %v143 = vld [vmem:[%s3 + $0x98] sm:$0xff]
    %v144 = vld [vmem:[%s3 + $0xa0] sm:$0xff]
    %v145 = vld [vmem:[%s3 + $0xa8] sm:$0xff]
    %v146 = vld [vmem:[%s3 + $0xb0] sm:$0xff]
    %v147 = vld [vmem:[%s3 + $0xb8] sm:$0xff]
    %v148 = vld [vmem:[%s3 + $0xc0] sm:$0xff]
    %v149 = vld [vmem:[%s3 + $0xc8] sm:$0xff]
    %v150 = vld [vmem:[%s3 + $0xd0] sm:$0xff]
    %v151 = vld [vmem:[%s3 + $0xd8] sm:$0xff]
    %v152 = vld [vmem:[%s3 + $0xe0] sm:$0xff]
    %v153 = vld [vmem:[%s3 + $0xe8] sm:$0xff]
    %v154 = vld [vmem:[%s3 + $0xf0] sm:$0xff]
    %v155 = vld [vmem:[%s3 + $0xf8] sm:$0xff]
    %v156 = vld [vmem:[%s3 + $0x100] sm:$0xff]
    %v157 = vld [vmem:[%s3 + $0x108] sm:$0xff]
    %v158 = vld [vmem:[%s3 + $0x110] sm:$0xff]
    %v159 = vld [vmem:[%s3 + $0x118] sm:$0xff]
    %v160 = vld [vmem:[%s3 + $0x120] sm:$0xff]
    %v161 = vld [vmem:[%s3 + $0x128] sm:$0xff]
    %v162 = vld [vmem:[%s3 + $0x130] sm:$0xff]
    %v163 = vld [vmem:[%s3 + $0x138] sm:$0xff]
    %v164 = vld [vmem:[%s3 + $0x140] sm:$0xff]
    %v165 = vld [vmem:[%s3 + $0x148] sm:$0xff]
    %v166 = vld [vmem:[%s3 + $0x150] sm:$0xff]
    %v167 = vld [vmem:[%s3 + $0x158] sm:$0xff]
    %v168 = vld [vmem:[%s3 + $0x160] sm:$0xff]
    %v169 = vld [vmem:[%s3 + $0x168] sm:$0xff]
    %v170 = vld [vmem:[%s3 + $0x170] sm:$0xff]
    %v171 = vld [vmem:[%s3 + $0x178] sm:$0xff]
    %v172 = vld [vmem:[%s3 + $0x180] sm:$0xff]
    %v173 = vld [vmem:[%s3 + $0x188] sm:$0xff]
    %v174 = vld [vmem:[%s3 + $0x190] sm:$0xff]
    %v175 = vld [vmem:[%s3 + $0x198] sm:$0xff]
    %v176 = vld [vmem:[%s3 + $0x1a0] sm:$0xff]
    %v177 = vld [vmem:[%s3 + $0x1a8] sm:$0xff]
    %v178 = vld [vmem:[%s3 + $0x1b0] sm:$0xff]
    %v179 = vld [vmem:[%s3 + $0x1b8] sm:$0xff]
    %v180 = vld [vmem:[%s3 + $0x1c0] sm:$0xff]
    %v181 = vld [vmem:[%s3 + $0x1c8] sm:$0xff]
    %v182 = vld [vmem:[%s3 + $0x1d0] sm:$0xff]
    %v183 = vld [vmem:[%s3 + $0x1d8] sm:$0xff]
    %v184 = vld [vmem:[%s3 + $0x1e0] sm:$0xff]
    %v185 = vld [vmem:[%s3 + $0x1e8] sm:$0xff]
    %v186 = vld [vmem:[%s3 + $0x1f0] sm:$0xff]
    %v187 = vld [vmem:[%s3 + $0x1f8] sm:$0xff]
    %v188 = vld [vmem:[%s3 + $0x200] sm:$0xff]
    %v189 = vld [vmem:[%s3 + $0x208] sm:$0xff]
    %v190 = vld [vmem:[%s3 + $0x210] sm:$0xff]
    %v191 = vld [vmem:[%s3 + $0x218] sm:$0xff]
    %v192 = vld [vmem:[%s3 + $0x220] sm:$0xff]
    %v193 = vld [vmem:[%s3 + $0x228] sm:$0xff]
    %v194 = vld [vmem:[%s3 + $0x230] sm:$0xff]
    %v195 = vld [vmem:[%s3 + $0x238] sm:$0xff]
    %v196 = vld [vmem:[%s3 + $0x240] sm:$0xff]
    %v197 = vld [vmem:[%s3 + $0x248] sm:$0xff]
    %v198 = vld [vmem:[%s3 + $0x250] sm:$0xff]
    %v199 = vld [vmem:[%s3 + $0x258] sm:$0xff]
    %v200 = vld [vmem:[%s3 + $0x260] sm:$0xff]
    %v201 = vld [vmem:[%s3 + $0x268] sm:$0xff]
    %v202 = vld [vmem:[%s3 + $0x270] sm:$0xff]
    %v203 = vld [vmem:[%s3 + $0x278] sm:$0xff]
    %v204 = vld [vmem:[%s3 + $0x280] sm:$0xff]
    %v205 = vld [vmem:[%s3 + $0x288] sm:$0xff]
    %v206 = vld [vmem:[%s3 + $0x290] sm:$0xff]
    %v207 = vld [vmem:[%s3 + $0x298] sm:$0xff]
    %v208 = vld [vmem:[%s3 + $0x2a0] sm:$0xff]
    %v209 = vld [vmem:[%s3 + $0x2a8] sm:$0xff]
    %v210 = vld [vmem:[%s3 + $0x2b0] sm:$0xff]
    %v211 = vld [vmem:[%s3 + $0x2b8] sm:$0xff]
    %v212 = vld [vmem:[%s3 + $0x2c0] sm:$0xff]
    %v213 = vld [vmem:[%s3 + $0x2c8] sm:$0xff]
    %v214 = vld [vmem:[%s3 + $0x2d0] sm:$0xff]
    %v215 = vld [vmem:[%s3 + $0x2d8] sm:$0xff]
    %v216 = vld [vmem:[%s3 + $0x2e0] sm:$0xff]
    %v217 = vld [vmem:[%s3 + $0x2e8] sm:$0xff]
    %v218 = vld [vmem:[%s3 + $0x2f0] sm:$0xff]
    %v219 = vld [vmem:[%s3 + $0x2f8] sm:$0xff]
    %v220 = vld [vmem:[%s3 + $0x300] sm:$0xff]
    %v221 = vld [vmem:[%s3 + $0x308] sm:$0xff]
    %v222 = vld [vmem:[%s3 + $0x310] sm:$0xff]
    %v223 = vld [vmem:[%s3 + $0x318] sm:$0xff]
    %v224 = vld [vmem:[%s3 + $0x320] sm:$0xff]
    %v225 = vld [vmem:[%s3 + $0x328] sm:$0xff]
    %v226 = vld [vmem:[%s3 + $0x330] sm:$0xff]
    %v227 = vld [vmem:[%s3 + $0x338] sm:$0xff]
    %v228 = vld [vmem:[%s3 + $0x340] sm:$0xff]
    %v229 = vld [vmem:[%s3 + $0x348] sm:$0xff]
    %v230 = vld [vmem:[%s3 + $0x350] sm:$0xff]
    %v231 = vld [vmem:[%s3 + $0x358] sm:$0xff]
    %v232 = vld [vmem:[%s3 + $0x360] sm:$0xff]
    %v233 = vld [vmem:[%s3 + $0x368] sm:$0xff]
    %v234 = vld [vmem:[%s3 + $0x370] sm:$0xff]
    %v235 = vld [vmem:[%s3 + $0x378] sm:$0xff]
    %v236 = vld [vmem:[%s3 + $0x380] sm:$0xff]
    %v237 = vld [vmem:[%s3 + $0x388] sm:$0xff]
    %v238 = vld [vmem:[%s3 + $0x390] sm:$0xff]
    %v239 = vld [vmem:[%s3 + $0x398] sm:$0xff]
    %v240 = vld [vmem:[%s3 + $0x3a0] sm:$0xff]
    %v241 = vld [vmem:[%s3 + $0x3a8] sm:$0xff]
    %v242 = vld [vmem:[%s3 + $0x3b0] sm:$0xff]
    %v243 = vld [vmem:[%s3 + $0x3b8] sm:$0xff]
    %v244 = vld [vmem:[%s3 + $0x3c0] sm:$0xff]
    %v245 = vld [vmem:[%s3 + $0x3c8] sm:$0xff]
    %v246 = vld [vmem:[%s3 + $0x3d0] sm:$0xff]
    %v247 = vld [vmem:[%s3 + $0x3d8] sm:$0xff]
    %v248 = vld [vmem:[%s3 + $0x3e0] sm:$0xff]
    %v249 = vld [vmem:[%s3 + $0x3e8] sm:$0xff]
    %v250 = vld [vmem:[%s3 + $0x3f0] sm:$0xff]
    %v251 = vld [vmem:[%s3 + $0x3f8] sm:$0xff]
    %v252 = vld [vmem:[%s3 + $0x400] sm:$0xff]
    %v253 = vld [vmem:[%s3 + $0x408] sm:$0xff]
    %v254 = vld [vmem:[%s3 + $0x410] sm:$0xff]
    %v255 = vld [vmem:[%s3 + $0x418] sm:$0xff]
    %v256 = vld [vmem:[%s3 + $0x420] sm:$0xff]
    %v257 = vld [vmem:[%s3 + $0x428] sm:$0xff]
    %v258 = vld [vmem:[%s3 + $0x430] sm:$0xff]
    %v259 = vld [vmem:[%s3 + $0x438] sm:$0xff]
    %v260 = vld [vmem:[%s3 + $0x440] sm:$0xff]
    %v261 = vld [vmem:[%s3 + $0x448] sm:$0xff]
    %v262 = vld [vmem:[%s3 + $0x450] sm:$0xff]
    %v263 = vld [vmem:[%s3 + $0x458] sm:$0xff]
    %v264 = vld [vmem:[%s3 + $0x460] sm:$0xff]
    %v265 = vld [vmem:[%s3 + $0x468] sm:$0xff]
    %v266 = vld [vmem:[%s3 + $0x470] sm:$0xff]
    %v267 = vld [vmem:[%s3 + $0x478] sm:$0xff]
    %v268 = vld [vmem:[%s3 + $0x480] sm:$0xff]
    %v269 = vld [vmem:[%s3 + $0x488] sm:$0xff]
    %v270 = vld [vmem:[%s3 + $0x490] sm:$0xff]
    %v271 = vld [vmem:[%s3 + $0x498] sm:$0xff]
    %v272 = vld [vmem:[%s3 + $0x4a0] sm:$0xff]
    %v273 = vld [vmem:[%s3 + $0x4a8] sm:$0xff]
    %v274 = vld [vmem:[%s3 + $0x4b0] sm:$0xff]
    %v275 = vld [vmem:[%s3 + $0x4b8] sm:$0xff]
    %v276 = vld [vmem:[%s3 + $0x4c0] sm:$0xff]
    %v277 = vld [vmem:[%s3 + $0x4c8] sm:$0xff]
    %v278 = vld [vmem:[%s3 + $0x4d0] sm:$0xff]
    %v279 = vld [vmem:[%s3 + $0x4d8] sm:$0xff]
    %v280 = vld [vmem:[%s3 + $0x4e0] sm:$0xff]
    %v281 = vld [vmem:[%s3 + $0x4e8] sm:$0xff]
    %v282 = vld [vmem:[%s3 + $0x4f0] sm:$0xff]
    %v283 = vld [vmem:[%s3 + $0x4f8] sm:$0xff]
    %v284 = vld [vmem:[%s3 + $0x500] sm:$0xff]
    %v285 = vld [vmem:[%s3 + $0x508] sm:$0xff]
    %v286 = vld [vmem:[%s3 + $0x510] sm:$0xff]
    %v287 = vld [vmem:[%s3 + $0x518] sm:$0xff]
    %v288 = vld [vmem:[%s3 + $0x520] sm:$0xff]
    %v289 = vld [vmem:[%s3 + $0x528] sm:$0xff]
    %v290 = vld [vmem:[%s3 + $0x530] sm:$0xff]
    %v291 = vld [vmem:[%s3 + $0x538] sm:$0xff]
    %v292 = vld [vmem:[%s3 + $0x540] sm:$0xff]
    %v293 = vld [vmem:[%s3 + $0x548] sm:$0xff]
    %v294 = vld [vmem:[%s3 + $0x550] sm:$0xff]
    %v295 = vld [vmem:[%s3 + $0x558] sm:$0xff]
    %v296 = vld [vmem:[%s3 + $0x560] sm:$0xff]
    %v297 = vld [vmem:[%s3 + $0x568] sm:$0xff]
    %v298 = vld [vmem:[%s3 + $0x570] sm:$0xff]
    %v299 = vld [vmem:[%s3 + $0x578] sm:$0xff]
    %v300 = vld [vmem:[%s3 + $0x580] sm:$0xff]
    %v301 = vld [vmem:[%s3 + $0x588] sm:$0xff]
    %v302 = vld [vmem:[%s3 + $0x590] sm:$0xff]
    %v303 = vld [vmem:[%s3 + $0x598] sm:$0xff]
    %v304 = vld [vmem:[%s3 + $0x5a0] sm:$0xff]
    %v305 = vld [vmem:[%s3 + $0x5a8] sm:$0xff]
    %v306 = vld [vmem:[%s3 + $0x5b0] sm:$0xff]
    %v307 = vld [vmem:[%s3 + $0x5b8] sm:$0xff]
    %v308 = vld [vmem:[%s3 + $0x5c0] sm:$0xff]
    %v309 = vld [vmem:[%s3 + $0x5c8] sm:$0xff]
    %v310 = vld [vmem:[%s3 + $0x5d0] sm:$0xff]
    %v311 = vld [vmem:[%s3 + $0x5d8] sm:$0xff]
    %v312 = vld [vmem:[%s3 + $0x5e0] sm:$0xff]
    %v313 = vld [vmem:[%s3 + $0x5e8] sm:$0xff]
    %v314 = vld [vmem:[%s3 + $0x5f0] sm:$0xff]
    %v315 = vld [vmem:[%s3 + $0x5f8] sm:$0xff]
    %v316 = vld [vmem:[%s3 + $0x600] sm:$0xff]
    %v317 = vld [vmem:[%s3 + $0x608] sm:$0xff]
    %v318 = vld [vmem:[%s3 + $0x610] sm:$0xff]
    %v319 = vld [vmem:[%s3 + $0x618] sm:$0xff]
    %v320 = vld [vmem:[%s3 + $0x620] sm:$0xff]
    %v321 = vld [vmem:[%s3 + $0x628] sm:$0xff]
    %v322 = vld [vmem:[%s3 + $0x630] sm:$0xff]
    %v323 = vld [vmem:[%s3 + $0x638] sm:$0xff]
    %v324 = vld [vmem:[%s3 + $0x640] sm:$0xff]
    %v325 = vld [vmem:[%s3 + $0x648] sm:$0xff]
    %v326 = vld [vmem:[%s3 + $0x650] sm:$0xff]
    %v327 = vld [vmem:[%s3 + $0x658] sm:$0xff]
    %v328 = vld [vmem:[%s3 + $0x660] sm:$0xff]
    %v329 = vld [vmem:[%s3 + $0x668] sm:$0xff]
    %v330 = vld [vmem:[%s3 + $0x670] sm:$0xff]
    %v331 = vld [vmem:[%s3 + $0x678] sm:$0xff]
    %v332 = vld [vmem:[%s3 + $0x680] sm:$0xff]
    %v333 = vld [vmem:[%s3 + $0x688] sm:$0xff]
    %v334 = vld [vmem:[%s3 + $0x690] sm:$0xff]
    %v335 = vld [vmem:[%s3 + $0x698] sm:$0xff]
    %v336 = vld [vmem:[%s3 + $0x6a0] sm:$0xff]
    %v337 = vld [vmem:[%s3 + $0x6a8] sm:$0xff]
    %v338 = vld [vmem:[%s3 + $0x6b0] sm:$0xff]
    %v339 = vld [vmem:[%s3 + $0x6b8] sm:$0xff]
    %v340 = vld [vmem:[%s3 + $0x6c0] sm:$0xff]
    %v341 = vld [vmem:[%s3 + $0x6c8] sm:$0xff]
    %v342 = vld [vmem:[%s3 + $0x6d0] sm:$0xff]
    %v343 = vld [vmem:[%s3 + $0x6d8] sm:$0xff]
    %v344 = vld [vmem:[%s3 + $0x6e0] sm:$0xff]
    %v345 = vld [vmem:[%s3 + $0x6e8] sm:$0xff]
    %v346 = vld [vmem:[%s3 + $0x6f0] sm:$0xff]
    %v347 = vld [vmem:[%s3 + $0x6f8] sm:$0xff]
    %v348 = vld [vmem:[%s3 + $0x700] sm:$0xff]
    %v349 = vld [vmem:[%s3 + $0x708] sm:$0xff]
    %v350 = vld [vmem:[%s3 + $0x710] sm:$0xff]
    %v351 = vld [vmem:[%s3 + $0x718] sm:$0xff]
    %v352 = vld [vmem:[%s3 + $0x720] sm:$0xff]
    %v353 = vld [vmem:[%s3 + $0x728] sm:$0xff]
    %v354 = vld [vmem:[%s3 + $0x730] sm:$0xff]
    %v355 = vld [vmem:[%s3 + $0x738] sm:$0xff]
    %v356 = vld [vmem:[%s3 + $0x740] sm:$0xff]
    %v357 = vld [vmem:[%s3 + $0x748] sm:$0xff]
    %v358 = vld [vmem:[%s3 + $0x750] sm:$0xff]
    %v359 = vld [vmem:[%s3 + $0x758] sm:$0xff]
    %v360 = vld [vmem:[%s3 + $0x760] sm:$0xff]
    %v361 = vld [vmem:[%s3 + $0x768] sm:$0xff]
    %v362 = vld [vmem:[%s3 + $0x770] sm:$0xff]
    %v363 = vld [vmem:[%s3 + $0x778] sm:$0xff]
    %v364 = vld [vmem:[%s3 + $0x780] sm:$0xff]
    %v365 = vld [vmem:[%s3 + $0x788] sm:$0xff]
    %v366 = vld [vmem:[%s3 + $0x790] sm:$0xff]
    %v367 = vld [vmem:[%s3 + $0x798] sm:$0xff]
    %v368 = vld [vmem:[%s3 + $0x7a0] sm:$0xff]
    %v369 = vld [vmem:[%s3 + $0x7a8] sm:$0xff]
    %v370 = vld [vmem:[%s3 + $0x7b0] sm:$0xff]
    %v371 = vld [vmem:[%s3 + $0x7b8] sm:$0xff]
    %v372 = vld [vmem:[%s3 + $0x7c0] sm:$0xff]
    %v373 = vld [vmem:[%s3 + $0x7c8] sm:$0xff]
    %v374 = vld [vmem:[%s3 + $0x7d0] sm:$0xff]
    %v375 = vld [vmem:[%s3 + $0x7d8] sm:$0xff]
    %v376 = vld [vmem:[%s3 + $0x7e0] sm:$0xff]
    %v377 = vld [vmem:[%s3 + $0x7e8] sm:$0xff]
    %v378 = vld [vmem:[%s3 + $0x7f0] sm:$0xff]
    %v379 = vld [vmem:[%s3 + $0x7f8] sm:$0xff]
    %v380 = vld [vmem:[%s3 + $0x800] sm:$0xff]
    %v381 = vld [vmem:[%s3 + $0x808] sm:$0xff]
    %v382 = vld [vmem:[%s3 + $0x810] sm:$0xff]
    %v383 = vld [vmem:[%s3 + $0x818] sm:$0xff]
    %v384 = vld [vmem:[%s3 + $0x820] sm:$0xff]
    %v385 = vld [vmem:[%s3 + $0x828] sm:$0xff]
    %v386 = vld [vmem:[%s3 + $0x830] sm:$0xff]
    %v387 = vld [vmem:[%s3 + $0x838] sm:$0xff]
    %v388 = vld [vmem:[%s3 + $0x840] sm:$0xff]
    %v389 = vld [vmem:[%s3 + $0x848] sm:$0xff]
    %v390 = vld [vmem:[%s3 + $0x850] sm:$0xff]
    %v391 = vld [vmem:[%s3 + $0x858] sm:$0xff]
    %v392 = vld [vmem:[%s3 + $0x860] sm:$0xff]
    %v393 = vld [vmem:[%s3 + $0x868] sm:$0xff]
    %v394 = vld [vmem:[%s3 + $0x870] sm:$0xff]
    %v395 = vld [vmem:[%s3 + $0x878] sm:$0xff]
    %v396 = vld [vmem:[%s3 + $0x880] sm:$0xff]
    %v397 = vld [vmem:[%s3 + $0x888] sm:$0xff]
    %v398 = vld [vmem:[%s3 + $0x890] sm:$0xff]
    %v399 = vld [vmem:[%s3 + $0x898] sm:$0xff]
    %v400 = vld [vmem:[%s3 + $0x8a0] sm:$0xff]
    %v401 = vld [vmem:[%s3 + $0x8a8] sm:$0xff]
    %v402 = vld [vmem:[%s3 + $0x8b0] sm:$0xff]
    %v403 = vld [vmem:[%s3 + $0x8b8] sm:$0xff]
    %v404 = vld [vmem:[%s3 + $0x8c0] sm:$0xff]
    %v405 = vld [vmem:[%s3 + $0x8c8] sm:$0xff]
    %v406 = vld [vmem:[%s3 + $0x8d0] sm:$0xff]
    %v407 = vld [vmem:[%s3 + $0x8d8] sm:$0xff]
    %v408 = vld [vmem:[%s3 + $0x8e0] sm:$0xff]
    %v409 = vld [vmem:[%s3 + $0x8e8] sm:$0xff]
    %v410 = vld [vmem:[%s3 + $0x8f0] sm:$0xff]
    %v411 = vld [vmem:[%s3 + $0x8f8] sm:$0xff]
    %v412 = vld [vmem:[%s3 + $0x900] sm:$0xff]
    %v413 = vld [vmem:[%s3 + $0x908] sm:$0xff]
    %v414 = vld [vmem:[%s3 + $0x910] sm:$0xff]
    %v415 = vld [vmem:[%s3 + $0x918] sm:$0xff]
    %v416 = vld [vmem:[%s3 + $0x920] sm:$0xff]
    %v417 = vld [vmem:[%s3 + $0x928] sm:$0xff]
    %v418 = vld [vmem:[%s3 + $0x930] sm:$0xff]
    %v419 = vld [vmem:[%s3 + $0x938] sm:$0xff]
    %v420 = vld [vmem:[%s3 + $0x940] sm:$0xff]
    %v421 = vld [vmem:[%s3 + $0x948] sm:$0xff]
    %v422 = vld [vmem:[%s3 + $0x950] sm:$0xff]
    %v423 = vld [vmem:[%s3 + $0x958] sm:$0xff]
    %v424 = vld [vmem:[%s3 + $0x960] sm:$0xff]
    %v425 = vld [vmem:[%s3 + $0x968] sm:$0xff]
    %v426 = vld [vmem:[%s3 + $0x970] sm:$0xff]
    %v427 = vld [vmem:[%s3 + $0x978] sm:$0xff]
    %v428 = vld [vmem:[%s3 + $0x980] sm:$0xff]
    %v429 = vld [vmem:[%s3 + $0x988] sm:$0xff]
    %v430 = vld [vmem:[%s3 + $0x990] sm:$0xff]
    %v431 = vld [vmem:[%s3 + $0x998] sm:$0xff]
    %v432 = vld [vmem:[%s3 + $0x9a0] sm:$0xff]
    %v433 = vld [vmem:[%s3 + $0x9a8] sm:$0xff]
    %v434 = vld [vmem:[%s3 + $0x9b0] sm:$0xff]
    %v435 = vld [vmem:[%s3 + $0x9b8] sm:$0xff]
    %v436 = vld [vmem:[%s3 + $0x9c0] sm:$0xff]
    %v437 = vld [vmem:[%s3 + $0x9c8] sm:$0xff]
    %v438 = vld [vmem:[%s3 + $0x9d0] sm:$0xff]
    %v439 = vld [vmem:[%s3 + $0x9d8] sm:$0xff]
    %v440 = vld [vmem:[%s3 + $0x9e0] sm:$0xff]
    %v441 = vld [vmem:[%s3 + $0x9e8] sm:$0xff]
    %v442 = vld [vmem:[%s3 + $0x9f0] sm:$0xff]
    %v443 = vld [vmem:[%s3 + $0x9f8] sm:$0xff]
    %v444 = vld [vmem:[%s3 + $0xa00] sm:$0xff]
    %v445 = vld [vmem:[%s3 + $0xa08] sm:$0xff]
    %v446 = vld [vmem:[%s3 + $0xa10] sm:$0xff]
    %v447 = vld [vmem:[%s3 + $0xa18] sm:$0xff]
    %v448 = vld [vmem:[%s3 + $0xa20] sm:$0xff]
    %v449 = vld [vmem:[%s3 + $0xa28] sm:$0xff]
    %v450 = vld [vmem:[%s3 + $0xa30] sm:$0xff]
    %v451 = vld [vmem:[%s3 + $0xa38] sm:$0xff]
    %v452 = vld [vmem:[%s3 + $0xa40] sm:$0xff]
    %v453 = vld [vmem:[%s3 + $0xa48] sm:$0xff]
    %v454 = vld [vmem:[%s3 + $0xa50] sm:$0xff]
    %v455 = vld [vmem:[%s3 + $0xa58] sm:$0xff]
    %v456 = vld [vmem:[%s3 + $0xa60] sm:$0xff]
    %v457 = vld [vmem:[%s3 + $0xa68] sm:$0xff]
    %v458 = vld [vmem:[%s3 + $0xa70] sm:$0xff]
    %v459 = vld [vmem:[%s3 + $0xa78] sm:$0xff]
    %v460 = vld [vmem:[%s3 + $0xa80] sm:$0xff]
    %v461 = vld [vmem:[%s3 + $0xa88] sm:$0xff]
    %v462 = vld [vmem:[%s3 + $0xa90] sm:$0xff]
    %v463 = vld [vmem:[%s3 + $0xa98] sm:$0xff]
    %v464 = vld [vmem:[%s3 + $0xaa0] sm:$0xff]
    %v465 = vld [vmem:[%s3 + $0xaa8] sm:$0xff]
    %v466 = vld [vmem:[%s3 + $0xab0] sm:$0xff]
    %v467 = vld [vmem:[%s3 + $0xab8] sm:$0xff]
    %v468 = vld [vmem:[%s3 + $0xac0] sm:$0xff]
    %v469 = vld [vmem:[%s3 + $0xac8] sm:$0xff]
    %v470 = vld [vmem:[%s3 + $0xad0] sm:$0xff]
    %v471 = vld [vmem:[%s3 + $0xad8] sm:$0xff]
    %v472 = vld [vmem:[%s3 + $0xae0] sm:$0xff]
    %v473 = vld [vmem:[%s3 + $0xae8] sm:$0xff]
    %v474 = vld [vmem:[%s3 + $0xaf0] sm:$0xff]
    %v475 = vld [vmem:[%s3 + $0xaf8] sm:$0xff]
    %v476 = vld [vmem:[%s3 + $0xb00] sm:$0xff]
    %v477 = vld [vmem:[%s3 + $0xb08] sm:$0xff]
    %v478 = vld [vmem:[%s3 + $0xb10] sm:$0xff]
    %v479 = vld [vmem:[%s3 + $0xb18] sm:$0xff]
    %v480 = vld [vmem:[%s3 + $0xb20] sm:$0xff]
    %v481 = vld [vmem:[%s3 + $0xb28] sm:$0xff]
    %v482 = vld [vmem:[%s3 + $0xb30] sm:$0xff]
    %v483 = vld [vmem:[%s3 + $0xb38] sm:$0xff]
    %v484 = vld [vmem:[%s3 + $0xb40] sm:$0xff]
    %v485 = vld [vmem:[%s3 + $0xb48] sm:$0xff]
    %v486 = vld [vmem:[%s3 + $0xb50] sm:$0xff]
    %v487 = vld [vmem:[%s3 + $0xb58] sm:$0xff]
    %v488 = vld [vmem:[%s3 + $0xb60] sm:$0xff]
    %v489 = vld [vmem:[%s3 + $0xb68] sm:$0xff]
    %v490 = vld [vmem:[%s3 + $0xb70] sm:$0xff]
    %v491 = vld [vmem:[%s3 + $0xb78] sm:$0xff]
    %v492 = vld [vmem:[%s3 + $0xb80] sm:$0xff]
    %v493 = vld [vmem:[%s3 + $0xb88] sm:$0xff]
    %v494 = vld [vmem:[%s3 + $0xb90] sm:$0xff]
    %v495 = vld [vmem:[%s3 + $0xb98] sm:$0xff]
    %v496 = vld [vmem:[%s3 + $0xba0] sm:$0xff]
    %v497 = vld [vmem:[%s3 + $0xba8] sm:$0xff]
    %v498 = vld [vmem:[%s3 + $0xbb0] sm:$0xff]
    %v499 = vld [vmem:[%s3 + $0xbb8] sm:$0xff]
    %v500 = vld [vmem:[%s3 + $0xbc0] sm:$0xff]
    %v501 = vld [vmem:[%s3 + $0xbc8] sm:$0xff]
    %v502 = vld [vmem:[%s3 + $0xbd0] sm:$0xff]
    %v503 = vld [vmem:[%s3 + $0xbd8] sm:$0xff]
    %v504 = vld [vmem:[%s3 + $0xbe0] sm:$0xff]
    %v505 = vld [vmem:[%s3 + $0xbe8] sm:$0xff]
    %v506 = vld [vmem:[%s3 + $0xbf0] sm:$0xff]
    %v507 = vld [vmem:[%s3 + $0xbf8] sm:$0xff]
    %v508 = vld [vmem:[%s3 + $0xc00] sm:$0xff]
    %v509 = vld [vmem:[%s3 + $0xc08] sm:$0xff]
    %v510 = vld [vmem:[%s3 + $0xc10] sm:$0xff]
    %v511 = vld [vmem:[%s3 + $0xc18] sm:$0xff]
    %v512 = vld [vmem:[%s3 + $0xc20] sm:$0xff]
    %v513 = vld [vmem:[%s3 + $0xc28] sm:$0xff]
    %v514 = vld [vmem:[%s3 + $0xc30] sm:$0xff]
    %v515 = vld [vmem:[%s3 + $0xc38] sm:$0xff]
    %v516 = vld [vmem:[%s3 + $0xc40] sm:$0xff]
    %v517 = vld [vmem:[%s3 + $0xc48] sm:$0xff]
    %v518 = vld [vmem:[%s3 + $0xc50] sm:$0xff]
    %v519 = vld [vmem:[%s3 + $0xc58] sm:$0xff]
    %v520 = vld [vmem:[%s3 + $0xc60] sm:$0xff]
    %v521 = vld [vmem:[%s3 + $0xc68] sm:$0xff]
    %v522 = vld [vmem:[%s3 + $0xc70] sm:$0xff]
    %v523 = vld [vmem:[%s3 + $0xc78] sm:$0xff]
    %v524 = vld [vmem:[%s3 + $0xc80] sm:$0xff]
    %v525 = vld [vmem:[%s3 + $0xc88] sm:$0xff]
    %v526 = vld [vmem:[%s3 + $0xc90] sm:$0xff]
    %v527 = vld [vmem:[%s3 + $0xc98] sm:$0xff]
    %v528 = vld [vmem:[%s3 + $0xca0] sm:$0xff]
    %v529 = vld [vmem:[%s3 + $0xca8] sm:$0xff]
    %v530 = vld [vmem:[%s3 + $0xcb0] sm:$0xff]
    %v531 = vld [vmem:[%s3 + $0xcb8] sm:$0xff]
    %v532 = vld [vmem:[%s3 + $0xcc0] sm:$0xff]
    %v533 = vld [vmem:[%s3 + $0xcc8] sm:$0xff]
    %v534 = vld [vmem:[%s3 + $0xcd0] sm:$0xff]
    %v535 = vld [vmem:[%s3 + $0xcd8] sm:$0xff]
    %v536 = vld [vmem:[%s3 + $0xce0] sm:$0xff]
    %v537 = vld [vmem:[%s3 + $0xce8] sm:$0xff]
    %v538 = vld [vmem:[%s3 + $0xcf0] sm:$0xff]
    %v539 = vld [vmem:[%s3 + $0xcf8] sm:$0xff]
    %v540 = vld [vmem:[%s3 + $0xd00] sm:$0xff]
    %v541 = vld [vmem:[%s3 + $0xd08] sm:$0xff]
    %v542 = vld [vmem:[%s3 + $0xd10] sm:$0xff]
    %v543 = vld [vmem:[%s3 + $0xd18] sm:$0xff]
    %v544 = vld [vmem:[%s3 + $0xd20] sm:$0xff]
    %v545 = vld [vmem:[%s3 + $0xd28] sm:$0xff]
    %v546 = vld [vmem:[%s3 + $0xd30] sm:$0xff]
    %v547 = vld [vmem:[%s3 + $0xd38] sm:$0xff]
    %v548 = vld [vmem:[%s3 + $0xd40] sm:$0xff]
    %v549 = vld [vmem:[%s3 + $0xd48] sm:$0xff]
    %v550 = vld [vmem:[%s3 + $0xd50] sm:$0xff]
    %v551 = vld [vmem:[%s3 + $0xd58] sm:$0xff]
    %v552 = vld [vmem:[%s3 + $0xd60] sm:$0xff]
    %v553 = vld [vmem:[%s3 + $0xd68] sm:$0xff]
    %v554 = vld [vmem:[%s3 + $0xd70] sm:$0xff]
    %v555 = vld [vmem:[%s3 + $0xd78] sm:$0xff]
    %v556 = vld [vmem:[%s3 + $0xd80] sm:$0xff]
    %v557 = vld [vmem:[%s3 + $0xd88] sm:$0xff]
    %v558 = vld [vmem:[%s3 + $0xd90] sm:$0xff]
    %v559 = vld [vmem:[%s3 + $0xd98] sm:$0xff]
    %v560 = vld [vmem:[%s3 + $0xda0] sm:$0xff]
    %v561 = vld [vmem:[%s3 + $0xda8] sm:$0xff]
    %v562 = vld [vmem:[%s3 + $0xdb0] sm:$0xff]
    %v563 = vld [vmem:[%s3 + $0xdb8] sm:$0xff]
    %v564 = vld [vmem:[%s3 + $0xdc0] sm:$0xff]
    %v565 = vld [vmem:[%s3 + $0xdc8] sm:$0xff]
    %v566 = vld [vmem:[%s3 + $0xdd0] sm:$0xff]
    %v567 = vld [vmem:[%s3 + $0xdd8] sm:$0xff]
    %v568 = vld [vmem:[%s3 + $0xde0] sm:$0xff]
    %v569 = vld [vmem:[%s3 + $0xde8] sm:$0xff]
    %v570 = vld [vmem:[%s3 + $0xdf0] sm:$0xff]
    %v571 = vld [vmem:[%s3 + $0xdf8] sm:$0xff]
    %v572 = vld [vmem:[%s3 + $0xe00] sm:$0xff]
    %v573 = vld [vmem:[%s3 + $0xe08] sm:$0xff]
    %v574 = vld [vmem:[%s3 + $0xe10] sm:$0xff]
    %v575 = vld [vmem:[%s3 + $0xe18] sm:$0xff]
    %v576 = vld [vmem:[%s3 + $0xe20] sm:$0xff]
    %v577 = vld [vmem:[%s3 + $0xe28] sm:$0xff]
    %v578 = vld [vmem:[%s3 + $0xe30] sm:$0xff]
    %v579 = vld [vmem:[%s3 + $0xe38] sm:$0xff]
    %v580 = vld [vmem:[%s3 + $0xe40] sm:$0xff]
    %v581 = vld [vmem:[%s3 + $0xe48] sm:$0xff]
    %v582 = vld [vmem:[%s3 + $0xe50] sm:$0xff]
    %v583 = vld [vmem:[%s3 + $0xe58] sm:$0xff]
    %v584 = vld [vmem:[%s3 + $0xe60] sm:$0xff]
    %v585 = vld [vmem:[%s3 + $0xe68] sm:$0xff]
    %v586 = vld [vmem:[%s3 + $0xe70] sm:$0xff]
    %v587 = vld [vmem:[%s3 + $0xe78] sm:$0xff]
    %v588 = vld [vmem:[%s3 + $0xe80] sm:$0xff]
    %v589 = vld [vmem:[%s3 + $0xe88] sm:$0xff]
    %v590 = vld [vmem:[%s3 + $0xe90] sm:$0xff]
    %v591 = vld [vmem:[%s3 + $0xe98] sm:$0xff]
    %v592 = vld [vmem:[%s3 + $0xea0] sm:$0xff]
    %v593 = vld [vmem:[%s3 + $0xea8] sm:$0xff]
    %v594 = vld [vmem:[%s3 + $0xeb0] sm:$0xff]
    %v595 = vld [vmem:[%s3 + $0xeb8] sm:$0xff]
    %v596 = vld [vmem:[%s3 + $0xec0] sm:$0xff]
    %v597 = vld [vmem:[%s3 + $0xec8] sm:$0xff]
    %v598 = vld [vmem:[%s3 + $0xed0] sm:$0xff]
    %v599 = vld [vmem:[%s3 + $0xed8] sm:$0xff]
    %v600 = vld [vmem:[%s3 + $0xee0] sm:$0xff]
    %v601 = vld [vmem:[%s3 + $0xee8] sm:$0xff]
    %v602 = vld [vmem:[%s3 + $0xef0] sm:$0xff]
    %v603 = vld [vmem:[%s3 + $0xef8] sm:$0xff]
    %v604 = vld [vmem:[%s3 + $0xf00] sm:$0xff]
    %v605 = vld [vmem:[%s3 + $0xf08] sm:$0xff]
    %v606 = vld [vmem:[%s3 + $0xf10] sm:$0xff]
    %v607 = vld [vmem:[%s3 + $0xf18] sm:$0xff]
    %v608 = vld [vmem:[%s3 + $0xf20] sm:$0xff]
    %v609 = vld [vmem:[%s3 + $0xf28] sm:$0xff]
    %v610 = vld [vmem:[%s3 + $0xf30] sm:$0xff]
    %v611 = vld [vmem:[%s3 + $0xf38] sm:$0xff]
    %v612 = vld [vmem:[%s3 + $0xf40] sm:$0xff]
    %v613 = vld [vmem:[%s3 + $0xf48] sm:$0xff]
    %v614 = vld [vmem:[%s3 + $0xf50] sm:$0xff]
    %v615 = vld [vmem:[%s3 + $0xf58] sm:$0xff]
    %v616 = vld [vmem:[%s3 + $0xf60] sm:$0xff]
    %v617 = vld [vmem:[%s3 + $0xf68] sm:$0xff]
    %v618 = vld [vmem:[%s3 + $0xf70] sm:$0xff]
    %v619 = vld [vmem:[%s3 + $0xf78] sm:$0xff]
    %v620 = vld [vmem:[%s3 + $0xf80] sm:$0xff]
    %v621 = vld [vmem:[%s3 + $0xf88] sm:$0xff]
    %v622 = vld [vmem:[%s3 + $0xf90] sm:$0xff]
    %v623 = vld [vmem:[%s3 + $0xf98] sm:$0xff]
    %v624 = vld [vmem:[%s3 + $0xfa0] sm:$0xff]
    %v625 = vld [vmem:[%s3 + $0xfa8] sm:$0xff]
    %v626 = vld [vmem:[%s3 + $0xfb0] sm:$0xff]
    %v627 = vld [vmem:[%s3 + $0xfb8] sm:$0xff]
    %v628 = vld [vmem:[%s3 + $0xfc0] sm:$0xff]
    %v629 = vld [vmem:[%s3 + $0xfc8] sm:$0xff]
    %v630 = vld [vmem:[%s3 + $0xfd0] sm:$0xff]
    %v631 = vld [vmem:[%s3 + $0xfd8] sm:$0xff]
    %v632 = vld [vmem:[%s3 + $0xfe0] sm:$0xff]
    %v633 = vld [vmem:[%s3 + $0xfe8] sm:$0xff]
    %v634 = vld [vmem:[%s3 + $0xff0] sm:$0xff]
    %v635 = vld [vmem:[%s3 + $0xff8] sm:$0xff]
    %v636 = vld [vmem:[%s4] sm:$0xf]
    %v637 = vld [vmem:[%s5] sm:$0xff]
    %v638 = vld [vmem:[%s5 + $0x8] sm:$0xf]
    %v639 = vld [vmem:[#allocation2] sm:$0xff]
    %v640 = vld [vmem:[#allocation2 + $0x8] sm:$0xff]
    %v641 = vld [vmem:[#allocation2 + $0x10] sm:$0xff]
    %v642 = vld [vmem:[#allocation2 + $0x18] sm:$0xff]
    %v643 = vld [vmem:[#allocation2 + $0x20] sm:$0xff]
    %v644 = vld [vmem:[#allocation2 + $0x28] sm:$0xff]
    %v645 = vld [vmem:[#allocation2 + $0x30] sm:$0xff]
    %v646 = vld [vmem:[#allocation2 + $0x38] sm:$0xff]
    %v647 = vld [vmem:[#allocation2 + $0x40] sm:$0xff]
    %v648 = vld [vmem:[#allocation2 + $0x48] sm:$0xff]
    %v649 = vld [vmem:[#allocation2 + $0x50] sm:$0xff]
    %v650 = vld [vmem:[#allocation2 + $0x58] sm:$0xff]
    %v651 = vld [vmem:[#allocation2 + $0x60] sm:$0xff]
    %v652 = vld [vmem:[#allocation2 + $0x68] sm:$0xff]
    %v653 = vld [vmem:[#allocation2 + $0x70] sm:$0xff]
    %v654 = vld [vmem:[#allocation2 + $0x78] sm:$0xff]
    %v655 = vld [vmem:[#allocation2 + $0x80] sm:$0xff]
    %v656 = vld [vmem:[#allocation2 + $0x88] sm:$0xff]
    %v657 = vld [vmem:[#allocation2 + $0x90] sm:$0xff]
    %v658 = vld [vmem:[#allocation2 + $0x98] sm:$0xff]
    %v659 = vld [vmem:[#allocation2 + $0xa0] sm:$0xff]
    %v660 = vld [vmem:[#allocation2 + $0xa8] sm:$0xff]
    %v661 = vld [vmem:[#allocation2 + $0xb0] sm:$0xff]
    %v662 = vld [vmem:[#allocation2 + $0xb8] sm:$0xff]
    %v663 = vld [vmem:[#allocation2 + $0xc0] sm:$0xff]
    %v664 = vld [vmem:[#allocation2 + $0xc8] sm:$0xff]
    %v665 = vld [vmem:[#allocation2 + $0xd0] sm:$0xff]
    %v666 = vld [vmem:[#allocation2 + $0xd8] sm:$0xff]
    %v667 = vld [vmem:[#allocation2 + $0xe0] sm:$0xff]
    %v668 = vld [vmem:[#allocation2 + $0xe8] sm:$0xff]
    %v669 = vld [vmem:[#allocation2 + $0xf0] sm:$0xff]
    %v670 = vld [vmem:[#allocation2 + $0xf8] sm:$0xff]
    %v671 = vld [vmem:[#allocation2 + $0x100] sm:$0xff]
    %v672 = vld [vmem:[#allocation2 + $0x108] sm:$0xff]
    %v673 = vld [vmem:[#allocation2 + $0x110] sm:$0xff]
    %v674 = vld [vmem:[#allocation2 + $0x118] sm:$0xff]
    %v675 = vld [vmem:[#allocation2 + $0x120] sm:$0xff]
    %v676 = vld [vmem:[#allocation2 + $0x128] sm:$0xff]
    %v677 = vld [vmem:[#allocation2 + $0x130] sm:$0xff]
    %v678 = vld [vmem:[#allocation2 + $0x138] sm:$0xff]
    %v679 = vld [vmem:[#allocation2 + $0x140] sm:$0xff]
    %v680 = vld [vmem:[#allocation2 + $0x148] sm:$0xff]
    %v681 = vld [vmem:[#allocation2 + $0x150] sm:$0xff]
    %v682 = vld [vmem:[#allocation2 + $0x158] sm:$0xff]
    %v683 = vld [vmem:[#allocation2 + $0x160] sm:$0xff]
    %v684 = vld [vmem:[#allocation2 + $0x168] sm:$0xff]
    %v685 = vld [vmem:[#allocation2 + $0x170] sm:$0xff]
    %v686 = vld [vmem:[#allocation2 + $0x178] sm:$0xff]
    %v687 = vld [vmem:[#allocation2 + $0x180] sm:$0xff]
    %v688 = vld [vmem:[#allocation2 + $0x188] sm:$0xff]
    %v689 = vld [vmem:[#allocation2 + $0x190] sm:$0xff]
    %v690 = vld [vmem:[#allocation2 + $0x198] sm:$0xff]
    %v691 = vld [vmem:[#allocation2 + $0x1a0] sm:$0xff]
    %v692 = vld [vmem:[#allocation2 + $0x1a8] sm:$0xff]
    %v693 = vld [vmem:[#allocation2 + $0x1b0] sm:$0xff]
    %v694 = vld [vmem:[#allocation2 + $0x1b8] sm:$0xff]
    %v695 = vld [vmem:[#allocation2 + $0x1c0] sm:$0xff]
    %v696 = vld [vmem:[#allocation2 + $0x1c8] sm:$0xff]
    %v697 = vld [vmem:[#allocation2 + $0x1d0] sm:$0xff]
    %v698 = vld [vmem:[#allocation2 + $0x1d8] sm:$0xff]
    %v699 = vld [vmem:[#allocation2 + $0x1e0] sm:$0xff]
    %v700 = vld [vmem:[#allocation2 + $0x1e8] sm:$0xff]
    %v701 = vld [vmem:[#allocation2 + $0x1f0] sm:$0xff]
    %v702 = vld [vmem:[#allocation2 + $0x1f8] sm:$0xff]
    %v703 = vld [vmem:[%s7] sm:$0xff]
    %v704 = vld [vmem:[%s7 + $0x8] sm:$0xff]
    %v705 = vld [vmem:[%s7 + $0x10] sm:$0xff]
    %v706 = vld [vmem:[%s7 + $0x18] sm:$0xff]
    %v707 = vld [vmem:[%s7 + $0x20] sm:$0xff]
    %v708 = vld [vmem:[%s7 + $0x28] sm:$0xff]
    %v709 = vld [vmem:[%s7 + $0x30] sm:$0xff]
    %v710 = vld [vmem:[%s7 + $0x38] sm:$0xff]
    %v711 = vld [vmem:[%s7 + $0x40] sm:$0xff]
    %v712 = vld [vmem:[%s7 + $0x48] sm:$0xff]
    %v713 = vld [vmem:[%s7 + $0x50] sm:$0xff]
    %v714 = vld [vmem:[%s7 + $0x58] sm:$0xff]
    %v715 = vld [vmem:[%s7 + $0x60] sm:$0xff]
    %v716 = vld [vmem:[%s7 + $0x68] sm:$0xff]
    %v717 = vld [vmem:[%s7 + $0x70] sm:$0xff]
    %v718 = vld [vmem:[%s7 + $0x78] sm:$0xff]
    %v719 = vld [vmem:[%s7 + $0x80] sm:$0xff]
    %v720 = vld [vmem:[%s7 + $0x88] sm:$0xff]
    %v721 = vld [vmem:[%s7 + $0x90] sm:$0xff]
    %v722 = vld [vmem:[%s7 + $0x98] sm:$0xff]
    %v723 = vld [vmem:[%s7 + $0xa0] sm:$0xff]
    %v724 = vld [vmem:[%s7 + $0xa8] sm:$0xff]
    %v725 = vld [vmem:[%s7 + $0xb0] sm:$0xff]
    %v726 = vld [vmem:[%s7 + $0xb8] sm:$0xff]
    %v727 = vld [vmem:[%s7 + $0xc0] sm:$0xff]
    %v728 = vld [vmem:[%s7 + $0xc8] sm:$0xff]
    %v729 = vld [vmem:[%s7 + $0xd0] sm:$0xff]
    %v730 = vld [vmem:[%s7 + $0xd8] sm:$0xff]
    %v731 = vld [vmem:[%s7 + $0xe0] sm:$0xff]
    %v732 = vld [vmem:[%s7 + $0xe8] sm:$0xff]
    %v733 = vld [vmem:[%s7 + $0xf0] sm:$0xff]
    %v734 = vld [vmem:[%s7 + $0xf8] sm:$0xff]
    %v735 = vld [vmem:[%s7 + $0x100] sm:$0xff]
    %v736 = vld [vmem:[%s7 + $0x108] sm:$0xff]
    %v737 = vld [vmem:[%s7 + $0x110] sm:$0xff]
    %v738 = vld [vmem:[%s7 + $0x118] sm:$0xff]
    %v739 = vld [vmem:[%s7 + $0x120] sm:$0xff]
    %v740 = vld [vmem:[%s7 + $0x128] sm:$0xff]
    %v741 = vld [vmem:[%s7 + $0x130] sm:$0xff]
    %v742 = vld [vmem:[%s7 + $0x138] sm:$0xff]
    %v743 = vld [vmem:[%s7 + $0x140] sm:$0xff]
    %v744 = vld [vmem:[%s7 + $0x148] sm:$0xff]
    %v745 = vld [vmem:[%s7 + $0x150] sm:$0xff]
    %v746 = vld [vmem:[%s7 + $0x158] sm:$0xff]
    %v747 = vld [vmem:[%s7 + $0x160] sm:$0xff]
    %v748 = vld [vmem:[%s7 + $0x168] sm:$0xff]
    %v749 = vld [vmem:[%s7 + $0x170] sm:$0xff]
    %v750 = vld [vmem:[%s7 + $0x178] sm:$0xff]
    %v751 = vld [vmem:[%s7 + $0x180] sm:$0xff]
    %v752 = vld [vmem:[%s7 + $0x188] sm:$0xff]
    %v753 = vld [vmem:[%s7 + $0x190] sm:$0xff]
    %v754 = vld [vmem:[%s7 + $0x198] sm:$0xff]
    %v755 = vld [vmem:[%s7 + $0x1a0] sm:$0xff]
    %v756 = vld [vmem:[%s7 + $0x1a8] sm:$0xff]
    %v757 = vld [vmem:[%s7 + $0x1b0] sm:$0xff]
    %v758 = vld [vmem:[%s7 + $0x1b8] sm:$0xff]
    %v759 = vld [vmem:[%s7 + $0x1c0] sm:$0xff]
    %v760 = vld [vmem:[%s7 + $0x1c8] sm:$0xff]
    %v761 = vld [vmem:[%s7 + $0x1d0] sm:$0xff]
    %v762 = vld [vmem:[%s7 + $0x1d8] sm:$0xff]
    %v763 = vld [vmem:[%s7 + $0x1e0] sm:$0xff]
    %v764 = vld [vmem:[%s7 + $0x1e8] sm:$0xff]
    %v765 = vld [vmem:[%s7 + $0x1f0] sm:$0xff]
    %v766 = vld [vmem:[%s7 + $0x1f8] sm:$0xff]
    %v767 = vld [vmem:[%s7 + $0x200] sm:$0xff]
    %v768 = vld [vmem:[%s7 + $0x208] sm:$0xff]
    %v769 = vld [vmem:[%s7 + $0x210] sm:$0xff]
    %v770 = vld [vmem:[%s7 + $0x218] sm:$0xff]
    %v771 = vld [vmem:[%s7 + $0x220] sm:$0xff]
    %v772 = vld [vmem:[%s7 + $0x228] sm:$0xff]
    %v773 = vld [vmem:[%s7 + $0x230] sm:$0xff]
    %v774 = vld [vmem:[%s7 + $0x238] sm:$0xff]
    %v775 = vld [vmem:[%s7 + $0x240] sm:$0xff]
    %v776 = vld [vmem:[%s7 + $0x248] sm:$0xff]
    %v777 = vld [vmem:[%s7 + $0x250] sm:$0xff]
    %v778 = vld [vmem:[%s7 + $0x258] sm:$0xff]
    %v779 = vld [vmem:[%s7 + $0x260] sm:$0xff]
    %v780 = vld [vmem:[%s7 + $0x268] sm:$0xff]
    %v781 = vld [vmem:[%s7 + $0x270] sm:$0xff]
    %v782 = vld [vmem:[%s7 + $0x278] sm:$0xff]
    %v783 = vld [vmem:[%s7 + $0x280] sm:$0xff]
    %v784 = vld [vmem:[%s7 + $0x288] sm:$0xff]
    %v785 = vld [vmem:[%s7 + $0x290] sm:$0xff]
    %v786 = vld [vmem:[%s7 + $0x298] sm:$0xff]
    %v787 = vld [vmem:[%s7 + $0x2a0] sm:$0xff]
    %v788 = vld [vmem:[%s7 + $0x2a8] sm:$0xff]
    %v789 = vld [vmem:[%s7 + $0x2b0] sm:$0xff]
    %v790 = vld [vmem:[%s7 + $0x2b8] sm:$0xff]
    %v791 = vld [vmem:[%s7 + $0x2c0] sm:$0xff]
    %v792 = vld [vmem:[%s7 + $0x2c8] sm:$0xff]
    %v793 = vld [vmem:[%s7 + $0x2d0] sm:$0xff]
    %v794 = vld [vmem:[%s7 + $0x2d8] sm:$0xff]
    %v795 = vld [vmem:[%s7 + $0x2e0] sm:$0xff]
    %v796 = vld [vmem:[%s7 + $0x2e8] sm:$0xff]
    %v797 = vld [vmem:[%s7 + $0x2f0] sm:$0xff]
    %v798 = vld [vmem:[%s7 + $0x2f8] sm:$0xff]
    loop: start=0, step=1, limit=9
    $region38: #{_lambda_.3} parent=1 // loop_pre_header
      _
    $region39: #{_lambda_.3} parent=1 // loop_header
      %s800 = sphi 0, %s804
      %p801 = scmp.ge.s32.totalorder %s800, 9
      %v805 = vphi 0.0, %v5811
    $region40: #{_lambda_.3} parent=1 // loop_header_branch
      %803 = sbr.rel (%p801) target = $region44
    $region41: #{_lambda_.3} parent=1 // loop_body
      %v807 = vcombine.high %v805, %v805
      %v809 = vunpack.c.l.s4 1983009808
      %v810 = vunpack.c.0.s8 %v809
      %v811 = vlaneseq
      %v812 = vshrl.u32 %v811, 7
      %v813 = vsub.s32 %v810, %v812
      %v814 = vrot.slane %v805, %v813
      %v816 = vunpack.c.l.s4 1983009808
      %v817 = vunpack.c.0.s8 %v816
      %v818 = vlaneseq
      %v819 = vshrl.u32 %v818, 7
      %v820 = vsub.s32 %v817, %v819
      %v821 = vrot.slane %v807, %v820
      %v822 = vcombine.high %v814, %v814
      %v823 = vcombine.high %v821, %v821
      %v828 = vpack.c.bf16 %v814, %v814
      %v829 = vpack.c.bf16 %v822, %v822
      %v830 = vpack.c.bf16 %v821, %v821
      %v831 = vpack.c.bf16 %v823, %v823
      %v1344 = vunpack.c.l.b16 %v124
      %v1345 = vunpack.c.h.b16 %v124
      %v1346 = vunpack.c.l.b16 %v125
      %v1347 = vunpack.c.h.b16 %v125
      %v1348 = vunpack.c.l.b16 %v126
      %v1349 = vunpack.c.h.b16 %v126
      %v1350 = vunpack.c.l.b16 %v127
      %v1351 = vunpack.c.h.b16 %v127
      %v1352 = vunpack.c.l.b16 %v128
      %v1353 = vunpack.c.h.b16 %v128
      %v1354 = vunpack.c.l.b16 %v129
      %v1355 = vunpack.c.h.b16 %v129
      %v1356 = vunpack.c.l.b16 %v130
      %v1357 = vunpack.c.h.b16 %v130
      %v1358 = vunpack.c.l.b16 %v131
      %v1359 = vunpack.c.h.b16 %v131
      %v1360 = vunpack.c.l.b16 %v132
      %v1361 = vunpack.c.h.b16 %v132
      %v1362 = vunpack.c.l.b16 %v133
      %v1363 = vunpack.c.h.b16 %v133
      %v1364 = vunpack.c.l.b16 %v134
      %v1365 = vunpack.c.h.b16 %v134
      %v1366 = vunpack.c.l.b16 %v135
      %v1367 = vunpack.c.h.b16 %v135
      %v1368 = vunpack.c.l.b16 %v136
      %v1369 = vunpack.c.h.b16 %v136
      %v1370 = vunpack.c.l.b16 %v137
      %v1371 = vunpack.c.h.b16 %v137
      %v1372 = vunpack.c.l.b16 %v138
      %v1373 = vunpack.c.h.b16 %v138
      %v1374 = vunpack.c.l.b16 %v139
      %v1375 = vunpack.c.h.b16 %v139
      %v1376 = vunpack.c.l.b16 %v140
      %v1377 = vunpack.c.h.b16 %v140
      %v1378 = vunpack.c.l.b16 %v141
      %v1379 = vunpack.c.h.b16 %v141
      %v1380 = vunpack.c.l.b16 %v142
      %v1381 = vunpack.c.h.b16 %v142
      %v1382 = vunpack.c.l.b16 %v143
      %v1383 = vunpack.c.h.b16 %v143
      %v1384 = vunpack.c.l.b16 %v144
      %v1385 = vunpack.c.h.b16 %v144
      %v1386 = vunpack.c.l.b16 %v145
      %v1387 = vunpack.c.h.b16 %v145
      %v1388 = vunpack.c.l.b16 %v146
      %v1389 = vunpack.c.h.b16 %v146
      %v1390 = vunpack.c.l.b16 %v147
      %v1391 = vunpack.c.h.b16 %v147
      %v1392 = vunpack.c.l.b16 %v148
      %v1393 = vunpack.c.h.b16 %v148
      %v1394 = vunpack.c.l.b16 %v149
      %v1395 = vunpack.c.h.b16 %v149
      %v1396 = vunpack.c.l.b16 %v150
      %v1397 = vunpack.c.h.b16 %v150
      %v1398 = vunpack.c.l.b16 %v151
      %v1399 = vunpack.c.h.b16 %v151
      %v1400 = vunpack.c.l.b16 %v152
      %v1401 = vunpack.c.h.b16 %v152
      %v1402 = vunpack.c.l.b16 %v153
      %v1403 = vunpack.c.h.b16 %v153
      %v1404 = vunpack.c.l.b16 %v154
      %v1405 = vunpack.c.h.b16 %v154
      %v1406 = vunpack.c.l.b16 %v155
      %v1407 = vunpack.c.h.b16 %v155
      %v1408 = vunpack.c.l.b16 %v156
      %v1409 = vunpack.c.h.b16 %v156
      %v1410 = vunpack.c.l.b16 %v157
      %v1411 = vunpack.c.h.b16 %v157
      %v1412 = vunpack.c.l.b16 %v158
      %v1413 = vunpack.c.h.b16 %v158
      %v1414 = vunpack.c.l.b16 %v159
      %v1415 = vunpack.c.h.b16 %v159
      %v1416 = vunpack.c.l.b16 %v160
      %v1417 = vunpack.c.h.b16 %v160
      %v1418 = vunpack.c.l.b16 %v161
      %v1419 = vunpack.c.h.b16 %v161
      %v1420 = vunpack.c.l.b16 %v162
      %v1421 = vunpack.c.h.b16 %v162
      %v1422 = vunpack.c.l.b16 %v163
      %v1423 = vunpack.c.h.b16 %v163
      %v1424 = vunpack.c.l.b16 %v164
      %v1425 = vunpack.c.h.b16 %v164
      %v1426 = vunpack.c.l.b16 %v165
      %v1427 = vunpack.c.h.b16 %v165
      %v1428 = vunpack.c.l.b16 %v166
      %v1429 = vunpack.c.h.b16 %v166
      %v1430 = vunpack.c.l.b16 %v167
      %v1431 = vunpack.c.h.b16 %v167
      %v1432 = vunpack.c.l.b16 %v168
      %v1433 = vunpack.c.h.b16 %v168
      %v1434 = vunpack.c.l.b16 %v169
      %v1435 = vunpack.c.h.b16 %v169
      %v1436 = vunpack.c.l.b16 %v170
      %v1437 = vunpack.c.h.b16 %v170
      %v1438 = vunpack.c.l.b16 %v171
      %v1439 = vunpack.c.h.b16 %v171
      %v1440 = vunpack.c.l.b16 %v172
      %v1441 = vunpack.c.h.b16 %v172
      %v1442 = vunpack.c.l.b16 %v173
      %v1443 = vunpack.c.h.b16 %v173
      %v1444 = vunpack.c.l.b16 %v174
      %v1445 = vunpack.c.h.b16 %v174
      %v1446 = vunpack.c.l.b16 %v175
      %v1447 = vunpack.c.h.b16 %v175
      %v1448 = vunpack.c.l.b16 %v176
      %v1449 = vunpack.c.h.b16 %v176
      %v1450 = vunpack.c.l.b16 %v177
      %v1451 = vunpack.c.h.b16 %v177
      %v1452 = vunpack.c.l.b16 %v178
      %v1453 = vunpack.c.h.b16 %v178
      %v1454 = vunpack.c.l.b16 %v179
      %v1455 = vunpack.c.h.b16 %v179
      %v1456 = vunpack.c.l.b16 %v180
      %v1457 = vunpack.c.h.b16 %v180
      %v1458 = vunpack.c.l.b16 %v181
      %v1459 = vunpack.c.h.b16 %v181
      %v1460 = vunpack.c.l.b16 %v182
      %v1461 = vunpack.c.h.b16 %v182
      %v1462 = vunpack.c.l.b16 %v183
      %v1463 = vunpack.c.h.b16 %v183
      %v1464 = vunpack.c.l.b16 %v184
      %v1465 = vunpack.c.h.b16 %v184
      %v1466 = vunpack.c.l.b16 %v185
      %v1467 = vunpack.c.h.b16 %v185
      %v1468 = vunpack.c.l.b16 %v186
      %v1469 = vunpack.c.h.b16 %v186
      %v1470 = vunpack.c.l.b16 %v187
      %v1471 = vunpack.c.h.b16 %v187
      %v1472 = vunpack.c.l.b16 %v188
      %v1473 = vunpack.c.h.b16 %v188
      %v1474 = vunpack.c.l.b16 %v189
      %v1475 = vunpack.c.h.b16 %v189
      %v1476 = vunpack.c.l.b16 %v190
      %v1477 = vunpack.c.h.b16 %v190
      %v1478 = vunpack.c.l.b16 %v191
      %v1479 = vunpack.c.h.b16 %v191
      %v1480 = vunpack.c.l.b16 %v192
      %v1481 = vunpack.c.h.b16 %v192
      %v1482 = vunpack.c.l.b16 %v193
      %v1483 = vunpack.c.h.b16 %v193
      %v1484 = vunpack.c.l.b16 %v194
      %v1485 = vunpack.c.h.b16 %v194
      %v1486 = vunpack.c.l.b16 %v195
      %v1487 = vunpack.c.h.b16 %v195
      %v1488 = vunpack.c.l.b16 %v196
      %v1489 = vunpack.c.h.b16 %v196
      %v1490 = vunpack.c.l.b16 %v197
      %v1491 = vunpack.c.h.b16 %v197
      %v1492 = vunpack.c.l.b16 %v198
      %v1493 = vunpack.c.h.b16 %v198
      %v1494 = vunpack.c.l.b16 %v199
      %v1495 = vunpack.c.h.b16 %v199
      %v1496 = vunpack.c.l.b16 %v200
      %v1497 = vunpack.c.h.b16 %v200
      %v1498 = vunpack.c.l.b16 %v201
      %v1499 = vunpack.c.h.b16 %v201
      %v1500 = vunpack.c.l.b16 %v202
      %v1501 = vunpack.c.h.b16 %v202
      %v1502 = vunpack.c.l.b16 %v203
      %v1503 = vunpack.c.h.b16 %v203
      %v1504 = vunpack.c.l.b16 %v204
      %v1505 = vunpack.c.h.b16 %v204
      %v1506 = vunpack.c.l.b16 %v205
      %v1507 = vunpack.c.h.b16 %v205
      %v1508 = vunpack.c.l.b16 %v206
      %v1509 = vunpack.c.h.b16 %v206
      %v1510 = vunpack.c.l.b16 %v207
      %v1511 = vunpack.c.h.b16 %v207
      %v1512 = vunpack.c.l.b16 %v208
      %v1513 = vunpack.c.h.b16 %v208
      %v1514 = vunpack.c.l.b16 %v209
      %v1515 = vunpack.c.h.b16 %v209
      %v1516 = vunpack.c.l.b16 %v210
      %v1517 = vunpack.c.h.b16 %v210
      %v1518 = vunpack.c.l.b16 %v211
      %v1519 = vunpack.c.h.b16 %v211
      %v1520 = vunpack.c.l.b16 %v212
      %v1521 = vunpack.c.h.b16 %v212
      %v1522 = vunpack.c.l.b16 %v213
      %v1523 = vunpack.c.h.b16 %v213
      %v1524 = vunpack.c.l.b16 %v214
      %v1525 = vunpack.c.h.b16 %v214
      %v1526 = vunpack.c.l.b16 %v215
      %v1527 = vunpack.c.h.b16 %v215
      %v1528 = vunpack.c.l.b16 %v216
      %v1529 = vunpack.c.h.b16 %v216
      %v1530 = vunpack.c.l.b16 %v217
      %v1531 = vunpack.c.h.b16 %v217
      %v1532 = vunpack.c.l.b16 %v218
      %v1533 = vunpack.c.h.b16 %v218
      %v1534 = vunpack.c.l.b16 %v219
      %v1535 = vunpack.c.h.b16 %v219
      %v1536 = vunpack.c.l.b16 %v220
      %v1537 = vunpack.c.h.b16 %v220
      %v1538 = vunpack.c.l.b16 %v221
      %v1539 = vunpack.c.h.b16 %v221
      %v1540 = vunpack.c.l.b16 %v222
      %v1541 = vunpack.c.h.b16 %v222
      %v1542 = vunpack.c.l.b16 %v223
      %v1543 = vunpack.c.h.b16 %v223
      %v1544 = vunpack.c.l.b16 %v224
      %v1545 = vunpack.c.h.b16 %v224
      %v1546 = vunpack.c.l.b16 %v225
      %v1547 = vunpack.c.h.b16 %v225
      %v1548 = vunpack.c.l.b16 %v226
      %v1549 = vunpack.c.h.b16 %v226
      %v1550 = vunpack.c.l.b16 %v227
      %v1551 = vunpack.c.h.b16 %v227
      %v1552 = vunpack.c.l.b16 %v228
      %v1553 = vunpack.c.h.b16 %v228
      %v1554 = vunpack.c.l.b16 %v229
      %v1555 = vunpack.c.h.b16 %v229
      %v1556 = vunpack.c.l.b16 %v230
      %v1557 = vunpack.c.h.b16 %v230
      %v1558 = vunpack.c.l.b16 %v231
      %v1559 = vunpack.c.h.b16 %v231
      %v1560 = vunpack.c.l.b16 %v232
      %v1561 = vunpack.c.h.b16 %v232
      %v1562 = vunpack.c.l.b16 %v233
      %v1563 = vunpack.c.h.b16 %v233
      %v1564 = vunpack.c.l.b16 %v234
      %v1565 = vunpack.c.h.b16 %v234
      %v1566 = vunpack.c.l.b16 %v235
      %v1567 = vunpack.c.h.b16 %v235
      %v1568 = vunpack.c.l.b16 %v236
      %v1569 = vunpack.c.h.b16 %v236
      %v1570 = vunpack.c.l.b16 %v237
      %v1571 = vunpack.c.h.b16 %v237
      %v1572 = vunpack.c.l.b16 %v238
      %v1573 = vunpack.c.h.b16 %v238
      %v1574 = vunpack.c.l.b16 %v239
      %v1575 = vunpack.c.h.b16 %v239
      %v1576 = vunpack.c.l.b16 %v240
      %v1577 = vunpack.c.h.b16 %v240
      %v1578 = vunpack.c.l.b16 %v241
      %v1579 = vunpack.c.h.b16 %v241
      %v1580 = vunpack.c.l.b16 %v242
      %v1581 = vunpack.c.h.b16 %v242
      %v1582 = vunpack.c.l.b16 %v243
      %v1583 = vunpack.c.h.b16 %v243
      %v1584 = vunpack.c.l.b16 %v244
      %v1585 = vunpack.c.h.b16 %v244
      %v1586 = vunpack.c.l.b16 %v245
      %v1587 = vunpack.c.h.b16 %v245
      %v1588 = vunpack.c.l.b16 %v246
      %v1589 = vunpack.c.h.b16 %v246
      %v1590 = vunpack.c.l.b16 %v247
      %v1591 = vunpack.c.h.b16 %v247
      %v1592 = vunpack.c.l.b16 %v248
      %v1593 = vunpack.c.h.b16 %v248
      %v1594 = vunpack.c.l.b16 %v249
      %v1595 = vunpack.c.h.b16 %v249
      %v1596 = vunpack.c.l.b16 %v250
      %v1597 = vunpack.c.h.b16 %v250
      %v1598 = vunpack.c.l.b16 %v251
      %v1599 = vunpack.c.h.b16 %v251
      %v1600 = vunpack.c.l.b16 %v252
      %v1601 = vunpack.c.h.b16 %v252
      %v1602 = vunpack.c.l.b16 %v253
      %v1603 = vunpack.c.h.b16 %v253
      %v1604 = vunpack.c.l.b16 %v254
      %v1605 = vunpack.c.h.b16 %v254
      %v1606 = vunpack.c.l.b16 %v255
      %v1607 = vunpack.c.h.b16 %v255
      %v1608 = vunpack.c.l.b16 %v256
      %v1609 = vunpack.c.h.b16 %v256
      %v1610 = vunpack.c.l.b16 %v257
      %v1611 = vunpack.c.h.b16 %v257
      %v1612 = vunpack.c.l.b16 %v258
      %v1613 = vunpack.c.h.b16 %v258
      %v1614 = vunpack.c.l.b16 %v259
      %v1615 = vunpack.c.h.b16 %v259
      %v1616 = vunpack.c.l.b16 %v260
      %v1617 = vunpack.c.h.b16 %v260
      %v1618 = vunpack.c.l.b16 %v261
      %v1619 = vunpack.c.h.b16 %v261
      %v1620 = vunpack.c.l.b16 %v262
      %v1621 = vunpack.c.h.b16 %v262
      %v1622 = vunpack.c.l.b16 %v263
      %v1623 = vunpack.c.h.b16 %v263
      %v1624 = vunpack.c.l.b16 %v264
      %v1625 = vunpack.c.h.b16 %v264
      %v1626 = vunpack.c.l.b16 %v265
      %v1627 = vunpack.c.h.b16 %v265
      %v1628 = vunpack.c.l.b16 %v266
      %v1629 = vunpack.c.h.b16 %v266
      %v1630 = vunpack.c.l.b16 %v267
      %v1631 = vunpack.c.h.b16 %v267
      %v1632 = vunpack.c.l.b16 %v268
      %v1633 = vunpack.c.h.b16 %v268
      %v1634 = vunpack.c.l.b16 %v269
      %v1635 = vunpack.c.h.b16 %v269
      %v1636 = vunpack.c.l.b16 %v270
      %v1637 = vunpack.c.h.b16 %v270
      %v1638 = vunpack.c.l.b16 %v271
      %v1639 = vunpack.c.h.b16 %v271
      %v1640 = vunpack.c.l.b16 %v272
      %v1641 = vunpack.c.h.b16 %v272
      %v1642 = vunpack.c.l.b16 %v273
      %v1643 = vunpack.c.h.b16 %v273
      %v1644 = vunpack.c.l.b16 %v274
      %v1645 = vunpack.c.h.b16 %v274
      %v1646 = vunpack.c.l.b16 %v275
      %v1647 = vunpack.c.h.b16 %v275
      %v1648 = vunpack.c.l.b16 %v276
      %v1649 = vunpack.c.h.b16 %v276
      %v1650 = vunpack.c.l.b16 %v277
      %v1651 = vunpack.c.h.b16 %v277
      %v1652 = vunpack.c.l.b16 %v278
      %v1653 = vunpack.c.h.b16 %v278
      %v1654 = vunpack.c.l.b16 %v279
      %v1655 = vunpack.c.h.b16 %v279
      %v1656 = vunpack.c.l.b16 %v280
      %v1657 = vunpack.c.h.b16 %v280
      %v1658 = vunpack.c.l.b16 %v281
      %v1659 = vunpack.c.h.b16 %v281
      %v1660 = vunpack.c.l.b16 %v282
      %v1661 = vunpack.c.h.b16 %v282
      %v1662 = vunpack.c.l.b16 %v283
      %v1663 = vunpack.c.h.b16 %v283
      %v1664 = vunpack.c.l.b16 %v284
      %v1665 = vunpack.c.h.b16 %v284
      %v1666 = vunpack.c.l.b16 %v285
      %v1667 = vunpack.c.h.b16 %v285
      %v1668 = vunpack.c.l.b16 %v286
      %v1669 = vunpack.c.h.b16 %v286
      %v1670 = vunpack.c.l.b16 %v287
      %v1671 = vunpack.c.h.b16 %v287
      %v1672 = vunpack.c.l.b16 %v288
      %v1673 = vunpack.c.h.b16 %v288
      %v1674 = vunpack.c.l.b16 %v289
      %v1675 = vunpack.c.h.b16 %v289
      %v1676 = vunpack.c.l.b16 %v290
      %v1677 = vunpack.c.h.b16 %v290
      %v1678 = vunpack.c.l.b16 %v291
      %v1679 = vunpack.c.h.b16 %v291
      %v1680 = vunpack.c.l.b16 %v292
      %v1681 = vunpack.c.h.b16 %v292
      %v1682 = vunpack.c.l.b16 %v293
      %v1683 = vunpack.c.h.b16 %v293
      %v1684 = vunpack.c.l.b16 %v294
      %v1685 = vunpack.c.h.b16 %v294
      %v1686 = vunpack.c.l.b16 %v295
      %v1687 = vunpack.c.h.b16 %v295
      %v1688 = vunpack.c.l.b16 %v296
      %v1689 = vunpack.c.h.b16 %v296
      %v1690 = vunpack.c.l.b16 %v297
      %v1691 = vunpack.c.h.b16 %v297
      %v1692 = vunpack.c.l.b16 %v298
      %v1693 = vunpack.c.h.b16 %v298
      %v1694 = vunpack.c.l.b16 %v299
      %v1695 = vunpack.c.h.b16 %v299
      %v1696 = vunpack.c.l.b16 %v300
      %v1697 = vunpack.c.h.b16 %v300
      %v1698 = vunpack.c.l.b16 %v301
      %v1699 = vunpack.c.h.b16 %v301
      %v1700 = vunpack.c.l.b16 %v302
      %v1701 = vunpack.c.h.b16 %v302
      %v1702 = vunpack.c.l.b16 %v303
      %v1703 = vunpack.c.h.b16 %v303
      %v1704 = vunpack.c.l.b16 %v304
      %v1705 = vunpack.c.h.b16 %v304
      %v1706 = vunpack.c.l.b16 %v305
      %v1707 = vunpack.c.h.b16 %v305
      %v1708 = vunpack.c.l.b16 %v306
      %v1709 = vunpack.c.h.b16 %v306
      %v1710 = vunpack.c.l.b16 %v307
      %v1711 = vunpack.c.h.b16 %v307
      %v1712 = vunpack.c.l.b16 %v308
      %v1713 = vunpack.c.h.b16 %v308
      %v1714 = vunpack.c.l.b16 %v309
      %v1715 = vunpack.c.h.b16 %v309
      %v1716 = vunpack.c.l.b16 %v310
      %v1717 = vunpack.c.h.b16 %v310
      %v1718 = vunpack.c.l.b16 %v311
      %v1719 = vunpack.c.h.b16 %v311
      %v1720 = vunpack.c.l.b16 %v312
      %v1721 = vunpack.c.h.b16 %v312
      %v1722 = vunpack.c.l.b16 %v313
      %v1723 = vunpack.c.h.b16 %v313
      %v1724 = vunpack.c.l.b16 %v314
      %v1725 = vunpack.c.h.b16 %v314
      %v1726 = vunpack.c.l.b16 %v315
      %v1727 = vunpack.c.h.b16 %v315
      %v1728 = vunpack.c.l.b16 %v316
      %v1729 = vunpack.c.h.b16 %v316
      %v1730 = vunpack.c.l.b16 %v317
      %v1731 = vunpack.c.h.b16 %v317
      %v1732 = vunpack.c.l.b16 %v318
      %v1733 = vunpack.c.h.b16 %v318
      %v1734 = vunpack.c.l.b16 %v319
      %v1735 = vunpack.c.h.b16 %v319
      %v1736 = vunpack.c.l.b16 %v320
      %v1737 = vunpack.c.h.b16 %v320
      %v1738 = vunpack.c.l.b16 %v321
      %v1739 = vunpack.c.h.b16 %v321
      %v1740 = vunpack.c.l.b16 %v322
      %v1741 = vunpack.c.h.b16 %v322
      %v1742 = vunpack.c.l.b16 %v323
      %v1743 = vunpack.c.h.b16 %v323
      %v1744 = vunpack.c.l.b16 %v324
      %v1745 = vunpack.c.h.b16 %v324
      %v1746 = vunpack.c.l.b16 %v325
      %v1747 = vunpack.c.h.b16 %v325
      %v1748 = vunpack.c.l.b16 %v326
      %v1749 = vunpack.c.h.b16 %v326
      %v1750 = vunpack.c.l.b16 %v327
      %v1751 = vunpack.c.h.b16 %v327
      %v1752 = vunpack.c.l.b16 %v328
      %v1753 = vunpack.c.h.b16 %v328
      %v1754 = vunpack.c.l.b16 %v329
      %v1755 = vunpack.c.h.b16 %v329
      %v1756 = vunpack.c.l.b16 %v330
      %v1757 = vunpack.c.h.b16 %v330
      %v1758 = vunpack.c.l.b16 %v331
      %v1759 = vunpack.c.h.b16 %v331
      %v1760 = vunpack.c.l.b16 %v332
      %v1761 = vunpack.c.h.b16 %v332
      %v1762 = vunpack.c.l.b16 %v333
      %v1763 = vunpack.c.h.b16 %v333
      %v1764 = vunpack.c.l.b16 %v334
      %v1765 = vunpack.c.h.b16 %v334
      %v1766 = vunpack.c.l.b16 %v335
      %v1767 = vunpack.c.h.b16 %v335
      %v1768 = vunpack.c.l.b16 %v336
      %v1769 = vunpack.c.h.b16 %v336
      %v1770 = vunpack.c.l.b16 %v337
      %v1771 = vunpack.c.h.b16 %v337
      %v1772 = vunpack.c.l.b16 %v338
      %v1773 = vunpack.c.h.b16 %v338
      %v1774 = vunpack.c.l.b16 %v339
      %v1775 = vunpack.c.h.b16 %v339
      %v1776 = vunpack.c.l.b16 %v340
      %v1777 = vunpack.c.h.b16 %v340
      %v1778 = vunpack.c.l.b16 %v341
      %v1779 = vunpack.c.h.b16 %v341
      %v1780 = vunpack.c.l.b16 %v342
      %v1781 = vunpack.c.h.b16 %v342
      %v1782 = vunpack.c.l.b16 %v343
      %v1783 = vunpack.c.h.b16 %v343
      %v1784 = vunpack.c.l.b16 %v344
      %v1785 = vunpack.c.h.b16 %v344
      %v1786 = vunpack.c.l.b16 %v345
      %v1787 = vunpack.c.h.b16 %v345
      %v1788 = vunpack.c.l.b16 %v346
      %v1789 = vunpack.c.h.b16 %v346
      %v1790 = vunpack.c.l.b16 %v347
      %v1791 = vunpack.c.h.b16 %v347
      %v1792 = vunpack.c.l.b16 %v348
      %v1793 = vunpack.c.h.b16 %v348
      %v1794 = vunpack.c.l.b16 %v349
      %v1795 = vunpack.c.h.b16 %v349
      %v1796 = vunpack.c.l.b16 %v350
      %v1797 = vunpack.c.h.b16 %v350
      %v1798 = vunpack.c.l.b16 %v351
      %v1799 = vunpack.c.h.b16 %v351
      %v1800 = vunpack.c.l.b16 %v352
      %v1801 = vunpack.c.h.b16 %v352
      %v1802 = vunpack.c.l.b16 %v353
      %v1803 = vunpack.c.h.b16 %v353
      %v1804 = vunpack.c.l.b16 %v354
      %v1805 = vunpack.c.h.b16 %v354
      %v1806 = vunpack.c.l.b16 %v355
      %v1807 = vunpack.c.h.b16 %v355
      %v1808 = vunpack.c.l.b16 %v356
      %v1809 = vunpack.c.h.b16 %v356
      %v1810 = vunpack.c.l.b16 %v357
      %v1811 = vunpack.c.h.b16 %v357
      %v1812 = vunpack.c.l.b16 %v358
      %v1813 = vunpack.c.h.b16 %v358
      %v1814 = vunpack.c.l.b16 %v359
      %v1815 = vunpack.c.h.b16 %v359
      %v1816 = vunpack.c.l.b16 %v360
      %v1817 = vunpack.c.h.b16 %v360
      %v1818 = vunpack.c.l.b16 %v361
      %v1819 = vunpack.c.h.b16 %v361
      %v1820 = vunpack.c.l.b16 %v362
      %v1821 = vunpack.c.h.b16 %v362
      %v1822 = vunpack.c.l.b16 %v363
      %v1823 = vunpack.c.h.b16 %v363
      %v1824 = vunpack.c.l.b16 %v364
      %v1825 = vunpack.c.h.b16 %v364
      %v1826 = vunpack.c.l.b16 %v365
      %v1827 = vunpack.c.h.b16 %v365
      %v1828 = vunpack.c.l.b16 %v366
      %v1829 = vunpack.c.h.b16 %v366
      %v1830 = vunpack.c.l.b16 %v367
      %v1831 = vunpack.c.h.b16 %v367
      %v1832 = vunpack.c.l.b16 %v368
      %v1833 = vunpack.c.h.b16 %v368
      %v1834 = vunpack.c.l.b16 %v369
      %v1835 = vunpack.c.h.b16 %v369
      %v1836 = vunpack.c.l.b16 %v370
      %v1837 = vunpack.c.h.b16 %v370
      %v1838 = vunpack.c.l.b16 %v371
      %v1839 = vunpack.c.h.b16 %v371
      %v1840 = vunpack.c.l.b16 %v372
      %v1841 = vunpack.c.h.b16 %v372
      %v1842 = vunpack.c.l.b16 %v373
      %v1843 = vunpack.c.h.b16 %v373
      %v1844 = vunpack.c.l.b16 %v374
      %v1845 = vunpack.c.h.b16 %v374
      %v1846 = vunpack.c.l.b16 %v375
      %v1847 = vunpack.c.h.b16 %v375
      %v1848 = vunpack.c.l.b16 %v376
      %v1849 = vunpack.c.h.b16 %v376
      %v1850 = vunpack.c.l.b16 %v377
      %v1851 = vunpack.c.h.b16 %v377
      %v1852 = vunpack.c.l.b16 %v378
      %v1853 = vunpack.c.h.b16 %v378
      %v1854 = vunpack.c.l.b16 %v379
      %v1855 = vunpack.c.h.b16 %v379
      %v1856 = vunpack.c.l.b16 %v380
      %v1857 = vunpack.c.h.b16 %v380
      %v1858 = vunpack.c.l.b16 %v381
      %v1859 = vunpack.c.h.b16 %v381
      %v1860 = vunpack.c.l.b16 %v382
      %v1861 = vunpack.c.h.b16 %v382
      %v1862 = vunpack.c.l.b16 %v383
      %v1863 = vunpack.c.h.b16 %v383
      %v1864 = vunpack.c.l.b16 %v384
      %v1865 = vunpack.c.h.b16 %v384
      %v1866 = vunpack.c.l.b16 %v385
      %v1867 = vunpack.c.h.b16 %v385
      %v1868 = vunpack.c.l.b16 %v386
      %v1869 = vunpack.c.h.b16 %v386
      %v1870 = vunpack.c.l.b16 %v387
      %v1871 = vunpack.c.h.b16 %v387
      %v1872 = vunpack.c.l.b16 %v388
      %v1873 = vunpack.c.h.b16 %v388
      %v1874 = vunpack.c.l.b16 %v389
      %v1875 = vunpack.c.h.b16 %v389
      %v1876 = vunpack.c.l.b16 %v390
      %v1877 = vunpack.c.h.b16 %v390
      %v1878 = vunpack.c.l.b16 %v391
      %v1879 = vunpack.c.h.b16 %v391
      %v1880 = vunpack.c.l.b16 %v392
      %v1881 = vunpack.c.h.b16 %v392
      %v1882 = vunpack.c.l.b16 %v393
      %v1883 = vunpack.c.h.b16 %v393
      %v1884 = vunpack.c.l.b16 %v394
      %v1885 = vunpack.c.h.b16 %v394
      %v1886 = vunpack.c.l.b16 %v395
      %v1887 = vunpack.c.h.b16 %v395
      %v1888 = vunpack.c.l.b16 %v396
      %v1889 = vunpack.c.h.b16 %v396
      %v1890 = vunpack.c.l.b16 %v397
      %v1891 = vunpack.c.h.b16 %v397
      %v1892 = vunpack.c.l.b16 %v398
      %v1893 = vunpack.c.h.b16 %v398
      %v1894 = vunpack.c.l.b16 %v399
      %v1895 = vunpack.c.h.b16 %v399
      %v1896 = vunpack.c.l.b16 %v400
      %v1897 = vunpack.c.h.b16 %v400
      %v1898 = vunpack.c.l.b16 %v401
      %v1899 = vunpack.c.h.b16 %v401
      %v1900 = vunpack.c.l.b16 %v402
      %v1901 = vunpack.c.h.b16 %v402
      %v1902 = vunpack.c.l.b16 %v403
      %v1903 = vunpack.c.h.b16 %v403
      %v1904 = vunpack.c.l.b16 %v404
      %v1905 = vunpack.c.h.b16 %v404
      %v1906 = vunpack.c.l.b16 %v405
      %v1907 = vunpack.c.h.b16 %v405
      %v1908 = vunpack.c.l.b16 %v406
      %v1909 = vunpack.c.h.b16 %v406
      %v1910 = vunpack.c.l.b16 %v407
      %v1911 = vunpack.c.h.b16 %v407
      %v1912 = vunpack.c.l.b16 %v408
      %v1913 = vunpack.c.h.b16 %v408
      %v1914 = vunpack.c.l.b16 %v409
      %v1915 = vunpack.c.h.b16 %v409
      %v1916 = vunpack.c.l.b16 %v410
      %v1917 = vunpack.c.h.b16 %v410
      %v1918 = vunpack.c.l.b16 %v411
      %v1919 = vunpack.c.h.b16 %v411
      %v1920 = vunpack.c.l.b16 %v412
      %v1921 = vunpack.c.h.b16 %v412
      %v1922 = vunpack.c.l.b16 %v413
      %v1923 = vunpack.c.h.b16 %v413
      %v1924 = vunpack.c.l.b16 %v414
      %v1925 = vunpack.c.h.b16 %v414
      %v1926 = vunpack.c.l.b16 %v415
      %v1927 = vunpack.c.h.b16 %v415
      %v1928 = vunpack.c.l.b16 %v416
      %v1929 = vunpack.c.h.b16 %v416
      %v1930 = vunpack.c.l.b16 %v417
      %v1931 = vunpack.c.h.b16 %v417
      %v1932 = vunpack.c.l.b16 %v418
      %v1933 = vunpack.c.h.b16 %v418
      %v1934 = vunpack.c.l.b16 %v419
      %v1935 = vunpack.c.h.b16 %v419
      %v1936 = vunpack.c.l.b16 %v420
      %v1937 = vunpack.c.h.b16 %v420
      %v1938 = vunpack.c.l.b16 %v421
      %v1939 = vunpack.c.h.b16 %v421
      %v1940 = vunpack.c.l.b16 %v422
      %v1941 = vunpack.c.h.b16 %v422
      %v1942 = vunpack.c.l.b16 %v423
      %v1943 = vunpack.c.h.b16 %v423
      %v1944 = vunpack.c.l.b16 %v424
      %v1945 = vunpack.c.h.b16 %v424
      %v1946 = vunpack.c.l.b16 %v425
      %v1947 = vunpack.c.h.b16 %v425
      %v1948 = vunpack.c.l.b16 %v426
      %v1949 = vunpack.c.h.b16 %v426
      %v1950 = vunpack.c.l.b16 %v427
      %v1951 = vunpack.c.h.b16 %v427
      %v1952 = vunpack.c.l.b16 %v428
      %v1953 = vunpack.c.h.b16 %v428
      %v1954 = vunpack.c.l.b16 %v429
      %v1955 = vunpack.c.h.b16 %v429
      %v1956 = vunpack.c.l.b16 %v430
      %v1957 = vunpack.c.h.b16 %v430
      %v1958 = vunpack.c.l.b16 %v431
      %v1959 = vunpack.c.h.b16 %v431
      %v1960 = vunpack.c.l.b16 %v432
      %v1961 = vunpack.c.h.b16 %v432
      %v1962 = vunpack.c.l.b16 %v433
      %v1963 = vunpack.c.h.b16 %v433
      %v1964 = vunpack.c.l.b16 %v434
      %v1965 = vunpack.c.h.b16 %v434
      %v1966 = vunpack.c.l.b16 %v435
      %v1967 = vunpack.c.h.b16 %v435
      %v1968 = vunpack.c.l.b16 %v436
      %v1969 = vunpack.c.h.b16 %v436
      %v1970 = vunpack.c.l.b16 %v437
      %v1971 = vunpack.c.h.b16 %v437
      %v1972 = vunpack.c.l.b16 %v438
      %v1973 = vunpack.c.h.b16 %v438
      %v1974 = vunpack.c.l.b16 %v439
      %v1975 = vunpack.c.h.b16 %v439
      %v1976 = vunpack.c.l.b16 %v440
      %v1977 = vunpack.c.h.b16 %v440
      %v1978 = vunpack.c.l.b16 %v441
      %v1979 = vunpack.c.h.b16 %v441
      %v1980 = vunpack.c.l.b16 %v442
      %v1981 = vunpack.c.h.b16 %v442
      %v1982 = vunpack.c.l.b16 %v443
      %v1983 = vunpack.c.h.b16 %v443
      %v1984 = vunpack.c.l.b16 %v444
      %v1985 = vunpack.c.h.b16 %v444
      %v1986 = vunpack.c.l.b16 %v445
      %v1987 = vunpack.c.h.b16 %v445
      %v1988 = vunpack.c.l.b16 %v446
      %v1989 = vunpack.c.h.b16 %v446
      %v1990 = vunpack.c.l.b16 %v447
      %v1991 = vunpack.c.h.b16 %v447
      %v1992 = vunpack.c.l.b16 %v448
      %v1993 = vunpack.c.h.b16 %v448
      %v1994 = vunpack.c.l.b16 %v449
      %v1995 = vunpack.c.h.b16 %v449
      %v1996 = vunpack.c.l.b16 %v450
      %v1997 = vunpack.c.h.b16 %v450
      %v1998 = vunpack.c.l.b16 %v451
      %v1999 = vunpack.c.h.b16 %v451
      %v2000 = vunpack.c.l.b16 %v452
      %v2001 = vunpack.c.h.b16 %v452
      %v2002 = vunpack.c.l.b16 %v453
      %v2003 = vunpack.c.h.b16 %v453
      %v2004 = vunpack.c.l.b16 %v454
      %v2005 = vunpack.c.h.b16 %v454
      %v2006 = vunpack.c.l.b16 %v455
      %v2007 = vunpack.c.h.b16 %v455
      %v2008 = vunpack.c.l.b16 %v456
      %v2009 = vunpack.c.h.b16 %v456
      %v2010 = vunpack.c.l.b16 %v457
      %v2011 = vunpack.c.h.b16 %v457
      %v2012 = vunpack.c.l.b16 %v458
      %v2013 = vunpack.c.h.b16 %v458
      %v2014 = vunpack.c.l.b16 %v459
      %v2015 = vunpack.c.h.b16 %v459
      %v2016 = vunpack.c.l.b16 %v460
      %v2017 = vunpack.c.h.b16 %v460
      %v2018 = vunpack.c.l.b16 %v461
      %v2019 = vunpack.c.h.b16 %v461
      %v2020 = vunpack.c.l.b16 %v462
      %v2021 = vunpack.c.h.b16 %v462
      %v2022 = vunpack.c.l.b16 %v463
      %v2023 = vunpack.c.h.b16 %v463
      %v2024 = vunpack.c.l.b16 %v464
      %v2025 = vunpack.c.h.b16 %v464
      %v2026 = vunpack.c.l.b16 %v465
      %v2027 = vunpack.c.h.b16 %v465
      %v2028 = vunpack.c.l.b16 %v466
      %v2029 = vunpack.c.h.b16 %v466
      %v2030 = vunpack.c.l.b16 %v467
      %v2031 = vunpack.c.h.b16 %v467
      %v2032 = vunpack.c.l.b16 %v468
      %v2033 = vunpack.c.h.b16 %v468
      %v2034 = vunpack.c.l.b16 %v469
      %v2035 = vunpack.c.h.b16 %v469
      %v2036 = vunpack.c.l.b16 %v470
      %v2037 = vunpack.c.h.b16 %v470
      %v2038 = vunpack.c.l.b16 %v471
      %v2039 = vunpack.c.h.b16 %v471
      %v2040 = vunpack.c.l.b16 %v472
      %v2041 = vunpack.c.h.b16 %v472
      %v2042 = vunpack.c.l.b16 %v473
      %v2043 = vunpack.c.h.b16 %v473
      %v2044 = vunpack.c.l.b16 %v474
      %v2045 = vunpack.c.h.b16 %v474
      %v2046 = vunpack.c.l.b16 %v475
      %v2047 = vunpack.c.h.b16 %v475
      %v2048 = vunpack.c.l.b16 %v476
      %v2049 = vunpack.c.h.b16 %v476
      %v2050 = vunpack.c.l.b16 %v477
      %v2051 = vunpack.c.h.b16 %v477
      %v2052 = vunpack.c.l.b16 %v478
      %v2053 = vunpack.c.h.b16 %v478
      %v2054 = vunpack.c.l.b16 %v479
      %v2055 = vunpack.c.h.b16 %v479
      %v2056 = vunpack.c.l.b16 %v480
      %v2057 = vunpack.c.h.b16 %v480
      %v2058 = vunpack.c.l.b16 %v481
      %v2059 = vunpack.c.h.b16 %v481
      %v2060 = vunpack.c.l.b16 %v482
      %v2061 = vunpack.c.h.b16 %v482
      %v2062 = vunpack.c.l.b16 %v483
      %v2063 = vunpack.c.h.b16 %v483
      %v2064 = vunpack.c.l.b16 %v484
      %v2065 = vunpack.c.h.b16 %v484
      %v2066 = vunpack.c.l.b16 %v485
      %v2067 = vunpack.c.h.b16 %v485
      %v2068 = vunpack.c.l.b16 %v486
      %v2069 = vunpack.c.h.b16 %v486
      %v2070 = vunpack.c.l.b16 %v487
      %v2071 = vunpack.c.h.b16 %v487
      %v2072 = vunpack.c.l.b16 %v488
      %v2073 = vunpack.c.h.b16 %v488
      %v2074 = vunpack.c.l.b16 %v489
      %v2075 = vunpack.c.h.b16 %v489
      %v2076 = vunpack.c.l.b16 %v490
      %v2077 = vunpack.c.h.b16 %v490
      %v2078 = vunpack.c.l.b16 %v491
      %v2079 = vunpack.c.h.b16 %v491
      %v2080 = vunpack.c.l.b16 %v492
      %v2081 = vunpack.c.h.b16 %v492
      %v2082 = vunpack.c.l.b16 %v493
      %v2083 = vunpack.c.h.b16 %v493
      %v2084 = vunpack.c.l.b16 %v494
      %v2085 = vunpack.c.h.b16 %v494
      %v2086 = vunpack.c.l.b16 %v495
      %v2087 = vunpack.c.h.b16 %v495
      %v2088 = vunpack.c.l.b16 %v496
      %v2089 = vunpack.c.h.b16 %v496
      %v2090 = vunpack.c.l.b16 %v497
      %v2091 = vunpack.c.h.b16 %v497
      %v2092 = vunpack.c.l.b16 %v498
      %v2093 = vunpack.c.h.b16 %v498
      %v2094 = vunpack.c.l.b16 %v499
      %v2095 = vunpack.c.h.b16 %v499
      %v2096 = vunpack.c.l.b16 %v500
      %v2097 = vunpack.c.h.b16 %v500
      %v2098 = vunpack.c.l.b16 %v501
      %v2099 = vunpack.c.h.b16 %v501
      %v2100 = vunpack.c.l.b16 %v502
      %v2101 = vunpack.c.h.b16 %v502
      %v2102 = vunpack.c.l.b16 %v503
      %v2103 = vunpack.c.h.b16 %v503
      %v2104 = vunpack.c.l.b16 %v504
      %v2105 = vunpack.c.h.b16 %v504
      %v2106 = vunpack.c.l.b16 %v505
      %v2107 = vunpack.c.h.b16 %v505
      %v2108 = vunpack.c.l.b16 %v506
      %v2109 = vunpack.c.h.b16 %v506
      %v2110 = vunpack.c.l.b16 %v507
      %v2111 = vunpack.c.h.b16 %v507
      %v2112 = vunpack.c.l.b16 %v508
      %v2113 = vunpack.c.h.b16 %v508
      %v2114 = vunpack.c.l.b16 %v509
      %v2115 = vunpack.c.h.b16 %v509
      %v2116 = vunpack.c.l.b16 %v510
      %v2117 = vunpack.c.h.b16 %v510
      %v2118 = vunpack.c.l.b16 %v511
      %v2119 = vunpack.c.h.b16 %v511
      %v2120 = vunpack.c.l.b16 %v512
      %v2121 = vunpack.c.h.b16 %v512
      %v2122 = vunpack.c.l.b16 %v513
      %v2123 = vunpack.c.h.b16 %v513
      %v2124 = vunpack.c.l.b16 %v514
      %v2125 = vunpack.c.h.b16 %v514
      %v2126 = vunpack.c.l.b16 %v515
      %v2127 = vunpack.c.h.b16 %v515
      %v2128 = vunpack.c.l.b16 %v516
      %v2129 = vunpack.c.h.b16 %v516
      %v2130 = vunpack.c.l.b16 %v517
      %v2131 = vunpack.c.h.b16 %v517
      %v2132 = vunpack.c.l.b16 %v518
      %v2133 = vunpack.c.h.b16 %v518
      %v2134 = vunpack.c.l.b16 %v519
      %v2135 = vunpack.c.h.b16 %v519
      %v2136 = vunpack.c.l.b16 %v520
      %v2137 = vunpack.c.h.b16 %v520
      %v2138 = vunpack.c.l.b16 %v521
      %v2139 = vunpack.c.h.b16 %v521
      %v2140 = vunpack.c.l.b16 %v522
      %v2141 = vunpack.c.h.b16 %v522
      %v2142 = vunpack.c.l.b16 %v523
      %v2143 = vunpack.c.h.b16 %v523
      %v2144 = vunpack.c.l.b16 %v524
      %v2145 = vunpack.c.h.b16 %v524
      %v2146 = vunpack.c.l.b16 %v525
      %v2147 = vunpack.c.h.b16 %v525
      %v2148 = vunpack.c.l.b16 %v526
      %v2149 = vunpack.c.h.b16 %v526
      %v2150 = vunpack.c.l.b16 %v527
      %v2151 = vunpack.c.h.b16 %v527
      %v2152 = vunpack.c.l.b16 %v528
      %v2153 = vunpack.c.h.b16 %v528
      %v2154 = vunpack.c.l.b16 %v529
      %v2155 = vunpack.c.h.b16 %v529
      %v2156 = vunpack.c.l.b16 %v530
      %v2157 = vunpack.c.h.b16 %v530
      %v2158 = vunpack.c.l.b16 %v531
      %v2159 = vunpack.c.h.b16 %v531
      %v2160 = vunpack.c.l.b16 %v532
      %v2161 = vunpack.c.h.b16 %v532
      %v2162 = vunpack.c.l.b16 %v533
      %v2163 = vunpack.c.h.b16 %v533
      %v2164 = vunpack.c.l.b16 %v534
      %v2165 = vunpack.c.h.b16 %v534
      %v2166 = vunpack.c.l.b16 %v535
      %v2167 = vunpack.c.h.b16 %v535
      %v2168 = vunpack.c.l.b16 %v536
      %v2169 = vunpack.c.h.b16 %v536
      %v2170 = vunpack.c.l.b16 %v537
      %v2171 = vunpack.c.h.b16 %v537
      %v2172 = vunpack.c.l.b16 %v538
      %v2173 = vunpack.c.h.b16 %v538
      %v2174 = vunpack.c.l.b16 %v539
      %v2175 = vunpack.c.h.b16 %v539
      %v2176 = vunpack.c.l.b16 %v540
      %v2177 = vunpack.c.h.b16 %v540
      %v2178 = vunpack.c.l.b16 %v541
      %v2179 = vunpack.c.h.b16 %v541
      %v2180 = vunpack.c.l.b16 %v542
      %v2181 = vunpack.c.h.b16 %v542
      %v2182 = vunpack.c.l.b16 %v543
      %v2183 = vunpack.c.h.b16 %v543
      %v2184 = vunpack.c.l.b16 %v544
      %v2185 = vunpack.c.h.b16 %v544
      %v2186 = vunpack.c.l.b16 %v545
      %v2187 = vunpack.c.h.b16 %v545
      %v2188 = vunpack.c.l.b16 %v546
      %v2189 = vunpack.c.h.b16 %v546
      %v2190 = vunpack.c.l.b16 %v547
      %v2191 = vunpack.c.h.b16 %v547
      %v2192 = vunpack.c.l.b16 %v548
      %v2193 = vunpack.c.h.b16 %v548
      %v2194 = vunpack.c.l.b16 %v549
      %v2195 = vunpack.c.h.b16 %v549
      %v2196 = vunpack.c.l.b16 %v550
      %v2197 = vunpack.c.h.b16 %v550
      %v2198 = vunpack.c.l.b16 %v551
      %v2199 = vunpack.c.h.b16 %v551
      %v2200 = vunpack.c.l.b16 %v552
      %v2201 = vunpack.c.h.b16 %v552
      %v2202 = vunpack.c.l.b16 %v553
      %v2203 = vunpack.c.h.b16 %v553
      %v2204 = vunpack.c.l.b16 %v554
      %v2205 = vunpack.c.h.b16 %v554
      %v2206 = vunpack.c.l.b16 %v555
      %v2207 = vunpack.c.h.b16 %v555
      %v2208 = vunpack.c.l.b16 %v556
      %v2209 = vunpack.c.h.b16 %v556
      %v2210 = vunpack.c.l.b16 %v557
      %v2211 = vunpack.c.h.b16 %v557
      %v2212 = vunpack.c.l.b16 %v558
      %v2213 = vunpack.c.h.b16 %v558
      %v2214 = vunpack.c.l.b16 %v559
      %v2215 = vunpack.c.h.b16 %v559
      %v2216 = vunpack.c.l.b16 %v560
      %v2217 = vunpack.c.h.b16 %v560
      %v2218 = vunpack.c.l.b16 %v561
      %v2219 = vunpack.c.h.b16 %v561
      %v2220 = vunpack.c.l.b16 %v562
      %v2221 = vunpack.c.h.b16 %v562
      %v2222 = vunpack.c.l.b16 %v563
      %v2223 = vunpack.c.h.b16 %v563
      %v2224 = vunpack.c.l.b16 %v564
      %v2225 = vunpack.c.h.b16 %v564
      %v2226 = vunpack.c.l.b16 %v565
      %v2227 = vunpack.c.h.b16 %v565
      %v2228 = vunpack.c.l.b16 %v566
      %v2229 = vunpack.c.h.b16 %v566
      %v2230 = vunpack.c.l.b16 %v567
      %v2231 = vunpack.c.h.b16 %v567
      %v2232 = vunpack.c.l.b16 %v568
      %v2233 = vunpack.c.h.b16 %v568
      %v2234 = vunpack.c.l.b16 %v569
      %v2235 = vunpack.c.h.b16 %v569
      %v2236 = vunpack.c.l.b16 %v570
      %v2237 = vunpack.c.h.b16 %v570
      %v2238 = vunpack.c.l.b16 %v571
      %v2239 = vunpack.c.h.b16 %v571
      %v2240 = vunpack.c.l.b16 %v572
      %v2241 = vunpack.c.h.b16 %v572
      %v2242 = vunpack.c.l.b16 %v573
      %v2243 = vunpack.c.h.b16 %v573
      %v2244 = vunpack.c.l.b16 %v574
      %v2245 = vunpack.c.h.b16 %v574
      %v2246 = vunpack.c.l.b16 %v575
      %v2247 = vunpack.c.h.b16 %v575
      %v2248 = vunpack.c.l.b16 %v576
      %v2249 = vunpack.c.h.b16 %v576
      %v2250 = vunpack.c.l.b16 %v577
      %v2251 = vunpack.c.h.b16 %v577
      %v2252 = vunpack.c.l.b16 %v578
      %v2253 = vunpack.c.h.b16 %v578
      %v2254 = vunpack.c.l.b16 %v579
      %v2255 = vunpack.c.h.b16 %v579
      %v2256 = vunpack.c.l.b16 %v580
      %v2257 = vunpack.c.h.b16 %v580
      %v2258 = vunpack.c.l.b16 %v581
      %v2259 = vunpack.c.h.b16 %v581
      %v2260 = vunpack.c.l.b16 %v582
      %v2261 = vunpack.c.h.b16 %v582
      %v2262 = vunpack.c.l.b16 %v583
      %v2263 = vunpack.c.h.b16 %v583
      %v2264 = vunpack.c.l.b16 %v584
      %v2265 = vunpack.c.h.b16 %v584
      %v2266 = vunpack.c.l.b16 %v585
      %v2267 = vunpack.c.h.b16 %v585
      %v2268 = vunpack.c.l.b16 %v586
      %v2269 = vunpack.c.h.b16 %v586
      %v2270 = vunpack.c.l.b16 %v587
      %v2271 = vunpack.c.h.b16 %v587
      %v2272 = vunpack.c.l.b16 %v588
      %v2273 = vunpack.c.h.b16 %v588
      %v2274 = vunpack.c.l.b16 %v589
      %v2275 = vunpack.c.h.b16 %v589
      %v2276 = vunpack.c.l.b16 %v590
      %v2277 = vunpack.c.h.b16 %v590
      %v2278 = vunpack.c.l.b16 %v591
      %v2279 = vunpack.c.h.b16 %v591
      %v2280 = vunpack.c.l.b16 %v592
      %v2281 = vunpack.c.h.b16 %v592
      %v2282 = vunpack.c.l.b16 %v593
      %v2283 = vunpack.c.h.b16 %v593
      %v2284 = vunpack.c.l.b16 %v594
      %v2285 = vunpack.c.h.b16 %v594
      %v2286 = vunpack.c.l.b16 %v595
      %v2287 = vunpack.c.h.b16 %v595
      %v2288 = vunpack.c.l.b16 %v596
      %v2289 = vunpack.c.h.b16 %v596
      %v2290 = vunpack.c.l.b16 %v597
      %v2291 = vunpack.c.h.b16 %v597
      %v2292 = vunpack.c.l.b16 %v598
      %v2293 = vunpack.c.h.b16 %v598
      %v2294 = vunpack.c.l.b16 %v599
      %v2295 = vunpack.c.h.b16 %v599
      %v2296 = vunpack.c.l.b16 %v600
      %v2297 = vunpack.c.h.b16 %v600
      %v2298 = vunpack.c.l.b16 %v601
      %v2299 = vunpack.c.h.b16 %v601
      %v2300 = vunpack.c.l.b16 %v602
      %v2301 = vunpack.c.h.b16 %v602
      %v2302 = vunpack.c.l.b16 %v603
      %v2303 = vunpack.c.h.b16 %v603
      %v2304 = vunpack.c.l.b16 %v604
      %v2305 = vunpack.c.h.b16 %v604
      %v2306 = vunpack.c.l.b16 %v605
      %v2307 = vunpack.c.h.b16 %v605
      %v2308 = vunpack.c.l.b16 %v606
      %v2309 = vunpack.c.h.b16 %v606
      %v2310 = vunpack.c.l.b16 %v607
      %v2311 = vunpack.c.h.b16 %v607
      %v2312 = vunpack.c.l.b16 %v608
      %v2313 = vunpack.c.h.b16 %v608
      %v2314 = vunpack.c.l.b16 %v609
      %v2315 = vunpack.c.h.b16 %v609
      %v2316 = vunpack.c.l.b16 %v610
      %v2317 = vunpack.c.h.b16 %v610
      %v2318 = vunpack.c.l.b16 %v611
      %v2319 = vunpack.c.h.b16 %v611
      %v2320 = vunpack.c.l.b16 %v612
      %v2321 = vunpack.c.h.b16 %v612
      %v2322 = vunpack.c.l.b16 %v613
      %v2323 = vunpack.c.h.b16 %v613
      %v2324 = vunpack.c.l.b16 %v614
      %v2325 = vunpack.c.h.b16 %v614
      %v2326 = vunpack.c.l.b16 %v615
      %v2327 = vunpack.c.h.b16 %v615
      %v2328 = vunpack.c.l.b16 %v616
      %v2329 = vunpack.c.h.b16 %v616
      %v2330 = vunpack.c.l.b16 %v617
      %v2331 = vunpack.c.h.b16 %v617
      %v2332 = vunpack.c.l.b16 %v618
      %v2333 = vunpack.c.h.b16 %v618
      %v2334 = vunpack.c.l.b16 %v619
      %v2335 = vunpack.c.h.b16 %v619
      %v2336 = vunpack.c.l.b16 %v620
      %v2337 = vunpack.c.h.b16 %v620
      %v2338 = vunpack.c.l.b16 %v621
      %v2339 = vunpack.c.h.b16 %v621
      %v2340 = vunpack.c.l.b16 %v622
      %v2341 = vunpack.c.h.b16 %v622
      %v2342 = vunpack.c.l.b16 %v623
      %v2343 = vunpack.c.h.b16 %v623
      %v2344 = vunpack.c.l.b16 %v624
      %v2345 = vunpack.c.h.b16 %v624
      %v2346 = vunpack.c.l.b16 %v625
      %v2347 = vunpack.c.h.b16 %v625
      %v2348 = vunpack.c.l.b16 %v626
      %v2349 = vunpack.c.h.b16 %v626
      %v2350 = vunpack.c.l.b16 %v627
      %v2351 = vunpack.c.h.b16 %v627
      %v2352 = vunpack.c.l.b16 %v628
      %v2353 = vunpack.c.h.b16 %v628
      %v2354 = vunpack.c.l.b16 %v629
      %v2355 = vunpack.c.h.b16 %v629
      %v2356 = vunpack.c.l.b16 %v630
      %v2357 = vunpack.c.h.b16 %v630
      %v2358 = vunpack.c.l.b16 %v631
      %v2359 = vunpack.c.h.b16 %v631
      %v2360 = vunpack.c.l.b16 %v632
      %v2361 = vunpack.c.h.b16 %v632
      %v2362 = vunpack.c.l.b16 %v633
      %v2363 = vunpack.c.h.b16 %v633
      %v2364 = vunpack.c.l.b16 %v634
      %v2365 = vunpack.c.h.b16 %v634
      %v2366 = vunpack.c.l.b16 %v635
      %v2367 = vunpack.c.h.b16 %v635
      %v2368 = vpack.c.b16 %v1360, %v1344
      %v2369 = vpack.c.b16 %v1361, %v1345
      %v2370 = vpack.c.b16 %v1362, %v1346
      %v2371 = vpack.c.b16 %v1363, %v1347
      %v2372 = vpack.c.b16 %v1364, %v1348
      %v2373 = vpack.c.b16 %v1365, %v1349
      %v2374 = vpack.c.b16 %v1366, %v1350
      %v2375 = vpack.c.b16 %v1367, %v1351
      %v2376 = vpack.c.b16 %v1368, %v1352
      %v2377 = vpack.c.b16 %v1369, %v1353
      %v2378 = vpack.c.b16 %v1370, %v1354
      %v2379 = vpack.c.b16 %v1371, %v1355
      %v2380 = vpack.c.b16 %v1372, %v1356
      %v2381 = vpack.c.b16 %v1373, %v1357
      %v2382 = vpack.c.b16 %v1374, %v1358
      %v2383 = vpack.c.b16 %v1375, %v1359
      %v2384 = vpack.c.b16 %v1392, %v1376
      %v2385 = vpack.c.b16 %v1393, %v1377
      %v2386 = vpack.c.b16 %v1394, %v1378
      %v2387 = vpack.c.b16 %v1395, %v1379
      %v2388 = vpack.c.b16 %v1396, %v1380
      %v2389 = vpack.c.b16 %v1397, %v1381
      %v2390 = vpack.c.b16 %v1398, %v1382
      %v2391 = vpack.c.b16 %v1399, %v1383
      %v2392 = vpack.c.b16 %v1400, %v1384
      %v2393 = vpack.c.b16 %v1401, %v1385
      %v2394 = vpack.c.b16 %v1402, %v1386
      %v2395 = vpack.c.b16 %v1403, %v1387
      %v2396 = vpack.c.b16 %v1404, %v1388
      %v2397 = vpack.c.b16 %v1405, %v1389
      %v2398 = vpack.c.b16 %v1406, %v1390
      %v2399 = vpack.c.b16 %v1407, %v1391
      %v2400 = vpack.c.b16 %v1424, %v1408
      %v2401 = vpack.c.b16 %v1425, %v1409
      %v2402 = vpack.c.b16 %v1426, %v1410
      %v2403 = vpack.c.b16 %v1427, %v1411
      %v2404 = vpack.c.b16 %v1428, %v1412
      %v2405 = vpack.c.b16 %v1429, %v1413
      %v2406 = vpack.c.b16 %v1430, %v1414
      %v2407 = vpack.c.b16 %v1431, %v1415
      %v2408 = vpack.c.b16 %v1432, %v1416
      %v2409 = vpack.c.b16 %v1433, %v1417
      %v2410 = vpack.c.b16 %v1434, %v1418
      %v2411 = vpack.c.b16 %v1435, %v1419
      %v2412 = vpack.c.b16 %v1436, %v1420
      %v2413 = vpack.c.b16 %v1437, %v1421
      %v2414 = vpack.c.b16 %v1438, %v1422
      %v2415 = vpack.c.b16 %v1439, %v1423
      %v2416 = vpack.c.b16 %v1456, %v1440
      %v2417 = vpack.c.b16 %v1457, %v1441
      %v2418 = vpack.c.b16 %v1458, %v1442
      %v2419 = vpack.c.b16 %v1459, %v1443
      %v2420 = vpack.c.b16 %v1460, %v1444
      %v2421 = vpack.c.b16 %v1461, %v1445
      %v2422 = vpack.c.b16 %v1462, %v1446
      %v2423 = vpack.c.b16 %v1463, %v1447
      %v2424 = vpack.c.b16 %v1464, %v1448
      %v2425 = vpack.c.b16 %v1465, %v1449
      %v2426 = vpack.c.b16 %v1466, %v1450
      %v2427 = vpack.c.b16 %v1467, %v1451
      %v2428 = vpack.c.b16 %v1468, %v1452
      %v2429 = vpack.c.b16 %v1469, %v1453
      %v2430 = vpack.c.b16 %v1470, %v1454
      %v2431 = vpack.c.b16 %v1471, %v1455
      %v2432 = vpack.c.b16 %v1488, %v1472
      %v2433 = vpack.c.b16 %v1489, %v1473
      %v2434 = vpack.c.b16 %v1490, %v1474
      %v2435 = vpack.c.b16 %v1491, %v1475
      %v2436 = vpack.c.b16 %v1492, %v1476
      %v2437 = vpack.c.b16 %v1493, %v1477
      %v2438 = vpack.c.b16 %v1494, %v1478
      %v2439 = vpack.c.b16 %v1495, %v1479
      %v2440 = vpack.c.b16 %v1496, %v1480
      %v2441 = vpack.c.b16 %v1497, %v1481
      %v2442 = vpack.c.b16 %v1498, %v1482
      %v2443 = vpack.c.b16 %v1499, %v1483
      %v2444 = vpack.c.b16 %v1500, %v1484
      %v2445 = vpack.c.b16 %v1501, %v1485
      %v2446 = vpack.c.b16 %v1502, %v1486
      %v2447 = vpack.c.b16 %v1503, %v1487
      %v2448 = vpack.c.b16 %v1520, %v1504
      %v2449 = vpack.c.b16 %v1521, %v1505
      %v2450 = vpack.c.b16 %v1522, %v1506
      %v2451 = vpack.c.b16 %v1523, %v1507
      %v2452 = vpack.c.b16 %v1524, %v1508
      %v2453 = vpack.c.b16 %v1525, %v1509
      %v2454 = vpack.c.b16 %v1526, %v1510
      %v2455 = vpack.c.b16 %v1527, %v1511
      %v2456 = vpack.c.b16 %v1528, %v1512
      %v2457 = vpack.c.b16 %v1529, %v1513
      %v2458 = vpack.c.b16 %v1530, %v1514
      %v2459 = vpack.c.b16 %v1531, %v1515
      %v2460 = vpack.c.b16 %v1532, %v1516
      %v2461 = vpack.c.b16 %v1533, %v1517
      %v2462 = vpack.c.b16 %v1534, %v1518
      %v2463 = vpack.c.b16 %v1535, %v1519
      %v2464 = vpack.c.b16 %v1552, %v1536
      %v2465 = vpack.c.b16 %v1553, %v1537
      %v2466 = vpack.c.b16 %v1554, %v1538
      %v2467 = vpack.c.b16 %v1555, %v1539
      %v2468 = vpack.c.b16 %v1556, %v1540
      %v2469 = vpack.c.b16 %v1557, %v1541
      %v2470 = vpack.c.b16 %v1558, %v1542
      %v2471 = vpack.c.b16 %v1559, %v1543
      %v2472 = vpack.c.b16 %v1560, %v1544
      %v2473 = vpack.c.b16 %v1561, %v1545
      %v2474 = vpack.c.b16 %v1562, %v1546
      %v2475 = vpack.c.b16 %v1563, %v1547
      %v2476 = vpack.c.b16 %v1564, %v1548
      %v2477 = vpack.c.b16 %v1565, %v1549
      %v2478 = vpack.c.b16 %v1566, %v1550
      %v2479 = vpack.c.b16 %v1567, %v1551
      %v2480 = vpack.c.b16 %v1584, %v1568
      %v2481 = vpack.c.b16 %v1585, %v1569
      %v2482 = vpack.c.b16 %v1586, %v1570
      %v2483 = vpack.c.b16 %v1587, %v1571
      %v2484 = vpack.c.b16 %v1588, %v1572
      %v2485 = vpack.c.b16 %v1589, %v1573
      %v2486 = vpack.c.b16 %v1590, %v1574
      %v2487 = vpack.c.b16 %v1591, %v1575
      %v2488 = vpack.c.b16 %v1592, %v1576
      %v2489 = vpack.c.b16 %v1593, %v1577
      %v2490 = vpack.c.b16 %v1594, %v1578
      %v2491 = vpack.c.b16 %v1595, %v1579
      %v2492 = vpack.c.b16 %v1596, %v1580
      %v2493 = vpack.c.b16 %v1597, %v1581
      %v2494 = vpack.c.b16 %v1598, %v1582
      %v2495 = vpack.c.b16 %v1599, %v1583
      %v2496 = vpack.c.b16 %v1616, %v1600
      %v2497 = vpack.c.b16 %v1617, %v1601
      %v2498 = vpack.c.b16 %v1618, %v1602
      %v2499 = vpack.c.b16 %v1619, %v1603
      %v2500 = vpack.c.b16 %v1620, %v1604
      %v2501 = vpack.c.b16 %v1621, %v1605
      %v2502 = vpack.c.b16 %v1622, %v1606
      %v2503 = vpack.c.b16 %v1623, %v1607
      %v2504 = vpack.c.b16 %v1624, %v1608
      %v2505 = vpack.c.b16 %v1625, %v1609
      %v2506 = vpack.c.b16 %v1626, %v1610
      %v2507 = vpack.c.b16 %v1627, %v1611
      %v2508 = vpack.c.b16 %v1628, %v1612
      %v2509 = vpack.c.b16 %v1629, %v1613
      %v2510 = vpack.c.b16 %v1630, %v1614
      %v2511 = vpack.c.b16 %v1631, %v1615
      %v2512 = vpack.c.b16 %v1648, %v1632
      %v2513 = vpack.c.b16 %v1649, %v1633
      %v2514 = vpack.c.b16 %v1650, %v1634
      %v2515 = vpack.c.b16 %v1651, %v1635
      %v2516 = vpack.c.b16 %v1652, %v1636
      %v2517 = vpack.c.b16 %v1653, %v1637
      %v2518 = vpack.c.b16 %v1654, %v1638
      %v2519 = vpack.c.b16 %v1655, %v1639
      %v2520 = vpack.c.b16 %v1656, %v1640
      %v2521 = vpack.c.b16 %v1657, %v1641
      %v2522 = vpack.c.b16 %v1658, %v1642
      %v2523 = vpack.c.b16 %v1659, %v1643
      %v2524 = vpack.c.b16 %v1660, %v1644
      %v2525 = vpack.c.b16 %v1661, %v1645
      %v2526 = vpack.c.b16 %v1662, %v1646
      %v2527 = vpack.c.b16 %v1663, %v1647
      %v2528 = vpack.c.b16 %v1680, %v1664
      %v2529 = vpack.c.b16 %v1681, %v1665
      %v2530 = vpack.c.b16 %v1682, %v1666
      %v2531 = vpack.c.b16 %v1683, %v1667
      %v2532 = vpack.c.b16 %v1684, %v1668
      %v2533 = vpack.c.b16 %v1685, %v1669
      %v2534 = vpack.c.b16 %v1686, %v1670
      %v2535 = vpack.c.b16 %v1687, %v1671
      %v2536 = vpack.c.b16 %v1688, %v1672
      %v2537 = vpack.c.b16 %v1689, %v1673
      %v2538 = vpack.c.b16 %v1690, %v1674
      %v2539 = vpack.c.b16 %v1691, %v1675
      %v2540 = vpack.c.b16 %v1692, %v1676
      %v2541 = vpack.c.b16 %v1693, %v1677
      %v2542 = vpack.c.b16 %v1694, %v1678
      %v2543 = vpack.c.b16 %v1695, %v1679
      %v2544 = vpack.c.b16 %v1712, %v1696
      %v2545 = vpack.c.b16 %v1713, %v1697
      %v2546 = vpack.c.b16 %v1714, %v1698
      %v2547 = vpack.c.b16 %v1715, %v1699
      %v2548 = vpack.c.b16 %v1716, %v1700
      %v2549 = vpack.c.b16 %v1717, %v1701
      %v2550 = vpack.c.b16 %v1718, %v1702
      %v2551 = vpack.c.b16 %v1719, %v1703
      %v2552 = vpack.c.b16 %v1720, %v1704
      %v2553 = vpack.c.b16 %v1721, %v1705
      %v2554 = vpack.c.b16 %v1722, %v1706
      %v2555 = vpack.c.b16 %v1723, %v1707
      %v2556 = vpack.c.b16 %v1724, %v1708
      %v2557 = vpack.c.b16 %v1725, %v1709
      %v2558 = vpack.c.b16 %v1726, %v1710
      %v2559 = vpack.c.b16 %v1727, %v1711
      %v2560 = vpack.c.b16 %v1744, %v1728
      %v2561 = vpack.c.b16 %v1745, %v1729
      %v2562 = vpack.c.b16 %v1746, %v1730
      %v2563 = vpack.c.b16 %v1747, %v1731
      %v2564 = vpack.c.b16 %v1748, %v1732
      %v2565 = vpack.c.b16 %v1749, %v1733
      %v2566 = vpack.c.b16 %v1750, %v1734
      %v2567 = vpack.c.b16 %v1751, %v1735
      %v2568 = vpack.c.b16 %v1752, %v1736
      %v2569 = vpack.c.b16 %v1753, %v1737
      %v2570 = vpack.c.b16 %v1754, %v1738
      %v2571 = vpack.c.b16 %v1755, %v1739
      %v2572 = vpack.c.b16 %v1756, %v1740
      %v2573 = vpack.c.b16 %v1757, %v1741
      %v2574 = vpack.c.b16 %v1758, %v1742
      %v2575 = vpack.c.b16 %v1759, %v1743
      %v2576 = vpack.c.b16 %v1776, %v1760
      %v2577 = vpack.c.b16 %v1777, %v1761
      %v2578 = vpack.c.b16 %v1778, %v1762
      %v2579 = vpack.c.b16 %v1779, %v1763
      %v2580 = vpack.c.b16 %v1780, %v1764
      %v2581 = vpack.c.b16 %v1781, %v1765
      %v2582 = vpack.c.b16 %v1782, %v1766
      %v2583 = vpack.c.b16 %v1783, %v1767
      %v2584 = vpack.c.b16 %v1784, %v1768
      %v2585 = vpack.c.b16 %v1785, %v1769
      %v2586 = vpack.c.b16 %v1786, %v1770
      %v2587 = vpack.c.b16 %v1787, %v1771
      %v2588 = vpack.c.b16 %v1788, %v1772
      %v2589 = vpack.c.b16 %v1789, %v1773
      %v2590 = vpack.c.b16 %v1790, %v1774
      %v2591 = vpack.c.b16 %v1791, %v1775
      %v2592 = vpack.c.b16 %v1808, %v1792
      %v2593 = vpack.c.b16 %v1809, %v1793
      %v2594 = vpack.c.b16 %v1810, %v1794
      %v2595 = vpack.c.b16 %v1811, %v1795
      %v2596 = vpack.c.b16 %v1812, %v1796
      %v2597 = vpack.c.b16 %v1813, %v1797
      %v2598 = vpack.c.b16 %v1814, %v1798
      %v2599 = vpack.c.b16 %v1815, %v1799
      %v2600 = vpack.c.b16 %v1816, %v1800
      %v2601 = vpack.c.b16 %v1817, %v1801
      %v2602 = vpack.c.b16 %v1818, %v1802
      %v2603 = vpack.c.b16 %v1819, %v1803
      %v2604 = vpack.c.b16 %v1820, %v1804
      %v2605 = vpack.c.b16 %v1821, %v1805
      %v2606 = vpack.c.b16 %v1822, %v1806
      %v2607 = vpack.c.b16 %v1823, %v1807
      %v2608 = vpack.c.b16 %v1840, %v1824
      %v2609 = vpack.c.b16 %v1841, %v1825
      %v2610 = vpack.c.b16 %v1842, %v1826
      %v2611 = vpack.c.b16 %v1843, %v1827
      %v2612 = vpack.c.b16 %v1844, %v1828
      %v2613 = vpack.c.b16 %v1845, %v1829
      %v2614 = vpack.c.b16 %v1846, %v1830
      %v2615 = vpack.c.b16 %v1847, %v1831
      %v2616 = vpack.c.b16 %v1848, %v1832
      %v2617 = vpack.c.b16 %v1849, %v1833
      %v2618 = vpack.c.b16 %v1850, %v1834
      %v2619 = vpack.c.b16 %v1851, %v1835
      %v2620 = vpack.c.b16 %v1852, %v1836
      %v2621 = vpack.c.b16 %v1853, %v1837
      %v2622 = vpack.c.b16 %v1854, %v1838
      %v2623 = vpack.c.b16 %v1855, %v1839
      %v2624 = vpack.c.b16 %v1872, %v1856
      %v2625 = vpack.c.b16 %v1873, %v1857
      %v2626 = vpack.c.b16 %v1874, %v1858
      %v2627 = vpack.c.b16 %v1875, %v1859
      %v2628 = vpack.c.b16 %v1876, %v1860
      %v2629 = vpack.c.b16 %v1877, %v1861
      %v2630 = vpack.c.b16 %v1878, %v1862
      %v2631 = vpack.c.b16 %v1879, %v1863
      %v2632 = vpack.c.b16 %v1880, %v1864
      %v2633 = vpack.c.b16 %v1881, %v1865
      %v2634 = vpack.c.b16 %v1882, %v1866
      %v2635 = vpack.c.b16 %v1883, %v1867
      %v2636 = vpack.c.b16 %v1884, %v1868
      %v2637 = vpack.c.b16 %v1885, %v1869
      %v2638 = vpack.c.b16 %v1886, %v1870
      %v2639 = vpack.c.b16 %v1887, %v1871
      %v2640 = vpack.c.b16 %v1904, %v1888
      %v2641 = vpack.c.b16 %v1905, %v1889
      %v2642 = vpack.c.b16 %v1906, %v1890
      %v2643 = vpack.c.b16 %v1907, %v1891
      %v2644 = vpack.c.b16 %v1908, %v1892
      %v2645 = vpack.c.b16 %v1909, %v1893
      %v2646 = vpack.c.b16 %v1910, %v1894
      %v2647 = vpack.c.b16 %v1911, %v1895
      %v2648 = vpack.c.b16 %v1912, %v1896
      %v2649 = vpack.c.b16 %v1913, %v1897
      %v2650 = vpack.c.b16 %v1914, %v1898
      %v2651 = vpack.c.b16 %v1915, %v1899
      %v2652 = vpack.c.b16 %v1916, %v1900
      %v2653 = vpack.c.b16 %v1917, %v1901
      %v2654 = vpack.c.b16 %v1918, %v1902
      %v2655 = vpack.c.b16 %v1919, %v1903
      %v2656 = vpack.c.b16 %v1936, %v1920
      %v2657 = vpack.c.b16 %v1937, %v1921
      %v2658 = vpack.c.b16 %v1938, %v1922
      %v2659 = vpack.c.b16 %v1939, %v1923
      %v2660 = vpack.c.b16 %v1940, %v1924
      %v2661 = vpack.c.b16 %v1941, %v1925
      %v2662 = vpack.c.b16 %v1942, %v1926
      %v2663 = vpack.c.b16 %v1943, %v1927
      %v2664 = vpack.c.b16 %v1944, %v1928
      %v2665 = vpack.c.b16 %v1945, %v1929
      %v2666 = vpack.c.b16 %v1946, %v1930
      %v2667 = vpack.c.b16 %v1947, %v1931
      %v2668 = vpack.c.b16 %v1948, %v1932
      %v2669 = vpack.c.b16 %v1949, %v1933
      %v2670 = vpack.c.b16 %v1950, %v1934
      %v2671 = vpack.c.b16 %v1951, %v1935
      %v2672 = vpack.c.b16 %v1968, %v1952
      %v2673 = vpack.c.b16 %v1969, %v1953
      %v2674 = vpack.c.b16 %v1970, %v1954
      %v2675 = vpack.c.b16 %v1971, %v1955
      %v2676 = vpack.c.b16 %v1972, %v1956
      %v2677 = vpack.c.b16 %v1973, %v1957
      %v2678 = vpack.c.b16 %v1974, %v1958
      %v2679 = vpack.c.b16 %v1975, %v1959
      %v2680 = vpack.c.b16 %v1976, %v1960
      %v2681 = vpack.c.b16 %v1977, %v1961
      %v2682 = vpack.c.b16 %v1978, %v1962
      %v2683 = vpack.c.b16 %v1979, %v1963
      %v2684 = vpack.c.b16 %v1980, %v1964
      %v2685 = vpack.c.b16 %v1981, %v1965
      %v2686 = vpack.c.b16 %v1982, %v1966
      %v2687 = vpack.c.b16 %v1983, %v1967
      %v2688 = vpack.c.b16 %v2000, %v1984
      %v2689 = vpack.c.b16 %v2001, %v1985
      %v2690 = vpack.c.b16 %v2002, %v1986
      %v2691 = vpack.c.b16 %v2003, %v1987
      %v2692 = vpack.c.b16 %v2004, %v1988
      %v2693 = vpack.c.b16 %v2005, %v1989
      %v2694 = vpack.c.b16 %v2006, %v1990
      %v2695 = vpack.c.b16 %v2007, %v1991
      %v2696 = vpack.c.b16 %v2008, %v1992
      %v2697 = vpack.c.b16 %v2009, %v1993
      %v2698 = vpack.c.b16 %v2010, %v1994
      %v2699 = vpack.c.b16 %v2011, %v1995
      %v2700 = vpack.c.b16 %v2012, %v1996
      %v2701 = vpack.c.b16 %v2013, %v1997
      %v2702 = vpack.c.b16 %v2014, %v1998
      %v2703 = vpack.c.b16 %v2015, %v1999
      %v2704 = vpack.c.b16 %v2032, %v2016
      %v2705 = vpack.c.b16 %v2033, %v2017
      %v2706 = vpack.c.b16 %v2034, %v2018
      %v2707 = vpack.c.b16 %v2035, %v2019
      %v2708 = vpack.c.b16 %v2036, %v2020
      %v2709 = vpack.c.b16 %v2037, %v2021
      %v2710 = vpack.c.b16 %v2038, %v2022
      %v2711 = vpack.c.b16 %v2039, %v2023
      %v2712 = vpack.c.b16 %v2040, %v2024
      %v2713 = vpack.c.b16 %v2041, %v2025
      %v2714 = vpack.c.b16 %v2042, %v2026
      %v2715 = vpack.c.b16 %v2043, %v2027
      %v2716 = vpack.c.b16 %v2044, %v2028
      %v2717 = vpack.c.b16 %v2045, %v2029
      %v2718 = vpack.c.b16 %v2046, %v2030
      %v2719 = vpack.c.b16 %v2047, %v2031
      %v2720 = vpack.c.b16 %v2064, %v2048
      %v2721 = vpack.c.b16 %v2065, %v2049
      %v2722 = vpack.c.b16 %v2066, %v2050
      %v2723 = vpack.c.b16 %v2067, %v2051
      %v2724 = vpack.c.b16 %v2068, %v2052
      %v2725 = vpack.c.b16 %v2069, %v2053
      %v2726 = vpack.c.b16 %v2070, %v2054
      %v2727 = vpack.c.b16 %v2071, %v2055
      %v2728 = vpack.c.b16 %v2072, %v2056
      %v2729 = vpack.c.b16 %v2073, %v2057
      %v2730 = vpack.c.b16 %v2074, %v2058
      %v2731 = vpack.c.b16 %v2075, %v2059
      %v2732 = vpack.c.b16 %v2076, %v2060
      %v2733 = vpack.c.b16 %v2077, %v2061
      %v2734 = vpack.c.b16 %v2078, %v2062
      %v2735 = vpack.c.b16 %v2079, %v2063
      %v2736 = vpack.c.b16 %v2096, %v2080
      %v2737 = vpack.c.b16 %v2097, %v2081
      %v2738 = vpack.c.b16 %v2098, %v2082
      %v2739 = vpack.c.b16 %v2099, %v2083
      %v2740 = vpack.c.b16 %v2100, %v2084
      %v2741 = vpack.c.b16 %v2101, %v2085
      %v2742 = vpack.c.b16 %v2102, %v2086
      %v2743 = vpack.c.b16 %v2103, %v2087
      %v2744 = vpack.c.b16 %v2104, %v2088
      %v2745 = vpack.c.b16 %v2105, %v2089
      %v2746 = vpack.c.b16 %v2106, %v2090
      %v2747 = vpack.c.b16 %v2107, %v2091
      %v2748 = vpack.c.b16 %v2108, %v2092
      %v2749 = vpack.c.b16 %v2109, %v2093
      %v2750 = vpack.c.b16 %v2110, %v2094
      %v2751 = vpack.c.b16 %v2111, %v2095
      %v2752 = vpack.c.b16 %v2128, %v2112
      %v2753 = vpack.c.b16 %v2129, %v2113
      %v2754 = vpack.c.b16 %v2130, %v2114
      %v2755 = vpack.c.b16 %v2131, %v2115
      %v2756 = vpack.c.b16 %v2132, %v2116
      %v2757 = vpack.c.b16 %v2133, %v2117
      %v2758 = vpack.c.b16 %v2134, %v2118
      %v2759 = vpack.c.b16 %v2135, %v2119
      %v2760 = vpack.c.b16 %v2136, %v2120
      %v2761 = vpack.c.b16 %v2137, %v2121
      %v2762 = vpack.c.b16 %v2138, %v2122
      %v2763 = vpack.c.b16 %v2139, %v2123
      %v2764 = vpack.c.b16 %v2140, %v2124
      %v2765 = vpack.c.b16 %v2141, %v2125
      %v2766 = vpack.c.b16 %v2142, %v2126
      %v2767 = vpack.c.b16 %v2143, %v2127
      %v2768 = vpack.c.b16 %v2160, %v2144
      %v2769 = vpack.c.b16 %v2161, %v2145
      %v2770 = vpack.c.b16 %v2162, %v2146
      %v2771 = vpack.c.b16 %v2163, %v2147
      %v2772 = vpack.c.b16 %v2164, %v2148
      %v2773 = vpack.c.b16 %v2165, %v2149
      %v2774 = vpack.c.b16 %v2166, %v2150
      %v2775 = vpack.c.b16 %v2167, %v2151
      %v2776 = vpack.c.b16 %v2168, %v2152
      %v2777 = vpack.c.b16 %v2169, %v2153
      %v2778 = vpack.c.b16 %v2170, %v2154
      %v2779 = vpack.c.b16 %v2171, %v2155
      %v2780 = vpack.c.b16 %v2172, %v2156
      %v2781 = vpack.c.b16 %v2173, %v2157
      %v2782 = vpack.c.b16 %v2174, %v2158
      %v2783 = vpack.c.b16 %v2175, %v2159
      %v2784 = vpack.c.b16 %v2192, %v2176
      %v2785 = vpack.c.b16 %v2193, %v2177
      %v2786 = vpack.c.b16 %v2194, %v2178
      %v2787 = vpack.c.b16 %v2195, %v2179
      %v2788 = vpack.c.b16 %v2196, %v2180
      %v2789 = vpack.c.b16 %v2197, %v2181
      %v2790 = vpack.c.b16 %v2198, %v2182
      %v2791 = vpack.c.b16 %v2199, %v2183
      %v2792 = vpack.c.b16 %v2200, %v2184
      %v2793 = vpack.c.b16 %v2201, %v2185
      %v2794 = vpack.c.b16 %v2202, %v2186
      %v2795 = vpack.c.b16 %v2203, %v2187
      %v2796 = vpack.c.b16 %v2204, %v2188
      %v2797 = vpack.c.b16 %v2205, %v2189
      %v2798 = vpack.c.b16 %v2206, %v2190
      %v2799 = vpack.c.b16 %v2207, %v2191
      %v2800 = vpack.c.b16 %v2224, %v2208
      %v2801 = vpack.c.b16 %v2225, %v2209
      %v2802 = vpack.c.b16 %v2226, %v2210
      %v2803 = vpack.c.b16 %v2227, %v2211
      %v2804 = vpack.c.b16 %v2228, %v2212
      %v2805 = vpack.c.b16 %v2229, %v2213
      %v2806 = vpack.c.b16 %v2230, %v2214
      %v2807 = vpack.c.b16 %v2231, %v2215
      %v2808 = vpack.c.b16 %v2232, %v2216
      %v2809 = vpack.c.b16 %v2233, %v2217
      %v2810 = vpack.c.b16 %v2234, %v2218
      %v2811 = vpack.c.b16 %v2235, %v2219
      %v2812 = vpack.c.b16 %v2236, %v2220
      %v2813 = vpack.c.b16 %v2237, %v2221
      %v2814 = vpack.c.b16 %v2238, %v2222
      %v2815 = vpack.c.b16 %v2239, %v2223
      %v2816 = vpack.c.b16 %v2256, %v2240
      %v2817 = vpack.c.b16 %v2257, %v2241
      %v2818 = vpack.c.b16 %v2258, %v2242
      %v2819 = vpack.c.b16 %v2259, %v2243
      %v2820 = vpack.c.b16 %v2260, %v2244
      %v2821 = vpack.c.b16 %v2261, %v2245
      %v2822 = vpack.c.b16 %v2262, %v2246
      %v2823 = vpack.c.b16 %v2263, %v2247
      %v2824 = vpack.c.b16 %v2264, %v2248
      %v2825 = vpack.c.b16 %v2265, %v2249
      %v2826 = vpack.c.b16 %v2266, %v2250
      %v2827 = vpack.c.b16 %v2267, %v2251
      %v2828 = vpack.c.b16 %v2268, %v2252
      %v2829 = vpack.c.b16 %v2269, %v2253
      %v2830 = vpack.c.b16 %v2270, %v2254
      %v2831 = vpack.c.b16 %v2271, %v2255
      %v2832 = vpack.c.b16 %v2288, %v2272
      %v2833 = vpack.c.b16 %v2289, %v2273
      %v2834 = vpack.c.b16 %v2290, %v2274
      %v2835 = vpack.c.b16 %v2291, %v2275
      %v2836 = vpack.c.b16 %v2292, %v2276
      %v2837 = vpack.c.b16 %v2293, %v2277
      %v2838 = vpack.c.b16 %v2294, %v2278
      %v2839 = vpack.c.b16 %v2295, %v2279
      %v2840 = vpack.c.b16 %v2296, %v2280
      %v2841 = vpack.c.b16 %v2297, %v2281
      %v2842 = vpack.c.b16 %v2298, %v2282
      %v2843 = vpack.c.b16 %v2299, %v2283
      %v2844 = vpack.c.b16 %v2300, %v2284
      %v2845 = vpack.c.b16 %v2301, %v2285
      %v2846 = vpack.c.b16 %v2302, %v2286
      %v2847 = vpack.c.b16 %v2303, %v2287
      %v2848 = vpack.c.b16 %v2320, %v2304
      %v2849 = vpack.c.b16 %v2321, %v2305
      %v2850 = vpack.c.b16 %v2322, %v2306
      %v2851 = vpack.c.b16 %v2323, %v2307
      %v2852 = vpack.c.b16 %v2324, %v2308
      %v2853 = vpack.c.b16 %v2325, %v2309
      %v2854 = vpack.c.b16 %v2326, %v2310
      %v2855 = vpack.c.b16 %v2327, %v2311
      %v2856 = vpack.c.b16 %v2328, %v2312
      %v2857 = vpack.c.b16 %v2329, %v2313
      %v2858 = vpack.c.b16 %v2330, %v2314
      %v2859 = vpack.c.b16 %v2331, %v2315
      %v2860 = vpack.c.b16 %v2332, %v2316
      %v2861 = vpack.c.b16 %v2333, %v2317
      %v2862 = vpack.c.b16 %v2334, %v2318
      %v2863 = vpack.c.b16 %v2335, %v2319
      %v2864 = vpack.c.b16 %v2352, %v2336
      %v2865 = vpack.c.b16 %v2353, %v2337
      %v2866 = vpack.c.b16 %v2354, %v2338
      %v2867 = vpack.c.b16 %v2355, %v2339
      %v2868 = vpack.c.b16 %v2356, %v2340
      %v2869 = vpack.c.b16 %v2357, %v2341
      %v2870 = vpack.c.b16 %v2358, %v2342
      %v2871 = vpack.c.b16 %v2359, %v2343
      %v2872 = vpack.c.b16 %v2360, %v2344
      %v2873 = vpack.c.b16 %v2361, %v2345
      %v2874 = vpack.c.b16 %v2362, %v2346
      %v2875 = vpack.c.b16 %v2363, %v2347
      %v2876 = vpack.c.b16 %v2364, %v2348
      %v2877 = vpack.c.b16 %v2365, %v2349
      %v2878 = vpack.c.b16 %v2366, %v2350
      %v2879 = vpack.c.b16 %v2367, %v2351
      %3392 = vmatprep.subr.bf16.mxu0 %v2481
      %3393 = vmatpush1.bf16.msra.mxu0 %v2480
      %3394 = vmatprep.subr.bf16.mxu0 %v2465
      %3395 = vmatpush1.bf16.msra.mxu0 %v2464
      %3396 = vmatprep.subr.bf16.mxu0 %v2449
      %3397 = vmatpush1.bf16.msra.mxu0 %v2448
      %3398 = vmatprep.subr.bf16.mxu0 %v2433
      %3399 = vmatpush1.bf16.msra.mxu0 %v2432
      %3400 = vmatprep.subr.bf16.mxu0 %v2417
      %3401 = vmatpush1.bf16.msra.mxu0 %v2416
      %3402 = vmatprep.subr.bf16.mxu0 %v2401
      %3403 = vmatpush1.bf16.msra.mxu0 %v2400
      %3404 = vmatprep.subr.bf16.mxu0 %v2385
      %3405 = vmatpush1.bf16.msra.mxu0 %v2384
      %3406 = vmatprep.subr.bf16.mxu0 %v2369
      %3407 = vmatpush1.bf16.msra.mxu0 %v2368
      %3408 = vmatprep.subr.bf16.mxu0 %v2609
      %3409 = vmatpush2.bf16.msra.mxu0 %v2608
      %3410 = vmatprep.subr.bf16.mxu0 %v2593
      %3411 = vmatpush2.bf16.msra.mxu0 %v2592
      %3412 = vmatprep.subr.bf16.mxu0 %v2577
      %3413 = vmatpush2.bf16.msra.mxu0 %v2576
      %3414 = vmatprep.subr.bf16.mxu0 %v2561
      %3415 = vmatpush2.bf16.msra.mxu0 %v2560
      %3416 = vmatprep.subr.bf16.mxu0 %v2545
      %3417 = vmatpush2.bf16.msra.mxu0 %v2544
      %3418 = vmatprep.subr.bf16.mxu0 %v2529
      %3419 = vmatpush2.bf16.msra.mxu0 %v2528
      %3420 = vmatprep.subr.bf16.mxu0 %v2513
      %3421 = vmatpush2.bf16.msra.mxu0 %v2512
      %3422 = vmatprep.subr.bf16.mxu0 %v2497
      %3423 = vmatpush2.bf16.msra.mxu0 %v2496
      %3424 = vmatprep.mubr.bf16.mxu0 %v829
      %3425 = vmatmul.mubr.bf16.gmra.mxu0 %v828
      %v3426 = vpop.f32.mrf.mxu0
      %v3427 = vadd.f32 0.0, %v3426
      %v3428 = vpop.f32.mrf.mxu0
      %v3429 = vadd.f32 0.0, %v3428
      %v3430 = vpop.f32.mrf.mxu0
      %v3431 = vpop.f32.mrf.mxu0
      %3432 = vdwg.mxu0
      %3433 = vmatprep.subr.bf16.mxu0 %v2737
      %3434 = vmatpush1.bf16.msra.mxu0 %v2736
      %3435 = vmatprep.subr.bf16.mxu0 %v2721
      %3436 = vmatpush1.bf16.msra.mxu0 %v2720
      %3437 = vmatprep.subr.bf16.mxu0 %v2705
      %3438 = vmatpush1.bf16.msra.mxu0 %v2704
      %3439 = vmatprep.subr.bf16.mxu0 %v2689
      %3440 = vmatpush1.bf16.msra.mxu0 %v2688
      %3441 = vmatprep.subr.bf16.mxu0 %v2673
      %3442 = vmatpush1.bf16.msra.mxu0 %v2672
      %3443 = vmatprep.subr.bf16.mxu0 %v2657
      %3444 = vmatpush1.bf16.msra.mxu0 %v2656
      %3445 = vmatprep.subr.bf16.mxu0 %v2641
      %3446 = vmatpush1.bf16.msra.mxu0 %v2640
      %3447 = vmatprep.subr.bf16.mxu0 %v2625
      %3448 = vmatpush1.bf16.msra.mxu0 %v2624
      %3449 = vmatprep.subr.bf16.mxu0 %v2865
      %3450 = vmatpush2.bf16.msra.mxu0 %v2864
      %3451 = vmatprep.subr.bf16.mxu0 %v2849
      %3452 = vmatpush2.bf16.msra.mxu0 %v2848
      %3453 = vmatprep.subr.bf16.mxu0 %v2833
      %3454 = vmatpush2.bf16.msra.mxu0 %v2832
      %3455 = vmatprep.subr.bf16.mxu0 %v2817
      %3456 = vmatpush2.bf16.msra.mxu0 %v2816
      %3457 = vmatprep.subr.bf16.mxu0 %v2801
      %3458 = vmatpush2.bf16.msra.mxu0 %v2800
      %3459 = vmatprep.subr.bf16.mxu0 %v2785
      %3460 = vmatpush2.bf16.msra.mxu0 %v2784
      %3461 = vmatprep.subr.bf16.mxu0 %v2769
      %3462 = vmatpush2.bf16.msra.mxu0 %v2768
      %3463 = vmatprep.subr.bf16.mxu0 %v2753
      %3464 = vmatpush2.bf16.msra.mxu0 %v2752
      %3465 = vmatprep.mubr.bf16.mxu0 %v831
      %3466 = vmatmul.mubr.bf16.gmra.mxu0 %v830
      %v3467 = vpop.f32.mrf.mxu0
      %v3468 = vadd.f32 %v3427, %v3467
      %v3469 = vpop.f32.mrf.mxu0
      %v3470 = vadd.f32 %v3429, %v3469
      %v3471 = vpop.f32.mrf.mxu0
      %v3472 = vpop.f32.mrf.mxu0
      %3473 = vdwg.mxu0
      %3474 = vmatprep.subr.bf16.mxu0 %v2483
      %3475 = vmatpush1.bf16.msra.mxu0 %v2482
      %3476 = vmatprep.subr.bf16.mxu0 %v2467
      %3477 = vmatpush1.bf16.msra.mxu0 %v2466
      %3478 = vmatprep.subr.bf16.mxu0 %v2451
      %3479 = vmatpush1.bf16.msra.mxu0 %v2450
      %3480 = vmatprep.subr.bf16.mxu0 %v2435
      %3481 = vmatpush1.bf16.msra.mxu0 %v2434
      %3482 = vmatprep.subr.bf16.mxu0 %v2419
      %3483 = vmatpush1.bf16.msra.mxu0 %v2418
      %3484 = vmatprep.subr.bf16.mxu0 %v2403
      %3485 = vmatpush1.bf16.msra.mxu0 %v2402
      %3486 = vmatprep.subr.bf16.mxu0 %v2387
      %3487 = vmatpush1.bf16.msra.mxu0 %v2386
      %3488 = vmatprep.subr.bf16.mxu0 %v2371
      %3489 = vmatpush1.bf16.msra.mxu0 %v2370
      %3490 = vmatprep.subr.bf16.mxu0 %v2611
      %3491 = vmatpush2.bf16.msra.mxu0 %v2610
      %3492 = vmatprep.subr.bf16.mxu0 %v2595
      %3493 = vmatpush2.bf16.msra.mxu0 %v2594
      %3494 = vmatprep.subr.bf16.mxu0 %v2579
      %3495 = vmatpush2.bf16.msra.mxu0 %v2578
      %3496 = vmatprep.subr.bf16.mxu0 %v2563
      %3497 = vmatpush2.bf16.msra.mxu0 %v2562
      %3498 = vmatprep.subr.bf16.mxu0 %v2547
      %3499 = vmatpush2.bf16.msra.mxu0 %v2546
      %3500 = vmatprep.subr.bf16.mxu0 %v2531
      %3501 = vmatpush2.bf16.msra.mxu0 %v2530
      %3502 = vmatprep.subr.bf16.mxu0 %v2515
      %3503 = vmatpush2.bf16.msra.mxu0 %v2514
      %3504 = vmatprep.subr.bf16.mxu0 %v2499
      %3505 = vmatpush2.bf16.msra.mxu0 %v2498
      %3506 = vmatprep.mubr.bf16.mxu0 %v829
      %3507 = vmatmul.mubr.bf16.gmra.mxu0 %v828
      %v3508 = vpop.f32.mrf.mxu0
      %v3509 = vadd.f32 0.0, %v3508
      %v3510 = vpop.f32.mrf.mxu0
      %v3511 = vadd.f32 0.0, %v3510
      %v3512 = vpop.f32.mrf.mxu0
      %v3513 = vpop.f32.mrf.mxu0
      %3514 = vdwg.mxu0
      %3515 = vmatprep.subr.bf16.mxu0 %v2739
      %3516 = vmatpush1.bf16.msra.mxu0 %v2738
      %3517 = vmatprep.subr.bf16.mxu0 %v2723
      %3518 = vmatpush1.bf16.msra.mxu0 %v2722
      %3519 = vmatprep.subr.bf16.mxu0 %v2707
      %3520 = vmatpush1.bf16.msra.mxu0 %v2706
      %3521 = vmatprep.subr.bf16.mxu0 %v2691
      %3522 = vmatpush1.bf16.msra.mxu0 %v2690
      %3523 = vmatprep.subr.bf16.mxu0 %v2675
      %3524 = vmatpush1.bf16.msra.mxu0 %v2674
      %3525 = vmatprep.subr.bf16.mxu0 %v2659
      %3526 = vmatpush1.bf16.msra.mxu0 %v2658
      %3527 = vmatprep.subr.bf16.mxu0 %v2643
      %3528 = vmatpush1.bf16.msra.mxu0 %v2642
      %3529 = vmatprep.subr.bf16.mxu0 %v2627
      %3530 = vmatpush1.bf16.msra.mxu0 %v2626
      %3531 = vmatprep.subr.bf16.mxu0 %v2867
      %3532 = vmatpush2.bf16.msra.mxu0 %v2866
      %3533 = vmatprep.subr.bf16.mxu0 %v2851
      %3534 = vmatpush2.bf16.msra.mxu0 %v2850
      %3535 = vmatprep.subr.bf16.mxu0 %v2835
      %3536 = vmatpush2.bf16.msra.mxu0 %v2834
      %3537 = vmatprep.subr.bf16.mxu0 %v2819
      %3538 = vmatpush2.bf16.msra.mxu0 %v2818
      %3539 = vmatprep.subr.bf16.mxu0 %v2803
      %3540 = vmatpush2.bf16.msra.mxu0 %v2802
      %3541 = vmatprep.subr.bf16.mxu0 %v2787
      %3542 = vmatpush2.bf16.msra.mxu0 %v2786
      %3543 = vmatprep.subr.bf16.mxu0 %v2771
      %3544 = vmatpush2.bf16.msra.mxu0 %v2770
      %3545 = vmatprep.subr.bf16.mxu0 %v2755
      %3546 = vmatpush2.bf16.msra.mxu0 %v2754
      %3547 = vmatprep.mubr.bf16.mxu0 %v831
      %3548 = vmatmul.mubr.bf16.gmra.mxu0 %v830
      %v3549 = vpop.f32.mrf.mxu0
      %v3550 = vadd.f32 %v3509, %v3549
      %v3551 = vpop.f32.mrf.mxu0
      %v3552 = vadd.f32 %v3511, %v3551
      %v3553 = vpop.f32.mrf.mxu0
      %v3554 = vpop.f32.mrf.mxu0
      %3555 = vdwg.mxu0
      %3556 = vmatprep.subr.bf16.mxu0 %v2485
      %3557 = vmatpush1.bf16.msra.mxu0 %v2484
      %3558 = vmatprep.subr.bf16.mxu0 %v2469
      %3559 = vmatpush1.bf16.msra.mxu0 %v2468
      %3560 = vmatprep.subr.bf16.mxu0 %v2453
      %3561 = vmatpush1.bf16.msra.mxu0 %v2452
      %3562 = vmatprep.subr.bf16.mxu0 %v2437
      %3563 = vmatpush1.bf16.msra.mxu0 %v2436
      %3564 = vmatprep.subr.bf16.mxu0 %v2421
      %3565 = vmatpush1.bf16.msra.mxu0 %v2420
      %3566 = vmatprep.subr.bf16.mxu0 %v2405
      %3567 = vmatpush1.bf16.msra.mxu0 %v2404
      %3568 = vmatprep.subr.bf16.mxu0 %v2389
      %3569 = vmatpush1.bf16.msra.mxu0 %v2388
      %3570 = vmatprep.subr.bf16.mxu0 %v2373
      %3571 = vmatpush1.bf16.msra.mxu0 %v2372
      %3572 = vmatprep.subr.bf16.mxu0 %v2613
      %3573 = vmatpush2.bf16.msra.mxu0 %v2612
      %3574 = vmatprep.subr.bf16.mxu0 %v2597
      %3575 = vmatpush2.bf16.msra.mxu0 %v2596
      %3576 = vmatprep.subr.bf16.mxu0 %v2581
      %3577 = vmatpush2.bf16.msra.mxu0 %v2580
      %3578 = vmatprep.subr.bf16.mxu0 %v2565
      %3579 = vmatpush2.bf16.msra.mxu0 %v2564
      %3580 = vmatprep.subr.bf16.mxu0 %v2549
      %3581 = vmatpush2.bf16.msra.mxu0 %v2548
      %3582 = vmatprep.subr.bf16.mxu0 %v2533
      %3583 = vmatpush2.bf16.msra.mxu0 %v2532
      %3584 = vmatprep.subr.bf16.mxu0 %v2517
      %3585 = vmatpush2.bf16.msra.mxu0 %v2516
      %3586 = vmatprep.subr.bf16.mxu0 %v2501
      %3587 = vmatpush2.bf16.msra.mxu0 %v2500
      %3588 = vmatprep.mubr.bf16.mxu0 %v829
      %3589 = vmatmul.mubr.bf16.gmra.mxu0 %v828
      %v3590 = vpop.f32.mrf.mxu0
      %v3591 = vadd.f32 0.0, %v3590
      %v3592 = vpop.f32.mrf.mxu0
      %v3593 = vadd.f32 0.0, %v3592
      %v3594 = vpop.f32.mrf.mxu0
      %v3595 = vpop.f32.mrf.mxu0
      %3596 = vdwg.mxu0
      %3597 = vmatprep.subr.bf16.mxu0 %v2741
      %3598 = vmatpush1.bf16.msra.mxu0 %v2740
      %3599 = vmatprep.subr.bf16.mxu0 %v2725
      %3600 = vmatpush1.bf16.msra.mxu0 %v2724
      %3601 = vmatprep.subr.bf16.mxu0 %v2709
      %3602 = vmatpush1.bf16.msra.mxu0 %v2708
      %3603 = vmatprep.subr.bf16.mxu0 %v2693
      %3604 = vmatpush1.bf16.msra.mxu0 %v2692
      %3605 = vmatprep.subr.bf16.mxu0 %v2677
      %3606 = vmatpush1.bf16.msra.mxu0 %v2676
      %3607 = vmatprep.subr.bf16.mxu0 %v2661
      %3608 = vmatpush1.bf16.msra.mxu0 %v2660
      %3609 = vmatprep.subr.bf16.mxu0 %v2645
      %3610 = vmatpush1.bf16.msra.mxu0 %v2644
      %3611 = vmatprep.subr.bf16.mxu0 %v2629
      %3612 = vmatpush1.bf16.msra.mxu0 %v2628
      %3613 = vmatprep.subr.bf16.mxu0 %v2869
      %3614 = vmatpush2.bf16.msra.mxu0 %v2868
      %3615 = vmatprep.subr.bf16.mxu0 %v2853
      %3616 = vmatpush2.bf16.msra.mxu0 %v2852
      %3617 = vmatprep.subr.bf16.mxu0 %v2837
      %3618 = vmatpush2.bf16.msra.mxu0 %v2836
      %3619 = vmatprep.subr.bf16.mxu0 %v2821
      %3620 = vmatpush2.bf16.msra.mxu0 %v2820
      %3621 = vmatprep.subr.bf16.mxu0 %v2805
      %3622 = vmatpush2.bf16.msra.mxu0 %v2804
      %3623 = vmatprep.subr.bf16.mxu0 %v2789
      %3624 = vmatpush2.bf16.msra.mxu0 %v2788
      %3625 = vmatprep.subr.bf16.mxu0 %v2773
      %3626 = vmatpush2.bf16.msra.mxu0 %v2772
      %3627 = vmatprep.subr.bf16.mxu0 %v2757
      %3628 = vmatpush2.bf16.msra.mxu0 %v2756
      %3629 = vmatprep.mubr.bf16.mxu0 %v831
      %3630 = vmatmul.mubr.bf16.gmra.mxu0 %v830
      %v3631 = vpop.f32.mrf.mxu0
      %v3632 = vadd.f32 %v3591, %v3631
      %v3633 = vpop.f32.mrf.mxu0
      %v3634 = vadd.f32 %v3593, %v3633
      %v3635 = vpop.f32.mrf.mxu0
      %v3636 = vpop.f32.mrf.mxu0
      %3637 = vdwg.mxu0
      %3638 = vmatprep.subr.bf16.mxu0 %v2487
      %3639 = vmatpush1.bf16.msra.mxu0 %v2486
      %3640 = vmatprep.subr.bf16.mxu0 %v2471
      %3641 = vmatpush1.bf16.msra.mxu0 %v2470
      %3642 = vmatprep.subr.bf16.mxu0 %v2455
      %3643 = vmatpush1.bf16.msra.mxu0 %v2454
      %3644 = vmatprep.subr.bf16.mxu0 %v2439
      %3645 = vmatpush1.bf16.msra.mxu0 %v2438
      %3646 = vmatprep.subr.bf16.mxu0 %v2423
      %3647 = vmatpush1.bf16.msra.mxu0 %v2422
      %3648 = vmatprep.subr.bf16.mxu0 %v2407
      %3649 = vmatpush1.bf16.msra.mxu0 %v2406
      %3650 = vmatprep.subr.bf16.mxu0 %v2391
      %3651 = vmatpush1.bf16.msra.mxu0 %v2390
      %3652 = vmatprep.subr.bf16.mxu0 %v2375
      %3653 = vmatpush1.bf16.msra.mxu0 %v2374
      %3654 = vmatprep.subr.bf16.mxu0 %v2615
      %3655 = vmatpush2.bf16.msra.mxu0 %v2614
      %3656 = vmatprep.subr.bf16.mxu0 %v2599
      %3657 = vmatpush2.bf16.msra.mxu0 %v2598
      %3658 = vmatprep.subr.bf16.mxu0 %v2583
      %3659 = vmatpush2.bf16.msra.mxu0 %v2582
      %3660 = vmatprep.subr.bf16.mxu0 %v2567
      %3661 = vmatpush2.bf16.msra.mxu0 %v2566
      %3662 = vmatprep.subr.bf16.mxu0 %v2551
      %3663 = vmatpush2.bf16.msra.mxu0 %v2550
      %3664 = vmatprep.subr.bf16.mxu0 %v2535
      %3665 = vmatpush2.bf16.msra.mxu0 %v2534
      %3666 = vmatprep.subr.bf16.mxu0 %v2519
      %3667 = vmatpush2.bf16.msra.mxu0 %v2518
      %3668 = vmatprep.subr.bf16.mxu0 %v2503
      %3669 = vmatpush2.bf16.msra.mxu0 %v2502
      %3670 = vmatprep.mubr.bf16.mxu0 %v829
      %3671 = vmatmul.mubr.bf16.gmra.mxu0 %v828
      %v3672 = vpop.f32.mrf.mxu0
      %v3673 = vadd.f32 0.0, %v3672
      %v3674 = vpop.f32.mrf.mxu0
      %v3675 = vadd.f32 0.0, %v3674
      %v3676 = vpop.f32.mrf.mxu0
      %v3677 = vpop.f32.mrf.mxu0
      %3678 = vdwg.mxu0
      %3679 = vmatprep.subr.bf16.mxu0 %v2743
      %3680 = vmatpush1.bf16.msra.mxu0 %v2742
      %3681 = vmatprep.subr.bf16.mxu0 %v2727
      %3682 = vmatpush1.bf16.msra.mxu0 %v2726
      %3683 = vmatprep.subr.bf16.mxu0 %v2711
      %3684 = vmatpush1.bf16.msra.mxu0 %v2710
      %3685 = vmatprep.subr.bf16.mxu0 %v2695
      %3686 = vmatpush1.bf16.msra.mxu0 %v2694
      %3687 = vmatprep.subr.bf16.mxu0 %v2679
      %3688 = vmatpush1.bf16.msra.mxu0 %v2678
      %3689 = vmatprep.subr.bf16.mxu0 %v2663
      %3690 = vmatpush1.bf16.msra.mxu0 %v2662
      %3691 = vmatprep.subr.bf16.mxu0 %v2647
      %3692 = vmatpush1.bf16.msra.mxu0 %v2646
      %3693 = vmatprep.subr.bf16.mxu0 %v2631
      %3694 = vmatpush1.bf16.msra.mxu0 %v2630
      %3695 = vmatprep.subr.bf16.mxu0 %v2871
      %3696 = vmatpush2.bf16.msra.mxu0 %v2870
      %3697 = vmatprep.subr.bf16.mxu0 %v2855
      %3698 = vmatpush2.bf16.msra.mxu0 %v2854
      %3699 = vmatprep.subr.bf16.mxu0 %v2839
      %3700 = vmatpush2.bf16.msra.mxu0 %v2838
      %3701 = vmatprep.subr.bf16.mxu0 %v2823
      %3702 = vmatpush2.bf16.msra.mxu0 %v2822
      %3703 = vmatprep.subr.bf16.mxu0 %v2807
      %3704 = vmatpush2.bf16.msra.mxu0 %v2806
      %3705 = vmatprep.subr.bf16.mxu0 %v2791
      %3706 = vmatpush2.bf16.msra.mxu0 %v2790
      %3707 = vmatprep.subr.bf16.mxu0 %v2775
      %3708 = vmatpush2.bf16.msra.mxu0 %v2774
      %3709 = vmatprep.subr.bf16.mxu0 %v2759
      %3710 = vmatpush2.bf16.msra.mxu0 %v2758
      %3711 = vmatprep.mubr.bf16.mxu0 %v831
      %3712 = vmatmul.mubr.bf16.gmra.mxu0 %v830
      %v3713 = vpop.f32.mrf.mxu0
      %v3714 = vadd.f32 %v3673, %v3713
      %v3715 = vpop.f32.mrf.mxu0
      %v3716 = vadd.f32 %v3675, %v3715
      %v3717 = vpop.f32.mrf.mxu0
      %v3718 = vpop.f32.mrf.mxu0
      %3719 = vdwg.mxu0
      %3720 = vmatprep.subr.bf16.mxu0 %v2489
      %3721 = vmatpush1.bf16.msra.mxu0 %v2488
      %3722 = vmatprep.subr.bf16.mxu0 %v2473
      %3723 = vmatpush1.bf16.msra.mxu0 %v2472
      %3724 = vmatprep.subr.bf16.mxu0 %v2457
      %3725 = vmatpush1.bf16.msra.mxu0 %v2456
      %3726 = vmatprep.subr.bf16.mxu0 %v2441
      %3727 = vmatpush1.bf16.msra.mxu0 %v2440
      %3728 = vmatprep.subr.bf16.mxu0 %v2425
      %3729 = vmatpush1.bf16.msra.mxu0 %v2424
      %3730 = vmatprep.subr.bf16.mxu0 %v2409
      %3731 = vmatpush1.bf16.msra.mxu0 %v2408
      %3732 = vmatprep.subr.bf16.mxu0 %v2393
      %3733 = vmatpush1.bf16.msra.mxu0 %v2392
      %3734 = vmatprep.subr.bf16.mxu0 %v2377
      %3735 = vmatpush1.bf16.msra.mxu0 %v2376
      %3736 = vmatprep.subr.bf16.mxu0 %v2617
      %3737 = vmatpush2.bf16.msra.mxu0 %v2616
      %3738 = vmatprep.subr.bf16.mxu0 %v2601
      %3739 = vmatpush2.bf16.msra.mxu0 %v2600
      %3740 = vmatprep.subr.bf16.mxu0 %v2585
      %3741 = vmatpush2.bf16.msra.mxu0 %v2584
      %3742 = vmatprep.subr.bf16.mxu0 %v2569
      %3743 = vmatpush2.bf16.msra.mxu0 %v2568
      %3744 = vmatprep.subr.bf16.mxu0 %v2553
      %3745 = vmatpush2.bf16.msra.mxu0 %v2552
      %3746 = vmatprep.subr.bf16.mxu0 %v2537
      %3747 = vmatpush2.bf16.msra.mxu0 %v2536
      %3748 = vmatprep.subr.bf16.mxu0 %v2521
      %3749 = vmatpush2.bf16.msra.mxu0 %v2520
      %3750 = vmatprep.subr.bf16.mxu0 %v2505
      %3751 = vmatpush2.bf16.msra.mxu0 %v2504
      %3752 = vmatprep.mubr.bf16.mxu0 %v829
      %3753 = vmatmul.mubr.bf16.gmra.mxu0 %v828
      %v3754 = vpop.f32.mrf.mxu0
      %v3755 = vadd.f32 0.0, %v3754
      %v3756 = vpop.f32.mrf.mxu0
      %v3757 = vadd.f32 0.0, %v3756
      %v3758 = vpop.f32.mrf.mxu0
      %v3759 = vpop.f32.mrf.mxu0
      %3760 = vdwg.mxu0
      %3761 = vmatprep.subr.bf16.mxu0 %v2745
      %3762 = vmatpush1.bf16.msra.mxu0 %v2744
      %3763 = vmatprep.subr.bf16.mxu0 %v2729
      %3764 = vmatpush1.bf16.msra.mxu0 %v2728
      %3765 = vmatprep.subr.bf16.mxu0 %v2713
      %3766 = vmatpush1.bf16.msra.mxu0 %v2712
      %3767 = vmatprep.subr.bf16.mxu0 %v2697
      %3768 = vmatpush1.bf16.msra.mxu0 %v2696
      %3769 = vmatprep.subr.bf16.mxu0 %v2681
      %3770 = vmatpush1.bf16.msra.mxu0 %v2680
      %3771 = vmatprep.subr.bf16.mxu0 %v2665
      %3772 = vmatpush1.bf16.msra.mxu0 %v2664
      %3773 = vmatprep.subr.bf16.mxu0 %v2649
      %3774 = vmatpush1.bf16.msra.mxu0 %v2648
      %3775 = vmatprep.subr.bf16.mxu0 %v2633
      %3776 = vmatpush1.bf16.msra.mxu0 %v2632
      %3777 = vmatprep.subr.bf16.mxu0 %v2873
      %3778 = vmatpush2.bf16.msra.mxu0 %v2872
      %3779 = vmatprep.subr.bf16.mxu0 %v2857
      %3780 = vmatpush2.bf16.msra.mxu0 %v2856
      %3781 = vmatprep.subr.bf16.mxu0 %v2841
      %3782 = vmatpush2.bf16.msra.mxu0 %v2840
      %3783 = vmatprep.subr.bf16.mxu0 %v2825
      %3784 = vmatpush2.bf16.msra.mxu0 %v2824
      %3785 = vmatprep.subr.bf16.mxu0 %v2809
      %3786 = vmatpush2.bf16.msra.mxu0 %v2808
      %3787 = vmatprep.subr.bf16.mxu0 %v2793
      %3788 = vmatpush2.bf16.msra.mxu0 %v2792
      %3789 = vmatprep.subr.bf16.mxu0 %v2777
      %3790 = vmatpush2.bf16.msra.mxu0 %v2776
      %3791 = vmatprep.subr.bf16.mxu0 %v2761
      %3792 = vmatpush2.bf16.msra.mxu0 %v2760
      %3793 = vmatprep.mubr.bf16.mxu0 %v831
      %3794 = vmatmul.mubr.bf16.gmra.mxu0 %v830
      %v3795 = vpop.f32.mrf.mxu0
      %v3796 = vadd.f32 %v3755, %v3795
      %v3797 = vpop.f32.mrf.mxu0
      %v3798 = vadd.f32 %v3757, %v3797
      %v3799 = vpop.f32.mrf.mxu0
      %v3800 = vpop.f32.mrf.mxu0
      %3801 = vdwg.mxu0
      %3802 = vmatprep.subr.bf16.mxu0 %v2491
      %3803 = vmatpush1.bf16.msra.mxu0 %v2490
      %3804 = vmatprep.subr.bf16.mxu0 %v2475
      %3805 = vmatpush1.bf16.msra.mxu0 %v2474
      %3806 = vmatprep.subr.bf16.mxu0 %v2459
      %3807 = vmatpush1.bf16.msra.mxu0 %v2458
      %3808 = vmatprep.subr.bf16.mxu0 %v2443
      %3809 = vmatpush1.bf16.msra.mxu0 %v2442
      %3810 = vmatprep.subr.bf16.mxu0 %v2427
      %3811 = vmatpush1.bf16.msra.mxu0 %v2426
      %3812 = vmatprep.subr.bf16.mxu0 %v2411
      %3813 = vmatpush1.bf16.msra.mxu0 %v2410
      %3814 = vmatprep.subr.bf16.mxu0 %v2395
      %3815 = vmatpush1.bf16.msra.mxu0 %v2394
      %3816 = vmatprep.subr.bf16.mxu0 %v2379
      %3817 = vmatpush1.bf16.msra.mxu0 %v2378
      %3818 = vmatprep.subr.bf16.mxu0 %v2619
      %3819 = vmatpush2.bf16.msra.mxu0 %v2618
      %3820 = vmatprep.subr.bf16.mxu0 %v2603
      %3821 = vmatpush2.bf16.msra.mxu0 %v2602
      %3822 = vmatprep.subr.bf16.mxu0 %v2587
      %3823 = vmatpush2.bf16.msra.mxu0 %v2586
      %3824 = vmatprep.subr.bf16.mxu0 %v2571
      %3825 = vmatpush2.bf16.msra.mxu0 %v2570
      %3826 = vmatprep.subr.bf16.mxu0 %v2555
      %3827 = vmatpush2.bf16.msra.mxu0 %v2554
      %3828 = vmatprep.subr.bf16.mxu0 %v2539
      %3829 = vmatpush2.bf16.msra.mxu0 %v2538
      %3830 = vmatprep.subr.bf16.mxu0 %v2523
      %3831 = vmatpush2.bf16.msra.mxu0 %v2522
      %3832 = vmatprep.subr.bf16.mxu0 %v2507
      %3833 = vmatpush2.bf16.msra.mxu0 %v2506
      %3834 = vmatprep.mubr.bf16.mxu0 %v829
      %3835 = vmatmul.mubr.bf16.gmra.mxu0 %v828
      %v3836 = vpop.f32.mrf.mxu0
      %v3837 = vadd.f32 0.0, %v3836
      %v3838 = vpop.f32.mrf.mxu0
      %v3839 = vadd.f32 0.0, %v3838
      %v3840 = vpop.f32.mrf.mxu0
      %v3841 = vpop.f32.mrf.mxu0
      %3842 = vdwg.mxu0
      %3843 = vmatprep.subr.bf16.mxu0 %v2747
      %3844 = vmatpush1.bf16.msra.mxu0 %v2746
      %3845 = vmatprep.subr.bf16.mxu0 %v2731
      %3846 = vmatpush1.bf16.msra.mxu0 %v2730
      %3847 = vmatprep.subr.bf16.mxu0 %v2715
      %3848 = vmatpush1.bf16.msra.mxu0 %v2714
      %3849 = vmatprep.subr.bf16.mxu0 %v2699
      %3850 = vmatpush1.bf16.msra.mxu0 %v2698
      %3851 = vmatprep.subr.bf16.mxu0 %v2683
      %3852 = vmatpush1.bf16.msra.mxu0 %v2682
      %3853 = vmatprep.subr.bf16.mxu0 %v2667
      %3854 = vmatpush1.bf16.msra.mxu0 %v2666
      %3855 = vmatprep.subr.bf16.mxu0 %v2651
      %3856 = vmatpush1.bf16.msra.mxu0 %v2650
      %3857 = vmatprep.subr.bf16.mxu0 %v2635
      %3858 = vmatpush1.bf16.msra.mxu0 %v2634
      %3859 = vmatprep.subr.bf16.mxu0 %v2875
      %3860 = vmatpush2.bf16.msra.mxu0 %v2874
      %3861 = vmatprep.subr.bf16.mxu0 %v2859
      %3862 = vmatpush2.bf16.msra.mxu0 %v2858
      %3863 = vmatprep.subr.bf16.mxu0 %v2843
      %3864 = vmatpush2.bf16.msra.mxu0 %v2842
      %3865 = vmatprep.subr.bf16.mxu0 %v2827
      %3866 = vmatpush2.bf16.msra.mxu0 %v2826
      %3867 = vmatprep.subr.bf16.mxu0 %v2811
      %3868 = vmatpush2.bf16.msra.mxu0 %v2810
      %3869 = vmatprep.subr.bf16.mxu0 %v2795
      %3870 = vmatpush2.bf16.msra.mxu0 %v2794
      %3871 = vmatprep.subr.bf16.mxu0 %v2779
      %3872 = vmatpush2.bf16.msra.mxu0 %v2778
      %3873 = vmatprep.subr.bf16.mxu0 %v2763
      %3874 = vmatpush2.bf16.msra.mxu0 %v2762
      %3875 = vmatprep.mubr.bf16.mxu0 %v831
      %3876 = vmatmul.mubr.bf16.gmra.mxu0 %v830
      %v3877 = vpop.f32.mrf.mxu0
      %v3878 = vadd.f32 %v3837, %v3877
      %v3879 = vpop.f32.mrf.mxu0
      %v3880 = vadd.f32 %v3839, %v3879
      %v3881 = vpop.f32.mrf.mxu0
      %v3882 = vpop.f32.mrf.mxu0
      %3883 = vdwg.mxu0
      %3884 = vmatprep.subr.bf16.mxu0 %v2493
      %3885 = vmatpush1.bf16.msra.mxu0 %v2492
      %3886 = vmatprep.subr.bf16.mxu0 %v2477
      %3887 = vmatpush1.bf16.msra.mxu0 %v2476
      %3888 = vmatprep.subr.bf16.mxu0 %v2461
      %3889 = vmatpush1.bf16.msra.mxu0 %v2460
      %3890 = vmatprep.subr.bf16.mxu0 %v2445
      %3891 = vmatpush1.bf16.msra.mxu0 %v2444
      %3892 = vmatprep.subr.bf16.mxu0 %v2429
      %3893 = vmatpush1.bf16.msra.mxu0 %v2428
      %3894 = vmatprep.subr.bf16.mxu0 %v2413
      %3895 = vmatpush1.bf16.msra.mxu0 %v2412
      %3896 = vmatprep.subr.bf16.mxu0 %v2397
      %3897 = vmatpush1.bf16.msra.mxu0 %v2396
      %3898 = vmatprep.subr.bf16.mxu0 %v2381
      %3899 = vmatpush1.bf16.msra.mxu0 %v2380
      %3900 = vmatprep.subr.bf16.mxu0 %v2621
      %3901 = vmatpush2.bf16.msra.mxu0 %v2620
      %3902 = vmatprep.subr.bf16.mxu0 %v2605
      %3903 = vmatpush2.bf16.msra.mxu0 %v2604
      %3904 = vmatprep.subr.bf16.mxu0 %v2589
      %3905 = vmatpush2.bf16.msra.mxu0 %v2588
      %3906 = vmatprep.subr.bf16.mxu0 %v2573
      %3907 = vmatpush2.bf16.msra.mxu0 %v2572
      %3908 = vmatprep.subr.bf16.mxu0 %v2557
      %3909 = vmatpush2.bf16.msra.mxu0 %v2556
      %3910 = vmatprep.subr.bf16.mxu0 %v2541
      %3911 = vmatpush2.bf16.msra.mxu0 %v2540
      %3912 = vmatprep.subr.bf16.mxu0 %v2525
      %3913 = vmatpush2.bf16.msra.mxu0 %v2524
      %3914 = vmatprep.subr.bf16.mxu0 %v2509
      %3915 = vmatpush2.bf16.msra.mxu0 %v2508
      %3916 = vmatprep.mubr.bf16.mxu0 %v829
      %3917 = vmatmul.mubr.bf16.gmra.mxu0 %v828
      %v3918 = vpop.f32.mrf.mxu0
      %v3919 = vadd.f32 0.0, %v3918
      %v3920 = vpop.f32.mrf.mxu0
      %v3921 = vadd.f32 0.0, %v3920
      %v3922 = vpop.f32.mrf.mxu0
      %v3923 = vpop.f32.mrf.mxu0
      %3924 = vdwg.mxu0
      %3925 = vmatprep.subr.bf16.mxu0 %v2749
      %3926 = vmatpush1.bf16.msra.mxu0 %v2748
      %3927 = vmatprep.subr.bf16.mxu0 %v2733
      %3928 = vmatpush1.bf16.msra.mxu0 %v2732
      %3929 = vmatprep.subr.bf16.mxu0 %v2717
      %3930 = vmatpush1.bf16.msra.mxu0 %v2716
      %3931 = vmatprep.subr.bf16.mxu0 %v2701
      %3932 = vmatpush1.bf16.msra.mxu0 %v2700
      %3933 = vmatprep.subr.bf16.mxu0 %v2685
      %3934 = vmatpush1.bf16.msra.mxu0 %v2684
      %3935 = vmatprep.subr.bf16.mxu0 %v2669
      %3936 = vmatpush1.bf16.msra.mxu0 %v2668
      %3937 = vmatprep.subr.bf16.mxu0 %v2653
      %3938 = vmatpush1.bf16.msra.mxu0 %v2652
      %3939 = vmatprep.subr.bf16.mxu0 %v2637
      %3940 = vmatpush1.bf16.msra.mxu0 %v2636
      %3941 = vmatprep.subr.bf16.mxu0 %v2877
      %3942 = vmatpush2.bf16.msra.mxu0 %v2876
      %3943 = vmatprep.subr.bf16.mxu0 %v2861
      %3944 = vmatpush2.bf16.msra.mxu0 %v2860
      %3945 = vmatprep.subr.bf16.mxu0 %v2845
      %3946 = vmatpush2.bf16.msra.mxu0 %v2844
      %3947 = vmatprep.subr.bf16.mxu0 %v2829
      %3948 = vmatpush2.bf16.msra.mxu0 %v2828
      %3949 = vmatprep.subr.bf16.mxu0 %v2813
      %3950 = vmatpush2.bf16.msra.mxu0 %v2812
      %3951 = vmatprep.subr.bf16.mxu0 %v2797
      %3952 = vmatpush2.bf16.msra.mxu0 %v2796
      %3953 = vmatprep.subr.bf16.mxu0 %v2781
      %3954 = vmatpush2.bf16.msra.mxu0 %v2780
      %3955 = vmatprep.subr.bf16.mxu0 %v2765
      %3956 = vmatpush2.bf16.msra.mxu0 %v2764
      %3957 = vmatprep.mubr.bf16.mxu0 %v831
      %3958 = vmatmul.mubr.bf16.gmra.mxu0 %v830
      %v3959 = vpop.f32.mrf.mxu0
      %v3960 = vadd.f32 %v3919, %v3959
      %v3961 = vpop.f32.mrf.mxu0
      %v3962 = vadd.f32 %v3921, %v3961
      %v3963 = vpop.f32.mrf.mxu0
      %v3964 = vpop.f32.mrf.mxu0
      %3965 = vdwg.mxu0
      %3966 = vmatprep.subr.bf16.mxu0 %v2495
      %3967 = vmatpush1.bf16.msra.mxu0 %v2494
      %3968 = vmatprep.subr.bf16.mxu0 %v2479
      %3969 = vmatpush1.bf16.msra.mxu0 %v2478
      %3970 = vmatprep.subr.bf16.mxu0 %v2463
      %3971 = vmatpush1.bf16.msra.mxu0 %v2462
      %3972 = vmatprep.subr.bf16.mxu0 %v2447
      %3973 = vmatpush1.bf16.msra.mxu0 %v2446
      %3974 = vmatprep.subr.bf16.mxu0 %v2431
      %3975 = vmatpush1.bf16.msra.mxu0 %v2430
      %3976 = vmatprep.subr.bf16.mxu0 %v2415
      %3977 = vmatpush1.bf16.msra.mxu0 %v2414
      %3978 = vmatprep.subr.bf16.mxu0 %v2399
      %3979 = vmatpush1.bf16.msra.mxu0 %v2398
      %3980 = vmatprep.subr.bf16.mxu0 %v2383
      %3981 = vmatpush1.bf16.msra.mxu0 %v2382
      %3982 = vmatprep.subr.bf16.mxu0 %v2623
      %3983 = vmatpush2.bf16.msra.mxu0 %v2622
      %3984 = vmatprep.subr.bf16.mxu0 %v2607
      %3985 = vmatpush2.bf16.msra.mxu0 %v2606
      %3986 = vmatprep.subr.bf16.mxu0 %v2591
      %3987 = vmatpush2.bf16.msra.mxu0 %v2590
      %3988 = vmatprep.subr.bf16.mxu0 %v2575
      %3989 = vmatpush2.bf16.msra.mxu0 %v2574
      %3990 = vmatprep.subr.bf16.mxu0 %v2559
      %3991 = vmatpush2.bf16.msra.mxu0 %v2558
      %3992 = vmatprep.subr.bf16.mxu0 %v2543
      %3993 = vmatpush2.bf16.msra.mxu0 %v2542
      %3994 = vmatprep.subr.bf16.mxu0 %v2527
      %3995 = vmatpush2.bf16.msra.mxu0 %v2526
      %3996 = vmatprep.subr.bf16.mxu0 %v2511
      %3997 = vmatpush2.bf16.msra.mxu0 %v2510
      %3998 = vmatprep.mubr.bf16.mxu0 %v829
      %3999 = vmatmul.mubr.bf16.gmra.mxu0 %v828
      %v4000 = vpop.f32.mrf.mxu0
      %v4001 = vadd.f32 0.0, %v4000
      %v4002 = vpop.f32.mrf.mxu0
      %v4003 = vadd.f32 0.0, %v4002
      %v4004 = vpop.f32.mrf.mxu0
      %v4005 = vpop.f32.mrf.mxu0
      %4006 = vdwg.mxu0
      %4007 = vmatprep.subr.bf16.mxu0 %v2751
      %4008 = vmatpush1.bf16.msra.mxu0 %v2750
      %4009 = vmatprep.subr.bf16.mxu0 %v2735
      %4010 = vmatpush1.bf16.msra.mxu0 %v2734
      %4011 = vmatprep.subr.bf16.mxu0 %v2719
      %4012 = vmatpush1.bf16.msra.mxu0 %v2718
      %4013 = vmatprep.subr.bf16.mxu0 %v2703
      %4014 = vmatpush1.bf16.msra.mxu0 %v2702
      %4015 = vmatprep.subr.bf16.mxu0 %v2687
      %4016 = vmatpush1.bf16.msra.mxu0 %v2686
      %4017 = vmatprep.subr.bf16.mxu0 %v2671
      %4018 = vmatpush1.bf16.msra.mxu0 %v2670
      %4019 = vmatprep.subr.bf16.mxu0 %v2655
      %4020 = vmatpush1.bf16.msra.mxu0 %v2654
      %4021 = vmatprep.subr.bf16.mxu0 %v2639
      %4022 = vmatpush1.bf16.msra.mxu0 %v2638
      %4023 = vmatprep.subr.bf16.mxu0 %v2879
      %4024 = vmatpush2.bf16.msra.mxu0 %v2878
      %4025 = vmatprep.subr.bf16.mxu0 %v2863
      %4026 = vmatpush2.bf16.msra.mxu0 %v2862
      %4027 = vmatprep.subr.bf16.mxu0 %v2847
      %4028 = vmatpush2.bf16.msra.mxu0 %v2846
      %4029 = vmatprep.subr.bf16.mxu0 %v2831
      %4030 = vmatpush2.bf16.msra.mxu0 %v2830
      %4031 = vmatprep.subr.bf16.mxu0 %v2815
      %4032 = vmatpush2.bf16.msra.mxu0 %v2814
      %4033 = vmatprep.subr.bf16.mxu0 %v2799
      %4034 = vmatpush2.bf16.msra.mxu0 %v2798
      %4035 = vmatprep.subr.bf16.mxu0 %v2783
      %4036 = vmatpush2.bf16.msra.mxu0 %v2782
      %4037 = vmatprep.subr.bf16.mxu0 %v2767
      %4038 = vmatpush2.bf16.msra.mxu0 %v2766
      %4039 = vmatprep.mubr.bf16.mxu0 %v831
      %4040 = vmatmul.mubr.bf16.gmra.mxu0 %v830
      %v4041 = vpop.f32.mrf.mxu0
      %v4042 = vadd.f32 %v4001, %v4041
      %v4043 = vpop.f32.mrf.mxu0
      %v4044 = vadd.f32 %v4003, %v4043
      %v4045 = vpop.f32.mrf.mxu0
      %v4046 = vpop.f32.mrf.mxu0
      %4047 = vdwg.mxu0
      %v4049 = vlaneseq
      %v4050 = vshrl.u32 %v4049, 7
      %v4051 = vsub.s32 0, %v4050
      %v4052 = vrot.slane %v636, %v4051
      %v4053 = vlaneseq
      %v4054 = vshrl.u32 %v4053, 7
      %v4055 = vsub.s32 1, %v4054
      %v4056 = vrot.slane %v636, %v4055
      %v4057 = vlaneseq
      %v4058 = vshrl.u32 %v4057, 7
      %v4059 = vsub.s32 2, %v4058
      %v4060 = vrot.slane %v636, %v4059
      %v4061 = vlaneseq
      %v4062 = vshrl.u32 %v4061, 7
      %v4063 = vsub.s32 3, %v4062
      %v4064 = vrot.slane %v636, %v4063
      %v4069 = vadd.f32 %v3468, %v4052
      %v4070 = vadd.f32 %v3470, %v4056
      %v4071 = vadd.f32 %v3550, %v4060
      %v4072 = vadd.f32 %v3552, %v4064
      %v4075 = vlaneseq
      %v4076 = vshrl.u32 %v4075, 7
      %v4077 = vsub.s32 0, %v4076
      %v4078 = vrot.slane %v637, %v4077
      %v4079 = vlaneseq
      %v4080 = vshrl.u32 %v4079, 7
      %v4081 = vsub.s32 1, %v4080
      %v4082 = vrot.slane %v637, %v4081
      %v4083 = vlaneseq
      %v4084 = vshrl.u32 %v4083, 7
      %v4085 = vsub.s32 2, %v4084
      %v4086 = vrot.slane %v637, %v4085
      %v4087 = vlaneseq
      %v4088 = vshrl.u32 %v4087, 7
      %v4089 = vsub.s32 3, %v4088
      %v4090 = vrot.slane %v637, %v4089
      %v4091 = vlaneseq
      %v4092 = vshrl.u32 %v4091, 7
      %v4093 = vsub.s32 4, %v4092
      %v4094 = vrot.slane %v637, %v4093
      %v4095 = vlaneseq
      %v4096 = vshrl.u32 %v4095, 7
      %v4097 = vsub.s32 5, %v4096
      %v4098 = vrot.slane %v637, %v4097
      %v4099 = vlaneseq
      %v4100 = vshrl.u32 %v4099, 7
      %v4101 = vsub.s32 6, %v4100
      %v4102 = vrot.slane %v637, %v4101
      %v4103 = vlaneseq
      %v4104 = vshrl.u32 %v4103, 7
      %v4105 = vsub.s32 7, %v4104
      %v4106 = vrot.slane %v637, %v4105
      %v4107 = vlaneseq
      %v4108 = vshrl.u32 %v4107, 7
      %v4109 = vsub.s32 0, %v4108
      %v4110 = vrot.slane %v638, %v4109
      %v4111 = vlaneseq
      %v4112 = vshrl.u32 %v4111, 7
      %v4113 = vsub.s32 1, %v4112
      %v4114 = vrot.slane %v638, %v4113
      %v4115 = vlaneseq
      %v4116 = vshrl.u32 %v4115, 7
      %v4117 = vsub.s32 2, %v4116
      %v4118 = vrot.slane %v638, %v4117
      %v4119 = vlaneseq
      %v4120 = vshrl.u32 %v4119, 7
      %v4121 = vsub.s32 3, %v4120
      %v4122 = vrot.slane %v638, %v4121
      %v4135 = vadd.f32 %v3632, %v4078
      %v4136 = vadd.f32 %v3634, %v4082
      %v4137 = vadd.f32 %v3714, %v4086
      %v4138 = vadd.f32 %v3716, %v4090
      %v4139 = vadd.f32 %v3796, %v4094
      %v4140 = vadd.f32 %v3798, %v4098
      %v4141 = vadd.f32 %v3878, %v4102
      %v4142 = vadd.f32 %v3880, %v4106
      %v4143 = vadd.f32 %v3960, %v4110
      %v4144 = vadd.f32 %v3962, %v4114
      %v4145 = vadd.f32 %v4042, %v4118
      %v4146 = vadd.f32 %v4044, %v4122
      %v4151 = vcombine.low %v4069, %v4070
      %v4152 = vcombine.low %v4071, %v4072
      %v4154 = vunpack.c.l.s4 1966171168
      %v4155 = vunpack.c.0.s8 %v4154
      %v4156 = vlaneseq
      %v4157 = vshrl.u32 %v4156, 7
      %v4158 = vsub.s32 %v4155, %v4157
      %v4159 = vrot.slane %v4151, %v4158
      %v4161 = vunpack.c.l.s4 1966171168
      %v4162 = vunpack.c.0.s8 %v4161
      %v4163 = vlaneseq
      %v4164 = vshrl.u32 %v4163, 7
      %v4165 = vsub.s32 %v4162, %v4164
      %v4166 = vrot.slane %v4152, %v4165
      %v4167 = vcombine.low %v4159, %v4166
      %v4168 = vcombine.high %v4159, %v4166
      %v4170 = vunpack.c.l.s4 1966171168
      %v4171 = vunpack.c.0.s8 %v4170
      %v4172 = vlaneseq
      %v4173 = vshrl.u32 %v4172, 7
      %v4174 = vsub.s32 %v4171, %v4173
      %v4175 = vrot.slane %v4167, %v4174
      %v4177 = vunpack.c.l.s4 1966171168
      %v4178 = vunpack.c.0.s8 %v4177
      %v4179 = vlaneseq
      %v4180 = vshrl.u32 %v4179, 7
      %v4181 = vsub.s32 %v4178, %v4180
      %v4182 = vrot.slane %v4168, %v4181
      %v4183 = vlaneseq
      %v4184 = vshrl.u32 %v4183, 7
      %v4185 = vsub.s32 0, %v4184
      %v4186 = vrot.slane %v4175, %v4185
      %v4187 = vlaneseq
      %v4188 = vshrl.u32 %v4187, 7
      %v4189 = vsub.s32 1, %v4188
      %v4190 = vrot.slane %v4175, %v4189
      %v4191 = vlaneseq
      %v4192 = vshrl.u32 %v4191, 7
      %v4193 = vsub.s32 2, %v4192
      %v4194 = vrot.slane %v4175, %v4193
      %v4195 = vlaneseq
      %v4196 = vshrl.u32 %v4195, 7
      %v4197 = vsub.s32 3, %v4196
      %v4198 = vrot.slane %v4175, %v4197
      %v4199 = vlaneseq
      %v4200 = vshrl.u32 %v4199, 7
      %v4201 = vsub.s32 0, %v4200
      %v4202 = vrot.slane %v4182, %v4201
      %v4203 = vlaneseq
      %v4204 = vshrl.u32 %v4203, 7
      %v4205 = vsub.s32 1, %v4204
      %v4206 = vrot.slane %v4182, %v4205
      %v4207 = vlaneseq
      %v4208 = vshrl.u32 %v4207, 7
      %v4209 = vsub.s32 2, %v4208
      %v4210 = vrot.slane %v4182, %v4209
      %v4211 = vlaneseq
      %v4212 = vshrl.u32 %v4211, 7
      %v4213 = vsub.s32 3, %v4212
      %v4214 = vrot.slane %v4182, %v4213
      %v4223 = vadd.f32 %v60, %v4186
      %v4224 = vadd.f32 %v61, %v4190
      %v4225 = vadd.f32 %v62, %v4194
      %v4226 = vadd.f32 %v63, %v4198
      %v4227 = vadd.f32 %v64, %v4186
      %v4228 = vadd.f32 %v65, %v4190
      %v4229 = vadd.f32 %v66, %v4194
      %v4230 = vadd.f32 %v67, %v4198
      %v4231 = vadd.f32 %v68, %v4186
      %v4232 = vadd.f32 %v69, %v4190
      %v4233 = vadd.f32 %v70, %v4194
      %v4234 = vadd.f32 %v71, %v4198
      %v4235 = vadd.f32 %v72, %v4186
      %v4236 = vadd.f32 %v73, %v4190
      %v4237 = vadd.f32 %v74, %v4194
      %v4238 = vadd.f32 %v75, %v4198
      %v4239 = vadd.f32 %v76, %v4186
      %v4240 = vadd.f32 %v77, %v4190
      %v4241 = vadd.f32 %v78, %v4194
      %v4242 = vadd.f32 %v79, %v4198
      %v4243 = vadd.f32 %v80, %v4186
      %v4244 = vadd.f32 %v81, %v4190
      %v4245 = vadd.f32 %v82, %v4194
      %v4246 = vadd.f32 %v83, %v4198
      %v4247 = vadd.f32 %v84, %v4186
      %v4248 = vadd.f32 %v85, %v4190
      %v4249 = vadd.f32 %v86, %v4194
      %v4250 = vadd.f32 %v87, %v4198
      %v4251 = vadd.f32 %v88, %v4186
      %v4252 = vadd.f32 %v89, %v4190
      %v4253 = vadd.f32 %v90, %v4194
      %v4254 = vadd.f32 %v91, %v4198
      %v4255 = vadd.f32 %v92, %v4202
      %v4256 = vadd.f32 %v93, %v4206
      %v4257 = vadd.f32 %v94, %v4210
      %v4258 = vadd.f32 %v95, %v4214
      %v4259 = vadd.f32 %v96, %v4202
      %v4260 = vadd.f32 %v97, %v4206
      %v4261 = vadd.f32 %v98, %v4210
      %v4262 = vadd.f32 %v99, %v4214
      %v4263 = vadd.f32 %v100, %v4202
      %v4264 = vadd.f32 %v101, %v4206
      %v4265 = vadd.f32 %v102, %v4210
      %v4266 = vadd.f32 %v103, %v4214
      %v4267 = vadd.f32 %v104, %v4202
      %v4268 = vadd.f32 %v105, %v4206
      %v4269 = vadd.f32 %v106, %v4210
      %v4270 = vadd.f32 %v107, %v4214
      %v4271 = vadd.f32 %v108, %v4202
      %v4272 = vadd.f32 %v109, %v4206
      %v4273 = vadd.f32 %v110, %v4210
      %v4274 = vadd.f32 %v111, %v4214
      %v4275 = vadd.f32 %v112, %v4202
      %v4276 = vadd.f32 %v113, %v4206
      %v4277 = vadd.f32 %v114, %v4210
      %v4278 = vadd.f32 %v115, %v4214
      %v4279 = vadd.f32 %v116, %v4202
      %v4280 = vadd.f32 %v117, %v4206
      %v4281 = vadd.f32 %v118, %v4210
      %v4282 = vadd.f32 %v119, %v4214
      %v4283 = vadd.f32 %v120, %v4202
      %v4284 = vadd.f32 %v121, %v4206
      %v4285 = vadd.f32 %v122, %v4210
      %v4286 = vadd.f32 %v123, %v4214
      %v4287 = vtanh.pop %v4223
      %v4288 = vtanh.pop %v4224
      %v4289 = vtanh.pop %v4225
      %v4290 = vtanh.pop %v4226
      %v4291 = vtanh.pop %v4227
      %v4292 = vtanh.pop %v4228
      %v4293 = vtanh.pop %v4229
      %v4294 = vtanh.pop %v4230
      %v4295 = vtanh.pop %v4231
      %v4296 = vtanh.pop %v4232
      %v4297 = vtanh.pop %v4233
      %v4298 = vtanh.pop %v4234
      %v4299 = vtanh.pop %v4235
      %v4300 = vtanh.pop %v4236
      %v4301 = vtanh.pop %v4237
      %v4302 = vtanh.pop %v4238
      %v4303 = vtanh.pop %v4239
      %v4304 = vtanh.pop %v4240
      %v4305 = vtanh.pop %v4241
      %v4306 = vtanh.pop %v4242
      %v4307 = vtanh.pop %v4243
      %v4308 = vtanh.pop %v4244
      %v4309 = vtanh.pop %v4245
      %v4310 = vtanh.pop %v4246
      %v4311 = vtanh.pop %v4247
      %v4312 = vtanh.pop %v4248
      %v4313 = vtanh.pop %v4249
      %v4314 = vtanh.pop %v4250
      %v4315 = vtanh.pop %v4251
      %v4316 = vtanh.pop %v4252
      %v4317 = vtanh.pop %v4253
      %v4318 = vtanh.pop %v4254
      %v4319 = vtanh.pop %v4255
      %v4320 = vtanh.pop %v4256
      %v4321 = vtanh.pop %v4257
      %v4322 = vtanh.pop %v4258
      %v4323 = vtanh.pop %v4259
      %v4324 = vtanh.pop %v4260
      %v4325 = vtanh.pop %v4261
      %v4326 = vtanh.pop %v4262
      %v4327 = vtanh.pop %v4263
      %v4328 = vtanh.pop %v4264
      %v4329 = vtanh.pop %v4265
      %v4330 = vtanh.pop %v4266
      %v4331 = vtanh.pop %v4267
      %v4332 = vtanh.pop %v4268
      %v4333 = vtanh.pop %v4269
      %v4334 = vtanh.pop %v4270
      %v4335 = vtanh.pop %v4271
      %v4336 = vtanh.pop %v4272
      %v4337 = vtanh.pop %v4273
      %v4338 = vtanh.pop %v4274
      %v4339 = vtanh.pop %v4275
      %v4340 = vtanh.pop %v4276
      %v4341 = vtanh.pop %v4277
      %v4342 = vtanh.pop %v4278
      %v4343 = vtanh.pop %v4279
      %v4344 = vtanh.pop %v4280
      %v4345 = vtanh.pop %v4281
      %v4346 = vtanh.pop %v4282
      %v4347 = vtanh.pop %v4283
      %v4348 = vtanh.pop %v4284
      %v4349 = vtanh.pop %v4285
      %v4350 = vtanh.pop %v4286
      %4351 = vmatprep.subr.mxu0 0.0
      %4352 = vmatpush1.msra.mxu0 %v654
      %4353 = vmatprep.subr.mxu0 0.0
      %4354 = vmatpush1.msra.mxu0 %v653
      %4355 = vmatprep.subr.mxu0 0.0
      %4356 = vmatpush1.msra.mxu0 %v652
      %4357 = vmatprep.subr.mxu0 0.0
      %4358 = vmatpush1.msra.mxu0 %v651
      %4359 = vmatprep.subr.mxu0 0.0
      %4360 = vmatpush1.msra.mxu0 %v650
      %4361 = vmatprep.subr.mxu0 0.0
      %4362 = vmatpush1.msra.mxu0 %v649
      %4363 = vmatprep.subr.mxu0 0.0
      %4364 = vmatpush1.msra.mxu0 %v648
      %4365 = vmatprep.subr.mxu0 0.0
      %4366 = vmatpush1.msra.mxu0 %v647
      %4367 = vmatprep.subr.mxu0 0.0
      %4368 = vmatpush1.msra.mxu0 %v646
      %4369 = vmatprep.subr.mxu0 0.0
      %4370 = vmatpush1.msra.mxu0 %v645
      %4371 = vmatprep.subr.mxu0 0.0
      %4372 = vmatpush1.msra.mxu0 %v644
      %4373 = vmatprep.subr.mxu0 0.0
      %4374 = vmatpush1.msra.mxu0 %v643
      %4375 = vmatprep.subr.mxu0 0.0
      %4376 = vmatpush1.msra.mxu0 %v642
      %4377 = vmatprep.subr.mxu0 0.0
      %4378 = vmatpush1.msra.mxu0 %v641
      %4379 = vmatprep.subr.mxu0 0.0
      %4380 = vmatpush1.msra.mxu0 %v640
      %4381 = vmatprep.subr.mxu0 0.0
      %4382 = vmatpush1.msra.mxu0 %v639
      %4383 = vmatprep.subr.mxu0 0.0
      %4384 = vmatpush2.msra.mxu0 %v670
      %4385 = vmatprep.subr.mxu0 0.0
      %4386 = vmatpush2.msra.mxu0 %v669
      %4387 = vmatprep.subr.mxu0 0.0
      %4388 = vmatpush2.msra.mxu0 %v668
      %4389 = vmatprep.subr.mxu0 0.0
      %4390 = vmatpush2.msra.mxu0 %v667
      %4391 = vmatprep.subr.mxu0 0.0
      %4392 = vmatpush2.msra.mxu0 %v666
      %4393 = vmatprep.subr.mxu0 0.0
      %4394 = vmatpush2.msra.mxu0 %v665
      %4395 = vmatprep.subr.mxu0 0.0
      %4396 = vmatpush2.msra.mxu0 %v664
      %4397 = vmatprep.subr.mxu0 0.0
      %4398 = vmatpush2.msra.mxu0 %v663
      %4399 = vmatprep.subr.mxu0 0.0
      %4400 = vmatpush2.msra.mxu0 %v662
      %4401 = vmatprep.subr.mxu0 0.0
      %4402 = vmatpush2.msra.mxu0 %v661
      %4403 = vmatprep.subr.mxu0 0.0
      %4404 = vmatpush2.msra.mxu0 %v660
      %4405 = vmatprep.subr.mxu0 0.0
      %4406 = vmatpush2.msra.mxu0 %v659
      %4407 = vmatprep.subr.mxu0 0.0
      %4408 = vmatpush2.msra.mxu0 %v658
      %4409 = vmatprep.subr.mxu0 0.0
      %4410 = vmatpush2.msra.mxu0 %v657
      %4411 = vmatprep.subr.mxu0 0.0
      %4412 = vmatpush2.msra.mxu0 %v656
      %4413 = vmatprep.subr.mxu0 0.0
      %4414 = vmatpush2.msra.mxu0 %v655
      %4415 = vmatprep.mubr.f32.mxu0 %v4288
      %4416 = vmatmul.mubr.f32.gmra.mxu0 %v4287
      %v4417 = vpop.f32.mrf.mxu0
      %v4418 = vadd.f32 0.0, %v4417
      %v4419 = vpop.f32.mrf.mxu0
      %4420 = vmatprep.mubr.f32.mxu0 %v4292
      %4421 = vmatmul.mubr.f32.gmra.mxu0 %v4291
      %v4422 = vpop.f32.mrf.mxu0
      %v4423 = vadd.f32 0.0, %v4422
      %v4424 = vpop.f32.mrf.mxu0
      %4425 = vmatprep.mubr.f32.mxu0 %v4296
      %4426 = vmatmul.mubr.f32.gmra.mxu0 %v4295
      %v4427 = vpop.f32.mrf.mxu0
      %v4428 = vadd.f32 0.0, %v4427
      %v4429 = vpop.f32.mrf.mxu0
      %4430 = vmatprep.mubr.f32.mxu0 %v4300
      %4431 = vmatmul.mubr.f32.gmra.mxu0 %v4299
      %v4432 = vpop.f32.mrf.mxu0
      %v4433 = vadd.f32 0.0, %v4432
      %v4434 = vpop.f32.mrf.mxu0
      %4435 = vmatprep.mubr.f32.mxu0 %v4304
      %4436 = vmatmul.mubr.f32.gmra.mxu0 %v4303
      %v4437 = vpop.f32.mrf.mxu0
      %v4438 = vadd.f32 0.0, %v4437
      %v4439 = vpop.f32.mrf.mxu0
      %4440 = vmatprep.mubr.f32.mxu0 %v4308
      %4441 = vmatmul.mubr.f32.gmra.mxu0 %v4307
      %v4442 = vpop.f32.mrf.mxu0
      %v4443 = vadd.f32 0.0, %v4442
      %v4444 = vpop.f32.mrf.mxu0
      %4445 = vmatprep.mubr.f32.mxu0 %v4312
      %4446 = vmatmul.mubr.f32.gmra.mxu0 %v4311
      %v4447 = vpop.f32.mrf.mxu0
      %v4448 = vadd.f32 0.0, %v4447
      %v4449 = vpop.f32.mrf.mxu0
      %4450 = vmatprep.mubr.f32.mxu0 %v4316
      %4451 = vmatmul.mubr.f32.gmra.mxu0 %v4315
      %v4452 = vpop.f32.mrf.mxu0
      %v4453 = vadd.f32 0.0, %v4452
      %v4454 = vpop.f32.mrf.mxu0
      %4455 = vmatprep.mubr.f32.mxu0 %v4320
      %4456 = vmatmul.mubr.f32.gmra.mxu0 %v4319
      %v4457 = vpop.f32.mrf.mxu0
      %v4458 = vadd.f32 0.0, %v4457
      %v4459 = vpop.f32.mrf.mxu0
      %4460 = vmatprep.mubr.f32.mxu0 %v4324
      %4461 = vmatmul.mubr.f32.gmra.mxu0 %v4323
      %v4462 = vpop.f32.mrf.mxu0
      %v4463 = vadd.f32 0.0, %v4462
      %v4464 = vpop.f32.mrf.mxu0
      %4465 = vmatprep.mubr.f32.mxu0 %v4328
      %4466 = vmatmul.mubr.f32.gmra.mxu0 %v4327
      %v4467 = vpop.f32.mrf.mxu0
      %v4468 = vadd.f32 0.0, %v4467
      %v4469 = vpop.f32.mrf.mxu0
      %4470 = vmatprep.mubr.f32.mxu0 %v4332
      %4471 = vmatmul.mubr.f32.gmra.mxu0 %v4331
      %v4472 = vpop.f32.mrf.mxu0
      %v4473 = vadd.f32 0.0, %v4472
      %v4474 = vpop.f32.mrf.mxu0
      %4475 = vmatprep.mubr.f32.mxu0 %v4336
      %4476 = vmatmul.mubr.f32.gmra.mxu0 %v4335
      %v4477 = vpop.f32.mrf.mxu0
      %v4478 = vadd.f32 0.0, %v4477
      %v4479 = vpop.f32.mrf.mxu0
      %4480 = vmatprep.mubr.f32.mxu0 %v4340
      %4481 = vmatmul.mubr.f32.gmra.mxu0 %v4339
      %v4482 = vpop.f32.mrf.mxu0
      %v4483 = vadd.f32 0.0, %v4482
      %v4484 = vpop.f32.mrf.mxu0
      %4485 = vmatprep.mubr.f32.mxu0 %v4344
      %4486 = vmatmul.mubr.f32.gmra.mxu0 %v4343
      %v4487 = vpop.f32.mrf.mxu0
      %v4488 = vadd.f32 0.0, %v4487
      %v4489 = vpop.f32.mrf.mxu0
      %4490 = vmatprep.mubr.f32.mxu0 %v4348
      %4491 = vmatmul.mubr.f32.gmra.mxu0 %v4347
      %v4492 = vpop.f32.mrf.mxu0
      %v4493 = vadd.f32 0.0, %v4492
      %v4494 = vpop.f32.mrf.mxu0
      %4495 = vdwg.mxu0
      %4496 = vmatprep.subr.mxu0 0.0
      %4497 = vmatpush1.msra.mxu0 %v686
      %4498 = vmatprep.subr.mxu0 0.0
      %4499 = vmatpush1.msra.mxu0 %v685
      %4500 = vmatprep.subr.mxu0 0.0
      %4501 = vmatpush1.msra.mxu0 %v684
      %4502 = vmatprep.subr.mxu0 0.0
      %4503 = vmatpush1.msra.mxu0 %v683
      %4504 = vmatprep.subr.mxu0 0.0
      %4505 = vmatpush1.msra.mxu0 %v682
      %4506 = vmatprep.subr.mxu0 0.0
      %4507 = vmatpush1.msra.mxu0 %v681
      %4508 = vmatprep.subr.mxu0 0.0
      %4509 = vmatpush1.msra.mxu0 %v680
      %4510 = vmatprep.subr.mxu0 0.0
      %4511 = vmatpush1.msra.mxu0 %v679
      %4512 = vmatprep.subr.mxu0 0.0
      %4513 = vmatpush1.msra.mxu0 %v678
      %4514 = vmatprep.subr.mxu0 0.0
      %4515 = vmatpush1.msra.mxu0 %v677
      %4516 = vmatprep.subr.mxu0 0.0
      %4517 = vmatpush1.msra.mxu0 %v676
      %4518 = vmatprep.subr.mxu0 0.0
      %4519 = vmatpush1.msra.mxu0 %v675
      %4520 = vmatprep.subr.mxu0 0.0
      %4521 = vmatpush1.msra.mxu0 %v674
      %4522 = vmatprep.subr.mxu0 0.0
      %4523 = vmatpush1.msra.mxu0 %v673
      %4524 = vmatprep.subr.mxu0 0.0
      %4525 = vmatpush1.msra.mxu0 %v672
      %4526 = vmatprep.subr.mxu0 0.0
      %4527 = vmatpush1.msra.mxu0 %v671
      %4528 = vmatprep.subr.mxu0 0.0
      %4529 = vmatpush2.msra.mxu0 %v702
      %4530 = vmatprep.subr.mxu0 0.0
      %4531 = vmatpush2.msra.mxu0 %v701
      %4532 = vmatprep.subr.mxu0 0.0
      %4533 = vmatpush2.msra.mxu0 %v700
      %4534 = vmatprep.subr.mxu0 0.0
      %4535 = vmatpush2.msra.mxu0 %v699
      %4536 = vmatprep.subr.mxu0 0.0
      %4537 = vmatpush2.msra.mxu0 %v698
      %4538 = vmatprep.subr.mxu0 0.0
      %4539 = vmatpush2.msra.mxu0 %v697
      %4540 = vmatprep.subr.mxu0 0.0
      %4541 = vmatpush2.msra.mxu0 %v696
      %4542 = vmatprep.subr.mxu0 0.0
      %4543 = vmatpush2.msra.mxu0 %v695
      %4544 = vmatprep.subr.mxu0 0.0
      %4545 = vmatpush2.msra.mxu0 %v694
      %4546 = vmatprep.subr.mxu0 0.0
      %4547 = vmatpush2.msra.mxu0 %v693
      %4548 = vmatprep.subr.mxu0 0.0
      %4549 = vmatpush2.msra.mxu0 %v692
      %4550 = vmatprep.subr.mxu0 0.0
      %4551 = vmatpush2.msra.mxu0 %v691
      %4552 = vmatprep.subr.mxu0 0.0
      %4553 = vmatpush2.msra.mxu0 %v690
      %4554 = vmatprep.subr.mxu0 0.0
      %4555 = vmatpush2.msra.mxu0 %v689
      %4556 = vmatprep.subr.mxu0 0.0
      %4557 = vmatpush2.msra.mxu0 %v688
      %4558 = vmatprep.subr.mxu0 0.0
      %4559 = vmatpush2.msra.mxu0 %v687
      %4560 = vmatprep.mubr.f32.mxu0 %v4290
      %4561 = vmatmul.mubr.f32.gmra.mxu0 %v4289
      %v4562 = vpop.f32.mrf.mxu0
      %v4563 = vadd.f32 %v4418, %v4562
      %v4564 = vpop.f32.mrf.mxu0
      %4565 = vmatprep.mubr.f32.mxu0 %v4294
      %4566 = vmatmul.mubr.f32.gmra.mxu0 %v4293
      %v4567 = vpop.f32.mrf.mxu0
      %v4568 = vadd.f32 %v4423, %v4567
      %v4569 = vpop.f32.mrf.mxu0
      %4570 = vmatprep.mubr.f32.mxu0 %v4298
      %4571 = vmatmul.mubr.f32.gmra.mxu0 %v4297
      %v4572 = vpop.f32.mrf.mxu0
      %v4573 = vadd.f32 %v4428, %v4572
      %v4574 = vpop.f32.mrf.mxu0
      %4575 = vmatprep.mubr.f32.mxu0 %v4302
      %4576 = vmatmul.mubr.f32.gmra.mxu0 %v4301
      %v4577 = vpop.f32.mrf.mxu0
      %v4578 = vadd.f32 %v4433, %v4577
      %v4579 = vpop.f32.mrf.mxu0
      %4580 = vmatprep.mubr.f32.mxu0 %v4306
      %4581 = vmatmul.mubr.f32.gmra.mxu0 %v4305
      %v4582 = vpop.f32.mrf.mxu0
      %v4583 = vadd.f32 %v4438, %v4582
      %v4584 = vpop.f32.mrf.mxu0
      %4585 = vmatprep.mubr.f32.mxu0 %v4310
      %4586 = vmatmul.mubr.f32.gmra.mxu0 %v4309
      %v4587 = vpop.f32.mrf.mxu0
      %v4588 = vadd.f32 %v4443, %v4587
      %v4589 = vpop.f32.mrf.mxu0
      %4590 = vmatprep.mubr.f32.mxu0 %v4314
      %4591 = vmatmul.mubr.f32.gmra.mxu0 %v4313
      %v4592 = vpop.f32.mrf.mxu0
      %v4593 = vadd.f32 %v4448, %v4592
      %v4594 = vpop.f32.mrf.mxu0
      %4595 = vmatprep.mubr.f32.mxu0 %v4318
      %4596 = vmatmul.mubr.f32.gmra.mxu0 %v4317
      %v4597 = vpop.f32.mrf.mxu0
      %v4598 = vadd.f32 %v4453, %v4597
      %v4599 = vpop.f32.mrf.mxu0
      %4600 = vmatprep.mubr.f32.mxu0 %v4322
      %4601 = vmatmul.mubr.f32.gmra.mxu0 %v4321
      %v4602 = vpop.f32.mrf.mxu0
      %v4603 = vadd.f32 %v4458, %v4602
      %v4604 = vpop.f32.mrf.mxu0
      %4605 = vmatprep.mubr.f32.mxu0 %v4326
      %4606 = vmatmul.mubr.f32.gmra.mxu0 %v4325
      %v4607 = vpop.f32.mrf.mxu0
      %v4608 = vadd.f32 %v4463, %v4607
      %v4609 = vpop.f32.mrf.mxu0
      %4610 = vmatprep.mubr.f32.mxu0 %v4330
      %4611 = vmatmul.mubr.f32.gmra.mxu0 %v4329
      %v4612 = vpop.f32.mrf.mxu0
      %v4613 = vadd.f32 %v4468, %v4612
      %v4614 = vpop.f32.mrf.mxu0
      %4615 = vmatprep.mubr.f32.mxu0 %v4334
      %4616 = vmatmul.mubr.f32.gmra.mxu0 %v4333
      %v4617 = vpop.f32.mrf.mxu0
      %v4618 = vadd.f32 %v4473, %v4617
      %v4619 = vpop.f32.mrf.mxu0
      %4620 = vmatprep.mubr.f32.mxu0 %v4338
      %4621 = vmatmul.mubr.f32.gmra.mxu0 %v4337
      %v4622 = vpop.f32.mrf.mxu0
      %v4623 = vadd.f32 %v4478, %v4622
      %v4624 = vpop.f32.mrf.mxu0
      %4625 = vmatprep.mubr.f32.mxu0 %v4342
      %4626 = vmatmul.mubr.f32.gmra.mxu0 %v4341
      %v4627 = vpop.f32.mrf.mxu0
      %v4628 = vadd.f32 %v4483, %v4627
      %v4629 = vpop.f32.mrf.mxu0
      %4630 = vmatprep.mubr.f32.mxu0 %v4346
      %4631 = vmatmul.mubr.f32.gmra.mxu0 %v4345
      %v4632 = vpop.f32.mrf.mxu0
      %v4633 = vadd.f32 %v4488, %v4632
      %v4634 = vpop.f32.mrf.mxu0
      %4635 = vmatprep.mubr.f32.mxu0 %v4350
      %4636 = vmatmul.mubr.f32.gmra.mxu0 %v4349
      %v4637 = vpop.f32.mrf.mxu0
      %v4638 = vadd.f32 %v4493, %v4637
      %v4639 = vpop.f32.mrf.mxu0
      %4640 = vdwg.mxu0
      %vm4641 = vcmask 7168
      %v4642 = vsel %vm4641, %v4563, -inf
      %v4643 = vsel %vm4641, %v4568, -inf
      %v4644 = vsel %vm4641, %v4573, -inf
      %v4645 = vmax.f32 %v4642, %v4644
      %v4646 = vsel %vm4641, %v4578, -inf
      %v4647 = vmax.f32 %v4643, %v4646
      %v4648 = vsel %vm4641, %v4583, -inf
      %v4649 = vmax.f32 %v4645, %v4648
      %v4650 = vsel %vm4641, %v4588, -inf
      %v4651 = vmax.f32 %v4647, %v4650
      %v4652 = vsel %vm4641, %v4593, -inf
      %v4653 = vmax.f32 %v4649, %v4652
      %v4654 = vsel %vm4641, %v4598, -inf
      %v4655 = vmax.f32 %v4651, %v4654
      %v4656 = vmax.f32 %v4653, %v4655
      %v4657 = vrot.slane %v4656, 4
      %v4658 = vmax.f32 %v4656, %v4657
      %v4659 = vrot.slane %v4658, 2
      %v4660 = vmax.f32 %v4658, %v4659
      %v4661 = vrot.slane %v4660, 1
      %v4662 = vmax.f32 %v4660, %v4661
      %v4663 = vsel %vm4641, %v4603, -inf
      %v4664 = vsel %vm4641, %v4608, -inf
      %v4665 = vsel %vm4641, %v4613, -inf
      %v4666 = vmax.f32 %v4663, %v4665
      %v4667 = vsel %vm4641, %v4618, -inf
      %v4668 = vmax.f32 %v4664, %v4667
      %v4669 = vsel %vm4641, %v4623, -inf
      %v4670 = vmax.f32 %v4666, %v4669
      %v4671 = vsel %vm4641, %v4628, -inf
      %v4672 = vmax.f32 %v4668, %v4671
      %v4673 = vsel %vm4641, %v4633, -inf
      %v4674 = vmax.f32 %v4670, %v4673
      %v4675 = vsel %vm4641, %v4638, -inf
      %v4676 = vmax.f32 %v4672, %v4675
      %v4677 = vmax.f32 %v4674, %v4676
      %v4678 = vrot.slane %v4677, 4
      %v4679 = vmax.f32 %v4677, %v4678
      %v4680 = vrot.slane %v4679, 2
      %v4681 = vmax.f32 %v4679, %v4680
      %v4682 = vrot.slane %v4681, 1
      %v4683 = vmax.f32 %v4681, %v4682
      %v4684 = vsub.f32 %v4563, %v4662
      %v4685 = vsub.f32 %v4568, %v4662
      %v4686 = vsub.f32 %v4573, %v4662
      %v4687 = vsub.f32 %v4578, %v4662
      %v4688 = vsub.f32 %v4583, %v4662
      %v4689 = vsub.f32 %v4588, %v4662
      %v4690 = vsub.f32 %v4593, %v4662
      %v4691 = vsub.f32 %v4598, %v4662
      %v4692 = vsub.f32 %v4603, %v4683
      %v4693 = vsub.f32 %v4608, %v4683
      %v4694 = vsub.f32 %v4613, %v4683
      %v4695 = vsub.f32 %v4618, %v4683
      %v4696 = vsub.f32 %v4623, %v4683
      %v4697 = vsub.f32 %v4628, %v4683
      %v4698 = vsub.f32 %v4633, %v4683
      %v4699 = vsub.f32 %v4638, %v4683
      %v4700 = vmul.f32 %v4684, 1.442695
      %v4701 = vpow.pop %v4700
      %v4702 = vmul.f32 %v4685, 1.442695
      %v4703 = vpow.pop %v4702
      %v4704 = vmul.f32 %v4686, 1.442695
      %v4705 = vpow.pop %v4704
      %v4706 = vmul.f32 %v4687, 1.442695
      %v4707 = vpow.pop %v4706
      %v4708 = vmul.f32 %v4688, 1.442695
      %v4709 = vpow.pop %v4708
      %v4710 = vmul.f32 %v4689, 1.442695
      %v4711 = vpow.pop %v4710
      %v4712 = vmul.f32 %v4690, 1.442695
      %v4713 = vpow.pop %v4712
      %v4714 = vmul.f32 %v4691, 1.442695
      %v4715 = vpow.pop %v4714
      %v4716 = vmul.f32 %v4692, 1.442695
      %v4717 = vpow.pop %v4716
      %v4718 = vmul.f32 %v4693, 1.442695
      %v4719 = vpow.pop %v4718
      %v4720 = vmul.f32 %v4694, 1.442695
      %v4721 = vpow.pop %v4720
      %v4722 = vmul.f32 %v4695, 1.442695
      %v4723 = vpow.pop %v4722
      %v4724 = vmul.f32 %v4696, 1.442695
      %v4725 = vpow.pop %v4724
      %v4726 = vmul.f32 %v4697, 1.442695
      %v4727 = vpow.pop %v4726
      %v4728 = vmul.f32 %v4698, 1.442695
      %v4729 = vpow.pop %v4728
      %v4730 = vmul.f32 %v4699, 1.442695
      %v4731 = vpow.pop %v4730
      %v4732 = vsel %vm4641, %v4701, 0.0
      %v4733 = vsel %vm4641, %v4703, 0.0
      %v4734 = vadd.f32 %v4732, %v4733
      %v4735 = vsel %vm4641, %v4705, 0.0
      %v4736 = vadd.f32 %v4734, %v4735
      %v4737 = vsel %vm4641, %v4707, 0.0
      %v4738 = vadd.f32 %v4736, %v4737
      %v4739 = vsel %vm4641, %v4709, 0.0
      %v4740 = vadd.f32 %v4738, %v4739
      %v4741 = vsel %vm4641, %v4711, 0.0
      %v4742 = vadd.f32 %v4740, %v4741
      %v4743 = vsel %vm4641, %v4713, 0.0
      %v4744 = vadd.f32 %v4742, %v4743
      %v4745 = vsel %vm4641, %v4715, 0.0
      %v4746 = vadd.f32 %v4744, %v4745
      %v4747 = vrot.slane %v4746, 4
      %v4748 = vadd.f32 %v4746, %v4747
      %v4749 = vrot.slane %v4748, 2
      %v4750 = vadd.f32 %v4748, %v4749
      %v4751 = vrot.slane %v4750, 1
      %v4752 = vadd.f32 %v4750, %v4751
      %v4753 = vsel %vm4641, %v4717, 0.0
      %v4754 = vsel %vm4641, %v4719, 0.0
      %v4755 = vadd.f32 %v4753, %v4754
      %v4756 = vsel %vm4641, %v4721, 0.0
      %v4757 = vadd.f32 %v4755, %v4756
      %v4758 = vsel %vm4641, %v4723, 0.0
      %v4759 = vadd.f32 %v4757, %v4758
      %v4760 = vsel %vm4641, %v4725, 0.0
      %v4761 = vadd.f32 %v4759, %v4760
      %v4762 = vsel %vm4641, %v4727, 0.0
      %v4763 = vadd.f32 %v4761, %v4762
      %v4764 = vsel %vm4641, %v4729, 0.0
      %v4765 = vadd.f32 %v4763, %v4764
      %v4766 = vsel %vm4641, %v4731, 0.0
      %v4767 = vadd.f32 %v4765, %v4766
      %v4768 = vrot.slane %v4767, 4
      %v4769 = vadd.f32 %v4767, %v4768
      %v4770 = vrot.slane %v4769, 2
      %v4771 = vadd.f32 %v4769, %v4770
      %v4772 = vrot.slane %v4771, 1
      %v4773 = vadd.f32 %v4771, %v4772
      %v4774 = vrcp.pop %v4752
      %v4775 = vrcp.pop %v4773
      %v4776 = vmul.f32 %v4701, %v4774
      %v4777 = vmul.f32 %v4703, %v4774
      %v4778 = vmul.f32 %v4705, %v4774
      %v4779 = vmul.f32 %v4707, %v4774
      %v4780 = vmul.f32 %v4709, %v4774
      %v4781 = vmul.f32 %v4711, %v4774
      %v4782 = vmul.f32 %v4713, %v4774
      %v4783 = vmul.f32 %v4715, %v4774
      %v4784 = vmul.f32 %v4717, %v4775
      %v4785 = vmul.f32 %v4719, %v4775
      %v4786 = vmul.f32 %v4721, %v4775
      %v4787 = vmul.f32 %v4723, %v4775
      %v4788 = vmul.f32 %v4725, %v4775
      %v4789 = vmul.f32 %v4727, %v4775
      %v4790 = vmul.f32 %v4729, %v4775
      %v4791 = vmul.f32 %v4731, %v4775
      %4793 = vset.pattern.permute.xlu0 0
      %4794 = vperm.xlu0 %4793, %v4776
      %v4795 = vpop.permute.xlu0 %4794
      %4798 = vset.pattern.permute.xlu0 0
      %4799 = vperm.xlu0 %4798, %v4777
      %v4800 = vpop.permute.xlu0 %4799
      %4803 = vset.pattern.permute.xlu0 0
      %4804 = vperm.xlu0 %4803, %v4778
      %v4805 = vpop.permute.xlu0 %4804
      %4808 = vset.pattern.permute.xlu0 0
      %4809 = vperm.xlu0 %4808, %v4779
      %v4810 = vpop.permute.xlu0 %4809
      %4813 = vset.pattern.permute.xlu0 0
      %4814 = vperm.xlu0 %4813, %v4780
      %v4815 = vpop.permute.xlu0 %4814
      %4818 = vset.pattern.permute.xlu0 0
      %4819 = vperm.xlu0 %4818, %v4781
      %v4820 = vpop.permute.xlu0 %4819
      %4823 = vset.pattern.permute.xlu0 0
      %4824 = vperm.xlu0 %4823, %v4782
      %v4825 = vpop.permute.xlu0 %4824
      %4828 = vset.pattern.permute.xlu0 0
      %4829 = vperm.xlu0 %4828, %v4783
      %v4830 = vpop.permute.xlu0 %4829
      %4833 = vset.pattern.permute.xlu0 0
      %4834 = vperm.xlu0 %4833, %v4784
      %v4835 = vpop.permute.xlu0 %4834
      %4838 = vset.pattern.permute.xlu0 0
      %4839 = vperm.xlu0 %4838, %v4785
      %v4840 = vpop.permute.xlu0 %4839
      %4843 = vset.pattern.permute.xlu0 0
      %4844 = vperm.xlu0 %4843, %v4786
      %v4845 = vpop.permute.xlu0 %4844
      %4848 = vset.pattern.permute.xlu0 0
      %4849 = vperm.xlu0 %4848, %v4787
      %v4850 = vpop.permute.xlu0 %4849
      %4853 = vset.pattern.permute.xlu0 0
      %4854 = vperm.xlu0 %4853, %v4788
      %v4855 = vpop.permute.xlu0 %4854
      %4858 = vset.pattern.permute.xlu0 0
      %4859 = vperm.xlu0 %4858, %v4789
      %v4860 = vpop.permute.xlu0 %4859
      %4863 = vset.pattern.permute.xlu0 0
      %4864 = vperm.xlu0 %4863, %v4790
      %v4865 = vpop.permute.xlu0 %4864
      %4868 = vset.pattern.permute.xlu0 0
      %4869 = vperm.xlu0 %4868, %v4791
      %v4870 = vpop.permute.xlu0 %4869
      %v4872 = vmul.f32 %v4795, %v44
      %v4873 = vmul.f32 %v4800, %v45
      %v4874 = vmul.f32 %v4805, %v46
      %v4875 = vmul.f32 %v4810, %v47
      %v4876 = vmul.f32 %v4815, %v48
      %v4877 = vmul.f32 %v4820, %v49
      %v4878 = vmul.f32 %v4825, %v50
      %v4879 = vmul.f32 %v4830, %v51
      %v4880 = vmul.f32 %v4835, %v52
      %v4881 = vmul.f32 %v4840, %v53
      %v4882 = vmul.f32 %v4845, %v54
      %v4883 = vmul.f32 %v4850, %v55
      %v4884 = vmul.f32 %v4855, %v56
      %v4885 = vmul.f32 %v4860, %v57
      %v4886 = vmul.f32 %v4865, %v58
      %v4887 = vmul.f32 %v4870, %v59
      %v4888 = vadd.f32 %v4872, %v4873
      %v4889 = vadd.f32 %v4888, %v4874
      %v4890 = vadd.f32 %v4889, %v4875
      %v4891 = vadd.f32 %v4890, %v4876
      %v4892 = vadd.f32 %v4891, %v4877
      %v4893 = vadd.f32 %v4892, %v4878
      %v4894 = vadd.f32 %v4893, %v4879
      %v4895 = vrot.slane %v4894, 4
      %v4896 = vadd.f32 %v4894, %v4895
      %v4897 = vrot.slane %v4896, 2
      %v4898 = vadd.f32 %v4896, %v4897
      %v4899 = vrot.slane %v4898, 1
      %v4900 = vadd.f32 %v4898, %v4899
      %v4901 = vadd.f32 %v4880, %v4881
      %v4902 = vadd.f32 %v4901, %v4882
      %v4903 = vadd.f32 %v4902, %v4883
      %v4904 = vadd.f32 %v4903, %v4884
      %v4905 = vadd.f32 %v4904, %v4885
      %v4906 = vadd.f32 %v4905, %v4886
      %v4907 = vadd.f32 %v4906, %v4887
      %v4908 = vrot.slane %v4907, 4
      %v4909 = vadd.f32 %v4907, %v4908
      %v4910 = vrot.slane %v4909, 2
      %v4911 = vadd.f32 %v4909, %v4910
      %v4912 = vrot.slane %v4911, 1
      %v4913 = vadd.f32 %v4911, %v4912
      %s4914 = smul.u32 %s800, 12
      %s4915 = smul.addr %s4914, 2
      %s4916 = scalar_lea.vmem %s2, %s4915
      %v4917 = vld [vmem:[%s4916] sm:$0xff]
      %v4918 = vld [vmem:[%s4916 + $0x8] sm:$0xff]
      %v4919 = vld [vmem:[%s4916 + $0x10] sm:$0xff]
      %v4920 = vpack.c.bf16 %v4900, %v4900
      %v4921 = vpack.c.bf16 %v4913, %v4913
      %v4924 = vunpack.c.l.b16 %v4920
      %v4925 = vunpack.c.l.b16 %v4921
      %vm4926 = vcmask 1041409
      %v4927 = vsel %vm4926, %v4925, %v4924
      %v4928 = vpack.c.b16 %v4927, %v4927
      %v5026 = vunpack.c.l.b16 %v703
      %v5027 = vunpack.c.h.b16 %v703
      %v5028 = vunpack.c.l.b16 %v704
      %v5029 = vunpack.c.h.b16 %v704
      %v5030 = vunpack.c.l.b16 %v705
      %v5031 = vunpack.c.h.b16 %v705
      %v5032 = vunpack.c.l.b16 %v706
      %v5033 = vunpack.c.h.b16 %v706
      %v5034 = vunpack.c.l.b16 %v707
      %v5035 = vunpack.c.h.b16 %v707
      %v5036 = vunpack.c.l.b16 %v708
      %v5037 = vunpack.c.h.b16 %v708
      %v5038 = vunpack.c.l.b16 %v709
      %v5039 = vunpack.c.h.b16 %v709
      %v5040 = vunpack.c.l.b16 %v710
      %v5041 = vunpack.c.h.b16 %v710
      %v5042 = vunpack.c.l.b16 %v711
      %v5043 = vunpack.c.h.b16 %v711
      %v5044 = vunpack.c.l.b16 %v712
      %v5045 = vunpack.c.h.b16 %v712
      %v5046 = vunpack.c.l.b16 %v713
      %v5047 = vunpack.c.h.b16 %v713
      %v5048 = vunpack.c.l.b16 %v714
      %v5049 = vunpack.c.h.b16 %v714
      %v5050 = vunpack.c.l.b16 %v715
      %v5051 = vunpack.c.h.b16 %v715
      %v5052 = vunpack.c.l.b16 %v716
      %v5053 = vunpack.c.h.b16 %v716
      %v5054 = vunpack.c.l.b16 %v717
      %v5055 = vunpack.c.h.b16 %v717
      %v5056 = vunpack.c.l.b16 %v718
      %v5057 = vunpack.c.h.b16 %v718
      %v5058 = vunpack.c.l.b16 %v719
      %v5059 = vunpack.c.h.b16 %v719
      %v5060 = vunpack.c.l.b16 %v720
      %v5061 = vunpack.c.h.b16 %v720
      %v5062 = vunpack.c.l.b16 %v721
      %v5063 = vunpack.c.h.b16 %v721
      %v5064 = vunpack.c.l.b16 %v722
      %v5065 = vunpack.c.h.b16 %v722
      %v5066 = vunpack.c.l.b16 %v723
      %v5067 = vunpack.c.h.b16 %v723
      %v5068 = vunpack.c.l.b16 %v724
      %v5069 = vunpack.c.h.b16 %v724
      %v5070 = vunpack.c.l.b16 %v725
      %v5071 = vunpack.c.h.b16 %v725
      %v5072 = vunpack.c.l.b16 %v726
      %v5073 = vunpack.c.h.b16 %v726
      %v5074 = vunpack.c.l.b16 %v727
      %v5075 = vunpack.c.h.b16 %v727
      %v5076 = vunpack.c.l.b16 %v728
      %v5077 = vunpack.c.h.b16 %v728
      %v5078 = vunpack.c.l.b16 %v729
      %v5079 = vunpack.c.h.b16 %v729
      %v5080 = vunpack.c.l.b16 %v730
      %v5081 = vunpack.c.h.b16 %v730
      %v5082 = vunpack.c.l.b16 %v731
      %v5083 = vunpack.c.h.b16 %v731
      %v5084 = vunpack.c.l.b16 %v732
      %v5085 = vunpack.c.h.b16 %v732
      %v5086 = vunpack.c.l.b16 %v733
      %v5087 = vunpack.c.h.b16 %v733
      %v5088 = vunpack.c.l.b16 %v734
      %v5089 = vunpack.c.h.b16 %v734
      %v5090 = vunpack.c.l.b16 %v735
      %v5091 = vunpack.c.h.b16 %v735
      %v5092 = vunpack.c.l.b16 %v736
      %v5093 = vunpack.c.h.b16 %v736
      %v5094 = vunpack.c.l.b16 %v737
      %v5095 = vunpack.c.h.b16 %v737
      %v5096 = vunpack.c.l.b16 %v738
      %v5097 = vunpack.c.h.b16 %v738
      %v5098 = vunpack.c.l.b16 %v739
      %v5099 = vunpack.c.h.b16 %v739
      %v5100 = vunpack.c.l.b16 %v740
      %v5101 = vunpack.c.h.b16 %v740
      %v5102 = vunpack.c.l.b16 %v741
      %v5103 = vunpack.c.h.b16 %v741
      %v5104 = vunpack.c.l.b16 %v742
      %v5105 = vunpack.c.h.b16 %v742
      %v5106 = vunpack.c.l.b16 %v743
      %v5107 = vunpack.c.h.b16 %v743
      %v5108 = vunpack.c.l.b16 %v744
      %v5109 = vunpack.c.h.b16 %v744
      %v5110 = vunpack.c.l.b16 %v745
      %v5111 = vunpack.c.h.b16 %v745
      %v5112 = vunpack.c.l.b16 %v746
      %v5113 = vunpack.c.h.b16 %v746
      %v5114 = vunpack.c.l.b16 %v747
      %v5115 = vunpack.c.h.b16 %v747
      %v5116 = vunpack.c.l.b16 %v748
      %v5117 = vunpack.c.h.b16 %v748
      %v5118 = vunpack.c.l.b16 %v749
      %v5119 = vunpack.c.h.b16 %v749
      %v5120 = vunpack.c.l.b16 %v750
      %v5121 = vunpack.c.h.b16 %v750
      %v5122 = vunpack.c.l.b16 %v751
      %v5123 = vunpack.c.h.b16 %v751
      %v5124 = vunpack.c.l.b16 %v752
      %v5125 = vunpack.c.h.b16 %v752
      %v5126 = vunpack.c.l.b16 %v753
      %v5127 = vunpack.c.h.b16 %v753
      %v5128 = vunpack.c.l.b16 %v754
      %v5129 = vunpack.c.h.b16 %v754
      %v5130 = vunpack.c.l.b16 %v755
      %v5131 = vunpack.c.h.b16 %v755
      %v5132 = vunpack.c.l.b16 %v756
      %v5133 = vunpack.c.h.b16 %v756
      %v5134 = vunpack.c.l.b16 %v757
      %v5135 = vunpack.c.h.b16 %v757
      %v5136 = vunpack.c.l.b16 %v758
      %v5137 = vunpack.c.h.b16 %v758
      %v5138 = vunpack.c.l.b16 %v759
      %v5139 = vunpack.c.h.b16 %v759
      %v5140 = vunpack.c.l.b16 %v760
      %v5141 = vunpack.c.h.b16 %v760
      %v5142 = vunpack.c.l.b16 %v761
      %v5143 = vunpack.c.h.b16 %v761
      %v5144 = vunpack.c.l.b16 %v762
      %v5145 = vunpack.c.h.b16 %v762
      %v5146 = vunpack.c.l.b16 %v763
      %v5147 = vunpack.c.h.b16 %v763
      %v5148 = vunpack.c.l.b16 %v764
      %v5149 = vunpack.c.h.b16 %v764
      %v5150 = vunpack.c.l.b16 %v765
      %v5151 = vunpack.c.h.b16 %v765
      %v5152 = vunpack.c.l.b16 %v766
      %v5153 = vunpack.c.h.b16 %v766
      %v5154 = vunpack.c.l.b16 %v767
      %v5155 = vunpack.c.h.b16 %v767
      %v5156 = vunpack.c.l.b16 %v768
      %v5157 = vunpack.c.h.b16 %v768
      %v5158 = vunpack.c.l.b16 %v769
      %v5159 = vunpack.c.h.b16 %v769
      %v5160 = vunpack.c.l.b16 %v770
      %v5161 = vunpack.c.h.b16 %v770
      %v5162 = vunpack.c.l.b16 %v771
      %v5163 = vunpack.c.h.b16 %v771
      %v5164 = vunpack.c.l.b16 %v772
      %v5165 = vunpack.c.h.b16 %v772
      %v5166 = vunpack.c.l.b16 %v773
      %v5167 = vunpack.c.h.b16 %v773
      %v5168 = vunpack.c.l.b16 %v774
      %v5169 = vunpack.c.h.b16 %v774
      %v5170 = vunpack.c.l.b16 %v775
      %v5171 = vunpack.c.h.b16 %v775
      %v5172 = vunpack.c.l.b16 %v776
      %v5173 = vunpack.c.h.b16 %v776
      %v5174 = vunpack.c.l.b16 %v777
      %v5175 = vunpack.c.h.b16 %v777
      %v5176 = vunpack.c.l.b16 %v778
      %v5177 = vunpack.c.h.b16 %v778
      %v5178 = vunpack.c.l.b16 %v779
      %v5179 = vunpack.c.h.b16 %v779
      %v5180 = vunpack.c.l.b16 %v780
      %v5181 = vunpack.c.h.b16 %v780
      %v5182 = vunpack.c.l.b16 %v781
      %v5183 = vunpack.c.h.b16 %v781
      %v5184 = vunpack.c.l.b16 %v782
      %v5185 = vunpack.c.h.b16 %v782
      %v5186 = vunpack.c.l.b16 %v783
      %v5187 = vunpack.c.h.b16 %v783
      %v5188 = vunpack.c.l.b16 %v784
      %v5189 = vunpack.c.h.b16 %v784
      %v5190 = vunpack.c.l.b16 %v785
      %v5191 = vunpack.c.h.b16 %v785
      %v5192 = vunpack.c.l.b16 %v786
      %v5193 = vunpack.c.h.b16 %v786
      %v5194 = vunpack.c.l.b16 %v787
      %v5195 = vunpack.c.h.b16 %v787
      %v5196 = vunpack.c.l.b16 %v788
      %v5197 = vunpack.c.h.b16 %v788
      %v5198 = vunpack.c.l.b16 %v789
      %v5199 = vunpack.c.h.b16 %v789
      %v5200 = vunpack.c.l.b16 %v790
      %v5201 = vunpack.c.h.b16 %v790
      %v5202 = vunpack.c.l.b16 %v791
      %v5203 = vunpack.c.h.b16 %v791
      %v5204 = vunpack.c.l.b16 %v792
      %v5205 = vunpack.c.h.b16 %v792
      %v5206 = vunpack.c.l.b16 %v793
      %v5207 = vunpack.c.h.b16 %v793
      %v5208 = vunpack.c.l.b16 %v794
      %v5209 = vunpack.c.h.b16 %v794
      %v5210 = vunpack.c.l.b16 %v795
      %v5211 = vunpack.c.h.b16 %v795
      %v5212 = vunpack.c.l.b16 %v796
      %v5213 = vunpack.c.h.b16 %v796
      %v5214 = vunpack.c.l.b16 %v797
      %v5215 = vunpack.c.h.b16 %v797
      %v5216 = vunpack.c.l.b16 %v798
      %v5217 = vunpack.c.h.b16 %v798
      %v5218 = vpack.c.b16 %v5038, %v5026
      %v5219 = vpack.c.b16 %v5039, %v5027
      %v5220 = vpack.c.b16 %v5040, %v5028
      %v5221 = vpack.c.b16 %v5041, %v5029
      %v5222 = vpack.c.b16 %v5042, %v5030
      %v5223 = vpack.c.b16 %v5043, %v5031
      %v5224 = vpack.c.b16 %v5044, %v5032
      %v5225 = vpack.c.b16 %v5045, %v5033
      %v5226 = vpack.c.b16 %v5046, %v5034
      %v5227 = vpack.c.b16 %v5047, %v5035
      %v5228 = vpack.c.b16 %v5048, %v5036
      %v5229 = vpack.c.b16 %v5049, %v5037
      %v5230 = vpack.c.b16 %v5062, %v5050
      %v5231 = vpack.c.b16 %v5063, %v5051
      %v5232 = vpack.c.b16 %v5064, %v5052
      %v5233 = vpack.c.b16 %v5065, %v5053
      %v5234 = vpack.c.b16 %v5066, %v5054
      %v5235 = vpack.c.b16 %v5067, %v5055
      %v5236 = vpack.c.b16 %v5068, %v5056
      %v5237 = vpack.c.b16 %v5069, %v5057
      %v5238 = vpack.c.b16 %v5070, %v5058
      %v5239 = vpack.c.b16 %v5071, %v5059
      %v5240 = vpack.c.b16 %v5072, %v5060
      %v5241 = vpack.c.b16 %v5073, %v5061
      %v5242 = vpack.c.b16 %v5086, %v5074
      %v5243 = vpack.c.b16 %v5087, %v5075
      %v5244 = vpack.c.b16 %v5088, %v5076
      %v5245 = vpack.c.b16 %v5089, %v5077
      %v5246 = vpack.c.b16 %v5090, %v5078
      %v5247 = vpack.c.b16 %v5091, %v5079
      %v5248 = vpack.c.b16 %v5092, %v5080
      %v5249 = vpack.c.b16 %v5093, %v5081
      %v5250 = vpack.c.b16 %v5094, %v5082
      %v5251 = vpack.c.b16 %v5095, %v5083
      %v5252 = vpack.c.b16 %v5096, %v5084
      %v5253 = vpack.c.b16 %v5097, %v5085
      %v5254 = vpack.c.b16 %v5110, %v5098
      %v5255 = vpack.c.b16 %v5111, %v5099
      %v5256 = vpack.c.b16 %v5112, %v5100
      %v5257 = vpack.c.b16 %v5113, %v5101
      %v5258 = vpack.c.b16 %v5114, %v5102
      %v5259 = vpack.c.b16 %v5115, %v5103
      %v5260 = vpack.c.b16 %v5116, %v5104
      %v5261 = vpack.c.b16 %v5117, %v5105
      %v5262 = vpack.c.b16 %v5118, %v5106
      %v5263 = vpack.c.b16 %v5119, %v5107
      %v5264 = vpack.c.b16 %v5120, %v5108
      %v5265 = vpack.c.b16 %v5121, %v5109
      %v5266 = vpack.c.b16 %v5134, %v5122
      %v5267 = vpack.c.b16 %v5135, %v5123
      %v5268 = vpack.c.b16 %v5136, %v5124
      %v5269 = vpack.c.b16 %v5137, %v5125
      %v5270 = vpack.c.b16 %v5138, %v5126
      %v5271 = vpack.c.b16 %v5139, %v5127
      %v5272 = vpack.c.b16 %v5140, %v5128
      %v5273 = vpack.c.b16 %v5141, %v5129
      %v5274 = vpack.c.b16 %v5142, %v5130
      %v5275 = vpack.c.b16 %v5143, %v5131
      %v5276 = vpack.c.b16 %v5144, %v5132
      %v5277 = vpack.c.b16 %v5145, %v5133
      %v5278 = vpack.c.b16 %v5158, %v5146
      %v5279 = vpack.c.b16 %v5159, %v5147
      %v5280 = vpack.c.b16 %v5160, %v5148
      %v5281 = vpack.c.b16 %v5161, %v5149
      %v5282 = vpack.c.b16 %v5162, %v5150
      %v5283 = vpack.c.b16 %v5163, %v5151
      %v5284 = vpack.c.b16 %v5164, %v5152
      %v5285 = vpack.c.b16 %v5165, %v5153
      %v5286 = vpack.c.b16 %v5166, %v5154
      %v5287 = vpack.c.b16 %v5167, %v5155
      %v5288 = vpack.c.b16 %v5168, %v5156
      %v5289 = vpack.c.b16 %v5169, %v5157
      %v5290 = vpack.c.b16 %v5182, %v5170
      %v5291 = vpack.c.b16 %v5183, %v5171
      %v5292 = vpack.c.b16 %v5184, %v5172
      %v5293 = vpack.c.b16 %v5185, %v5173
      %v5294 = vpack.c.b16 %v5186, %v5174
      %v5295 = vpack.c.b16 %v5187, %v5175
      %v5296 = vpack.c.b16 %v5188, %v5176
      %v5297 = vpack.c.b16 %v5189, %v5177
      %v5298 = vpack.c.b16 %v5190, %v5178
      %v5299 = vpack.c.b16 %v5191, %v5179
      %v5300 = vpack.c.b16 %v5192, %v5180
      %v5301 = vpack.c.b16 %v5193, %v5181
      %v5302 = vpack.c.b16 %v5206, %v5194
      %v5303 = vpack.c.b16 %v5207, %v5195
      %v5304 = vpack.c.b16 %v5208, %v5196
      %v5305 = vpack.c.b16 %v5209, %v5197
      %v5306 = vpack.c.b16 %v5210, %v5198
      %v5307 = vpack.c.b16 %v5211, %v5199
      %v5308 = vpack.c.b16 %v5212, %v5200
      %v5309 = vpack.c.b16 %v5213, %v5201
      %v5310 = vpack.c.b16 %v5214, %v5202
      %v5311 = vpack.c.b16 %v5215, %v5203
      %v5312 = vpack.c.b16 %v5216, %v5204
      %v5313 = vpack.c.b16 %v5217, %v5205
      %5410 = vmatprep.subr.bf16.mxu0 %v5303
      %5411 = vmatpush1.bf16.msra.mxu0 %v5302
      %5412 = vmatprep.subr.bf16.mxu0 %v5291
      %5413 = vmatpush1.bf16.msra.mxu0 %v5290
      %5414 = vmatprep.subr.bf16.mxu0 %v5279
      %5415 = vmatpush1.bf16.msra.mxu0 %v5278
      %5416 = vmatprep.subr.bf16.mxu0 %v5267
      %5417 = vmatpush1.bf16.msra.mxu0 %v5266
      %5418 = vmatprep.subr.bf16.mxu0 %v5255
      %5419 = vmatpush1.bf16.msra.mxu0 %v5254
      %5420 = vmatprep.subr.bf16.mxu0 %v5243
      %5421 = vmatpush1.bf16.msra.mxu0 %v5242
      %5422 = vmatprep.subr.bf16.mxu0 %v5231
      %5423 = vmatpush1.bf16.msra.mxu0 %v5230
      %5424 = vmatprep.subr.bf16.mxu0 %v5219
      %5425 = vmatpush1.bf16.msra.mxu0 %v5218
      %5426 = vmatprep.subr.bf16.mxu0 0
      %5427 = vmatpush2.bf16.msra.mxu0 0
      %5428 = vmatprep.subr.bf16.mxu0 0
      %5429 = vmatpush2.bf16.msra.mxu0 0
      %5430 = vmatprep.subr.bf16.mxu0 0
      %5431 = vmatpush2.bf16.msra.mxu0 0
      %5432 = vmatprep.subr.bf16.mxu0 0
      %5433 = vmatpush2.bf16.msra.mxu0 0
      %5434 = vmatprep.subr.bf16.mxu0 0
      %5435 = vmatpush2.bf16.msra.mxu0 0
      %5436 = vmatprep.subr.bf16.mxu0 0
      %5437 = vmatpush2.bf16.msra.mxu0 0
      %5438 = vmatprep.subr.bf16.mxu0 0
      %5439 = vmatpush2.bf16.msra.mxu0 0
      %5440 = vmatprep.subr.bf16.mxu0 0
      %5441 = vmatpush2.bf16.msra.mxu0 0
      %5442 = vmatprep.mubr.bf16.mxu0 0
      %5443 = vmatmul.mubr.bf16.gmra.mxu0 %v4928
      %v5444 = vpop.f32.mrf.mxu0
      %v5445 = vadd.f32 0.0, %v5444
      %v5446 = vpop.f32.mrf.mxu0
      %v5447 = vadd.f32 0.0, %v5446
      %v5448 = vpop.f32.mrf.mxu0
      %v5449 = vpop.f32.mrf.mxu0
      %5450 = vdwg.mxu0
      %5451 = vmatprep.subr.bf16.mxu0 %v5305
      %5452 = vmatpush1.bf16.msra.mxu0 %v5304
      %5453 = vmatprep.subr.bf16.mxu0 %v5293
      %5454 = vmatpush1.bf16.msra.mxu0 %v5292
      %5455 = vmatprep.subr.bf16.mxu0 %v5281
      %5456 = vmatpush1.bf16.msra.mxu0 %v5280
      %5457 = vmatprep.subr.bf16.mxu0 %v5269
      %5458 = vmatpush1.bf16.msra.mxu0 %v5268
      %5459 = vmatprep.subr.bf16.mxu0 %v5257
      %5460 = vmatpush1.bf16.msra.mxu0 %v5256
      %5461 = vmatprep.subr.bf16.mxu0 %v5245
      %5462 = vmatpush1.bf16.msra.mxu0 %v5244
      %5463 = vmatprep.subr.bf16.mxu0 %v5233
      %5464 = vmatpush1.bf16.msra.mxu0 %v5232
      %5465 = vmatprep.subr.bf16.mxu0 %v5221
      %5466 = vmatpush1.bf16.msra.mxu0 %v5220
      %5467 = vmatprep.subr.bf16.mxu0 0
      %5468 = vmatpush2.bf16.msra.mxu0 0
      %5469 = vmatprep.subr.bf16.mxu0 0
      %5470 = vmatpush2.bf16.msra.mxu0 0
      %5471 = vmatprep.subr.bf16.mxu0 0
      %5472 = vmatpush2.bf16.msra.mxu0 0
      %5473 = vmatprep.subr.bf16.mxu0 0
      %5474 = vmatpush2.bf16.msra.mxu0 0
      %5475 = vmatprep.subr.bf16.mxu0 0
      %5476 = vmatpush2.bf16.msra.mxu0 0
      %5477 = vmatprep.subr.bf16.mxu0 0
      %5478 = vmatpush2.bf16.msra.mxu0 0
      %5479 = vmatprep.subr.bf16.mxu0 0
      %5480 = vmatpush2.bf16.msra.mxu0 0
      %5481 = vmatprep.subr.bf16.mxu0 0
      %5482 = vmatpush2.bf16.msra.mxu0 0
      %5483 = vmatprep.mubr.bf16.mxu0 0
      %5484 = vmatmul.mubr.bf16.gmra.mxu0 %v4928
      %v5485 = vpop.f32.mrf.mxu0
      %v5486 = vadd.f32 0.0, %v5485
      %v5487 = vpop.f32.mrf.mxu0
      %v5488 = vadd.f32 0.0, %v5487
      %v5489 = vpop.f32.mrf.mxu0
      %v5490 = vpop.f32.mrf.mxu0
      %5491 = vdwg.mxu0
      %5492 = vmatprep.subr.bf16.mxu0 %v5307
      %5493 = vmatpush1.bf16.msra.mxu0 %v5306
      %5494 = vmatprep.subr.bf16.mxu0 %v5295
      %5495 = vmatpush1.bf16.msra.mxu0 %v5294
      %5496 = vmatprep.subr.bf16.mxu0 %v5283
      %5497 = vmatpush1.bf16.msra.mxu0 %v5282
      %5498 = vmatprep.subr.bf16.mxu0 %v5271
      %5499 = vmatpush1.bf16.msra.mxu0 %v5270
      %5500 = vmatprep.subr.bf16.mxu0 %v5259
      %5501 = vmatpush1.bf16.msra.mxu0 %v5258
      %5502 = vmatprep.subr.bf16.mxu0 %v5247
      %5503 = vmatpush1.bf16.msra.mxu0 %v5246
      %5504 = vmatprep.subr.bf16.mxu0 %v5235
      %5505 = vmatpush1.bf16.msra.mxu0 %v5234
      %5506 = vmatprep.subr.bf16.mxu0 %v5223
      %5507 = vmatpush1.bf16.msra.mxu0 %v5222
      %5508 = vmatprep.subr.bf16.mxu0 0
      %5509 = vmatpush2.bf16.msra.mxu0 0
      %5510 = vmatprep.subr.bf16.mxu0 0
      %5511 = vmatpush2.bf16.msra.mxu0 0
      %5512 = vmatprep.subr.bf16.mxu0 0
      %5513 = vmatpush2.bf16.msra.mxu0 0
      %5514 = vmatprep.subr.bf16.mxu0 0
      %5515 = vmatpush2.bf16.msra.mxu0 0
      %5516 = vmatprep.subr.bf16.mxu0 0
      %5517 = vmatpush2.bf16.msra.mxu0 0
      %5518 = vmatprep.subr.bf16.mxu0 0
      %5519 = vmatpush2.bf16.msra.mxu0 0
      %5520 = vmatprep.subr.bf16.mxu0 0
      %5521 = vmatpush2.bf16.msra.mxu0 0
      %5522 = vmatprep.subr.bf16.mxu0 0
      %5523 = vmatpush2.bf16.msra.mxu0 0
      %5524 = vmatprep.mubr.bf16.mxu0 0
      %5525 = vmatmul.mubr.bf16.gmra.mxu0 %v4928
      %v5526 = vpop.f32.mrf.mxu0
      %v5527 = vadd.f32 0.0, %v5526
      %v5528 = vpop.f32.mrf.mxu0
      %v5529 = vadd.f32 0.0, %v5528
      %v5530 = vpop.f32.mrf.mxu0
      %v5531 = vpop.f32.mrf.mxu0
      %5532 = vdwg.mxu0
      %5533 = vmatprep.subr.bf16.mxu0 %v5309
      %5534 = vmatpush1.bf16.msra.mxu0 %v5308
      %5535 = vmatprep.subr.bf16.mxu0 %v5297
      %5536 = vmatpush1.bf16.msra.mxu0 %v5296
      %5537 = vmatprep.subr.bf16.mxu0 %v5285
      %5538 = vmatpush1.bf16.msra.mxu0 %v5284
      %5539 = vmatprep.subr.bf16.mxu0 %v5273
      %5540 = vmatpush1.bf16.msra.mxu0 %v5272
      %5541 = vmatprep.subr.bf16.mxu0 %v5261
      %5542 = vmatpush1.bf16.msra.mxu0 %v5260
      %5543 = vmatprep.subr.bf16.mxu0 %v5249
      %5544 = vmatpush1.bf16.msra.mxu0 %v5248
      %5545 = vmatprep.subr.bf16.mxu0 %v5237
      %5546 = vmatpush1.bf16.msra.mxu0 %v5236
      %5547 = vmatprep.subr.bf16.mxu0 %v5225
      %5548 = vmatpush1.bf16.msra.mxu0 %v5224
      %5549 = vmatprep.subr.bf16.mxu0 0
      %5550 = vmatpush2.bf16.msra.mxu0 0
      %5551 = vmatprep.subr.bf16.mxu0 0
      %5552 = vmatpush2.bf16.msra.mxu0 0
      %5553 = vmatprep.subr.bf16.mxu0 0
      %5554 = vmatpush2.bf16.msra.mxu0 0
      %5555 = vmatprep.subr.bf16.mxu0 0
      %5556 = vmatpush2.bf16.msra.mxu0 0
      %5557 = vmatprep.subr.bf16.mxu0 0
      %5558 = vmatpush2.bf16.msra.mxu0 0
      %5559 = vmatprep.subr.bf16.mxu0 0
      %5560 = vmatpush2.bf16.msra.mxu0 0
      %5561 = vmatprep.subr.bf16.mxu0 0
      %5562 = vmatpush2.bf16.msra.mxu0 0
      %5563 = vmatprep.subr.bf16.mxu0 0
      %5564 = vmatpush2.bf16.msra.mxu0 0
      %5565 = vmatprep.mubr.bf16.mxu0 0
      %5566 = vmatmul.mubr.bf16.gmra.mxu0 %v4928
      %v5567 = vpop.f32.mrf.mxu0
      %v5568 = vadd.f32 0.0, %v5567
      %v5569 = vpop.f32.mrf.mxu0
      %v5570 = vadd.f32 0.0, %v5569
      %v5571 = vpop.f32.mrf.mxu0
      %v5572 = vpop.f32.mrf.mxu0
      %5573 = vdwg.mxu0
      %5574 = vmatprep.subr.bf16.mxu0 %v5311
      %5575 = vmatpush1.bf16.msra.mxu0 %v5310
      %5576 = vmatprep.subr.bf16.mxu0 %v5299
      %5577 = vmatpush1.bf16.msra.mxu0 %v5298
      %5578 = vmatprep.subr.bf16.mxu0 %v5287
      %5579 = vmatpush1.bf16.msra.mxu0 %v5286
      %5580 = vmatprep.subr.bf16.mxu0 %v5275
      %5581 = vmatpush1.bf16.msra.mxu0 %v5274
      %5582 = vmatprep.subr.bf16.mxu0 %v5263
      %5583 = vmatpush1.bf16.msra.mxu0 %v5262
      %5584 = vmatprep.subr.bf16.mxu0 %v5251
      %5585 = vmatpush1.bf16.msra.mxu0 %v5250
      %5586 = vmatprep.subr.bf16.mxu0 %v5239
      %5587 = vmatpush1.bf16.msra.mxu0 %v5238
      %5588 = vmatprep.subr.bf16.mxu0 %v5227
      %5589 = vmatpush1.bf16.msra.mxu0 %v5226
      %5590 = vmatprep.subr.bf16.mxu0 0
      %5591 = vmatpush2.bf16.msra.mxu0 0
      %5592 = vmatprep.subr.bf16.mxu0 0
      %5593 = vmatpush2.bf16.msra.mxu0 0
      %5594 = vmatprep.subr.bf16.mxu0 0
      %5595 = vmatpush2.bf16.msra.mxu0 0
      %5596 = vmatprep.subr.bf16.mxu0 0
      %5597 = vmatpush2.bf16.msra.mxu0 0
      %5598 = vmatprep.subr.bf16.mxu0 0
      %5599 = vmatpush2.bf16.msra.mxu0 0
      %5600 = vmatprep.subr.bf16.mxu0 0
      %5601 = vmatpush2.bf16.msra.mxu0 0
      %5602 = vmatprep.subr.bf16.mxu0 0
      %5603 = vmatpush2.bf16.msra.mxu0 0
      %5604 = vmatprep.subr.bf16.mxu0 0
      %5605 = vmatpush2.bf16.msra.mxu0 0
      %5606 = vmatprep.mubr.bf16.mxu0 0
      %5607 = vmatmul.mubr.bf16.gmra.mxu0 %v4928
      %v5608 = vpop.f32.mrf.mxu0
      %v5609 = vadd.f32 0.0, %v5608
      %v5610 = vpop.f32.mrf.mxu0
      %v5611 = vadd.f32 0.0, %v5610
      %v5612 = vpop.f32.mrf.mxu0
      %v5613 = vpop.f32.mrf.mxu0
      %5614 = vdwg.mxu0
      %5615 = vmatprep.subr.bf16.mxu0 %v5313
      %5616 = vmatpush1.bf16.msra.mxu0 %v5312
      %5617 = vmatprep.subr.bf16.mxu0 %v5301
      %5618 = vmatpush1.bf16.msra.mxu0 %v5300
      %5619 = vmatprep.subr.bf16.mxu0 %v5289
      %5620 = vmatpush1.bf16.msra.mxu0 %v5288
      %5621 = vmatprep.subr.bf16.mxu0 %v5277
      %5622 = vmatpush1.bf16.msra.mxu0 %v5276
      %5623 = vmatprep.subr.bf16.mxu0 %v5265
      %5624 = vmatpush1.bf16.msra.mxu0 %v5264
      %5625 = vmatprep.subr.bf16.mxu0 %v5253
      %5626 = vmatpush1.bf16.msra.mxu0 %v5252
      %5627 = vmatprep.subr.bf16.mxu0 %v5241
      %5628 = vmatpush1.bf16.msra.mxu0 %v5240
      %5629 = vmatprep.subr.bf16.mxu0 %v5229
      %5630 = vmatpush1.bf16.msra.mxu0 %v5228
      %5631 = vmatprep.subr.bf16.mxu0 0
      %5632 = vmatpush2.bf16.msra.mxu0 0
      %5633 = vmatprep.subr.bf16.mxu0 0
      %5634 = vmatpush2.bf16.msra.mxu0 0
      %5635 = vmatprep.subr.bf16.mxu0 0
      %5636 = vmatpush2.bf16.msra.mxu0 0
      %5637 = vmatprep.subr.bf16.mxu0 0
      %5638 = vmatpush2.bf16.msra.mxu0 0
      %5639 = vmatprep.subr.bf16.mxu0 0
      %5640 = vmatpush2.bf16.msra.mxu0 0
      %5641 = vmatprep.subr.bf16.mxu0 0
      %5642 = vmatpush2.bf16.msra.mxu0 0
      %5643 = vmatprep.subr.bf16.mxu0 0
      %5644 = vmatpush2.bf16.msra.mxu0 0
      %5645 = vmatprep.subr.bf16.mxu0 0
      %5646 = vmatpush2.bf16.msra.mxu0 0
      %5647 = vmatprep.mubr.bf16.mxu0 0
      %5648 = vmatmul.mubr.bf16.gmra.mxu0 %v4928
      %v5649 = vpop.f32.mrf.mxu0
      %v5650 = vadd.f32 0.0, %v5649
      %v5651 = vpop.f32.mrf.mxu0
      %v5652 = vadd.f32 0.0, %v5651
      %v5653 = vpop.f32.mrf.mxu0
      %v5654 = vpop.f32.mrf.mxu0
      %5655 = vdwg.mxu0
      %v5668 = vcombine.low %v5445, %v5447
      %v5669 = vcombine.low %v5486, %v5488
      %v5671 = vunpack.c.l.s4 1983009808
      %v5672 = vunpack.c.0.s8 %v5671
      %v5673 = vlaneseq
      %v5674 = vshrl.u32 %v5673, 7
      %v5675 = vsub.s32 %v5672, %v5674
      %v5676 = vrot.slane %v5668, %v5675
      %v5678 = vunpack.c.l.s4 1983009808
      %v5679 = vunpack.c.0.s8 %v5678
      %v5680 = vlaneseq
      %v5681 = vshrl.u32 %v5680, 7
      %v5682 = vsub.s32 %v5679, %v5681
      %v5683 = vrot.slane %v5669, %v5682
      %v5684 = vcombine.low %v5676, %v5683
      %v5685 = vcombine.low %v5527, %v5529
      %v5686 = vcombine.low %v5568, %v5570
      %v5688 = vunpack.c.l.s4 1983009808
      %v5689 = vunpack.c.0.s8 %v5688
      %v5690 = vlaneseq
      %v5691 = vshrl.u32 %v5690, 7
      %v5692 = vsub.s32 %v5689, %v5691
      %v5693 = vrot.slane %v5685, %v5692
      %v5695 = vunpack.c.l.s4 1983009808
      %v5696 = vunpack.c.0.s8 %v5695
      %v5697 = vlaneseq
      %v5698 = vshrl.u32 %v5697, 7
      %v5699 = vsub.s32 %v5696, %v5698
      %v5700 = vrot.slane %v5686, %v5699
      %v5701 = vcombine.low %v5693, %v5700
      %v5702 = vcombine.low %v5609, %v5611
      %v5703 = vcombine.low %v5650, %v5652
      %v5705 = vunpack.c.l.s4 1983009808
      %v5706 = vunpack.c.0.s8 %v5705
      %v5707 = vlaneseq
      %v5708 = vshrl.u32 %v5707, 7
      %v5709 = vsub.s32 %v5706, %v5708
      %v5710 = vrot.slane %v5702, %v5709
      %v5712 = vunpack.c.l.s4 1983009808
      %v5713 = vunpack.c.0.s8 %v5712
      %v5714 = vlaneseq
      %v5715 = vshrl.u32 %v5714, 7
      %v5716 = vsub.s32 %v5713, %v5715
      %v5717 = vrot.slane %v5703, %v5716
      %v5718 = vcombine.low %v5710, %v5717
      %v5722 = vadd.f32 %v4917, %v5684
      %v5723 = vadd.f32 %v4918, %v5701
      %v5724 = vadd.f32 %v4919, %v5718
      %v5729 = vcombine.low %v4135, %v4136
      %v5730 = vcombine.low %v4137, %v4138
      %v5732 = vunpack.c.l.s4 1983009808
      %v5733 = vunpack.c.0.s8 %v5732
      %v5734 = vlaneseq
      %v5735 = vshrl.u32 %v5734, 7
      %v5736 = vsub.s32 %v5733, %v5735
      %v5737 = vrot.slane %v5729, %v5736
      %v5739 = vunpack.c.l.s4 1983009808
      %v5740 = vunpack.c.0.s8 %v5739
      %v5741 = vlaneseq
      %v5742 = vshrl.u32 %v5741, 7
      %v5743 = vsub.s32 %v5740, %v5742
      %v5744 = vrot.slane %v5730, %v5743
      %v5745 = vcombine.low %v5737, %v5744
      %v5747 = vadd.f32 %v5722, %v5745
      %v5748 = vxor.u32 %v5747, 2147483648
      %v5749 = vmul.f32 %v5748, 1.442695
      %v5750 = vpow.pop %v5749
      %v5751 = vadd.f32 %v5750, 1.0
      %v5752 = vrcp.pop %v5751
      %v5753 = vmul.f32 1.0, %v5752
      %v5758 = vcombine.low %v4139, %v4140
      %v5759 = vcombine.low %v4141, %v4142
      %v5761 = vunpack.c.l.s4 1983009808
      %v5762 = vunpack.c.0.s8 %v5761
      %v5763 = vlaneseq
      %v5764 = vshrl.u32 %v5763, 7
      %v5765 = vsub.s32 %v5762, %v5764
      %v5766 = vrot.slane %v5758, %v5765
      %v5768 = vunpack.c.l.s4 1983009808
      %v5769 = vunpack.c.0.s8 %v5768
      %v5770 = vlaneseq
      %v5771 = vshrl.u32 %v5770, 7
      %v5772 = vsub.s32 %v5769, %v5771
      %v5773 = vrot.slane %v5759, %v5772
      %v5774 = vcombine.low %v5766, %v5773
      %v5776 = vadd.f32 %v5723, %v5774
      %v5777 = vxor.u32 %v5776, 2147483648
      %v5778 = vmul.f32 %v5777, 1.442695
      %v5779 = vpow.pop %v5778
      %v5780 = vadd.f32 %v5779, 1.0
      %v5781 = vrcp.pop %v5780
      %v5782 = vmul.f32 1.0, %v5781
      %v5787 = vcombine.low %v4143, %v4144
      %v5788 = vcombine.low %v4145, %v4146
      %v5790 = vunpack.c.l.s4 1983009808
      %v5791 = vunpack.c.0.s8 %v5790
      %v5792 = vlaneseq
      %v5793 = vshrl.u32 %v5792, 7
      %v5794 = vsub.s32 %v5791, %v5793
      %v5795 = vrot.slane %v5787, %v5794
      %v5797 = vunpack.c.l.s4 1983009808
      %v5798 = vunpack.c.0.s8 %v5797
      %v5799 = vlaneseq
      %v5800 = vshrl.u32 %v5799, 7
      %v5801 = vsub.s32 %v5798, %v5800
      %v5802 = vrot.slane %v5788, %v5801
      %v5803 = vcombine.low %v5795, %v5802
      %v5805 = vmul.f32 %v5753, %v5803
      %v5806 = vadd.f32 %v5724, %v5805
      %v5807 = vtanh.pop %v5806
      %v5808 = vsub.f32 1.0, %v5782
      %v5809 = vmul.f32 %v5808, %v5807
      %v5810 = vmul.f32 %v5782, %v805
      %v5811 = vadd.f32 %v5809, %v5810
      %s5812 = smul.u32 %s800, 4
      %s5813 = smul.addr %s5812, 2
      %s5814 = scalar_lea.vmem %s8, %s5813
      %5815 = vst [vmem:[%s5814] sm:$0xff] %v5811
    $region42: #{_lambda_.3} parent=1 // loop_footer
      %s804 = sadd.s32 1, %s800
    $region43: #{_lambda_.3} parent=1 // loop_footer_branch
      %799 = sbr.rel target = $region39
    $region44: #{_lambda_.3} parent=1 // loop_exit
      _
    // Predicated region
    $region45: #{_lambda_.3} parent=1 // pred_check
      _
    $region46: #{_lambda_.3} parent=1 // pred_check_branch
      %5817 = sbr.rel (0) target = $region48
    $region47: #{_lambda_.3} parent=1 // pred_region
      _
    $region48: #{_lambda_.3} parent=1 // pred_fallthru
      _
    // Predicated region
    $region49: #{_lambda_.3} parent=1 // pred_check
      _
    $region50: #{_lambda_.3} parent=1 // pred_check_branch
      %5819 = sbr.rel (0) target = $region52
    $region51: #{_lambda_.3} parent=1 // pred_region
      _
    $region52: #{_lambda_.3} parent=1 // pred_fallthru
      _
    %5820 = vsyncpa [#allocation3], 1

</llo_original>
